<compile_context>
chip_gen: v5e
topology: v5e:2x2
jax: 0.10.0
libtpu: 0.0.40
codegen_flags: <defaults>
</compile_context>

<pallas_src>
import functools

import jax
import jax.numpy as jnp
from jax import lax
from jax.experimental import pallas as pl
from jax.experimental.pallas import tpu as pltpu

# ----------------------------- model hyper-params ---------------------------
C_IN = 4            # input channels (small synthetic stand-in for RGB)
C_STEM = 32         # stem output channels
EXP = 4             # MBConv expansion ratio
C_EXP = C_STEM * EXP  # 128 — expansion width == one lane tile
SE_R = 8            # SE bottleneck width
C_B2 = 64           # block-2 output channels
N_FEAT = 256        # head features (stand-in for backbone.fc.in_features=2560)
NCLASSES = 10       # stand-in for the undefined `nclasses` in the PyTorch code
C_PAD = 128         # lane-dense channel width for all inter-kernel activations

VMEM_FUSED = 32 * 1024 * 1024
VMEM_MATMUL = 48 * 1024 * 1024   # fits all gens; bump to ~96 MiB on v5e/v6e


def _ru(x, m):
    return ((x + m - 1) // m) * m


# --------------------------- tiled matmul (MXU) ------------------------------
def _matmul_kernel(a_ref, b_ref, bias_ref, o_ref, acc_ref, *, act):
    @pl.when(pl.program_id(2) == 0)
    def _():
        acc_ref[...] = jnp.zeros_like(acc_ref)

    acc_ref[...] += jnp.dot(a_ref[...], b_ref[...],
                            preferred_element_type=jnp.float32)

    @pl.when(pl.program_id(2) == pl.num_programs(2) - 1)
    def _():
        y = acc_ref[...] + bias_ref[...]
        if act == "silu":
            y = y * jax.nn.sigmoid(y)
        o_ref[...] = y.astype(o_ref.dtype)


def matmul_bias_act(a, b, bias, act="none", out_dtype=jnp.float32,
                    tm=512, tn=256, tk=512):
    """(M,K)@(K,N)+bias (+SiLU).  bf16 operands (cast in the wrapper so HBM /
    VMEM traffic is halved), f32 accumulation, tk a multiple of 128."""
    M, K = a.shape
    K2, N = b.shape
    assert K == K2
    a = a.astype(jnp.bfloat16)
    b = b.astype(jnp.bfloat16)
    tm = min(tm, _ru(M, 8))
    tn = min(tn, _ru(N, 128))
    tk = min(tk, _ru(K, 128))
    Mp, Np, Kp = _ru(M, tm), _ru(N, tn), _ru(K, tk)
    if (Mp, Kp) != (M, K):
        a = jnp.pad(a, ((0, Mp - M), (0, Kp - K)))
    if (Kp, Np) != (K, N):
        b = jnp.pad(b, ((0, Kp - K), (0, Np - N)))
    bias2 = jnp.pad(bias.reshape(1, N).astype(jnp.float32),
                    ((0, 0), (0, Np - N)))

    out = pl.pallas_call(
        functools.partial(_matmul_kernel, act=act),
        grid=(Mp // tm, Np // tn, Kp // tk),
        in_specs=[
            pl.BlockSpec((tm, tk), lambda i, j, k: (i, k)),
            pl.BlockSpec((tk, tn), lambda i, j, k: (k, j)),
            pl.BlockSpec((1, tn), lambda i, j, k: (0, j)),
        ],
        out_specs=pl.BlockSpec((tm, tn), lambda i, j, k: (i, j)),
        out_shape=jax.ShapeDtypeStruct((Mp, Np), out_dtype),
        scratch_shapes=[pltpu.VMEM((tm, tn), jnp.float32)],
        compiler_params=pltpu.CompilerParams(
            dimension_semantics=("parallel", "parallel", "arbitrary"),
            vmem_limit_bytes=VMEM_MATMUL),
    )(a, b, bias2)
    if (Mp, Np) != (M, N):
        out = out[:M, :N]
    return out


# ---------- fused MBConv front: expand + SiLU + depthwise + SiLU + SE pool ----
def _mbconv_front_s1_kernel(x_ref, ew_ref, eb_ref, dw_ref, db_ref, d_ref, p_ref):
    """Stride-1: 1x1 expand (MXU, bf16) + SiLU + 3x3 depthwise + SiLU + mean.

    The expanded activation stays in VMEM (never written to HBM).  Column taps
    use pltpu.roll (XLU) + border masks; row taps use an aligned zero-row
    concat + contiguous slices."""
    _, H, W, cp = x_ref.shape
    ce = d_ref.shape[-1]
    e = jnp.dot(x_ref[0].reshape(H * W, cp), ew_ref[...],
                preferred_element_type=jnp.float32) + eb_ref[...]
    e = e * jax.nn.sigmoid(e)                              # SiLU (expand)
    e3 = e.reshape(H, W, ce)
    zr = jnp.zeros((1, W, ce), jnp.float32)
    ep = jnp.concatenate([zr, e3, zr], axis=0)             # rows zero-padded

    col = lax.broadcasted_iota(jnp.int32, (1, W, ce), 1)
    left_ok = (col >= 1).astype(jnp.float32)               # reads column j-1
    right_ok = (col <= W - 2).astype(jnp.float32)          # reads column j+1
    wk = dw_ref[...]                                       # (9, ce), k = 3*di+dj

    acc = None
    for di in range(3):
        rows = ep[di:di + H, :, :]                         # e[i+di-1, :, :]
        c = rows * wk[3 * di + 1:3 * di + 2, :]
        c = c + pltpu.roll(rows, 1, 1) * (left_ok * wk[3 * di + 0:3 * di + 1, :])
        c = c + pltpu.roll(rows, W - 1, 1) * (right_ok * wk[3 * di + 2:3 * di + 3, :])
        acc = c if acc is None else acc + c

    y = acc + db_ref[...]
    y = y * jax.nn.sigmoid(y)                              # SiLU (depthwise)
    d_ref[0] = y.astype(d_ref.dtype)
    p_ref[0] = jnp.sum(y.reshape(H * W, ce), axis=0, keepdims=True) * (1.0 / (H * W))


def _mbconv_front_s2_kernel(ph_ref, ew_ref, eb_ref, dw_ref, db_ref, d_ref, p_ref):
    """Stride-2: expand + SiLU + 3x3/s2 depthwise + SiLU + mean.

    ph_ref carries the 4 even/odd spatial phases of the *un-expanded* input
    (stacked along the row axis), so only strided output positions are
    expanded/computed; zero padding happens in the expanded domain in-VMEM."""
    _, h4, wo, cp = ph_ref.shape
    ho = h4 // 4
    ce = d_ref.shape[-1]
    e = jnp.dot(ph_ref[0].reshape(4 * ho * wo, cp), ew_ref[...],
                preferred_element_type=jnp.float32) + eb_ref[...]
    e = e * jax.nn.sigmoid(e)                              # SiLU (expand)
    e4 = e.reshape(4, ho, wo, ce)
    ee, eo, oe, oo = e4[0], e4[1], e4[2], e4[3]

    col = lax.broadcasted_iota(jnp.int32, (1, wo, ce), 1)
    left_ok = (col >= 1).astype(jnp.float32)
    wk = dw_ref[...]

    def w(k):
        return wk[k:k + 1, :]

    zr = jnp.zeros((1, wo, ce), jnp.float32)

    def up(a):      # a[i-1, :, :] with zero row at i == 0 (aligned concat)
        return jnp.concatenate([zr, a[:ho - 1, :, :]], axis=0)

    def left(a):    # a[:, j-1, :] with zero col at j == 0 (XLU roll + mask)
        return pltpu.roll(a, 1, 1) * left_ok

    eo_l, oo_l = left(eo), left(oo)
    acc = ee * w(4)                                         # tap (1,1)
    acc = acc + eo_l * w(3) + eo * w(5)                     # taps (1,0),(1,2)
    acc = acc + up(oe) * w(1) + oe * w(7)                   # taps (0,1),(2,1)
    acc = acc + up(oo_l) * w(0) + up(oo) * w(2)             # taps (0,0),(0,2)
    acc = acc + oo_l * w(6) + oo * w(8)                     # taps (2,0),(2,2)

    y = acc + db_ref[...]
    y = y * jax.nn.sigmoid(y)                               # SiLU (depthwise)
    d_ref[0] = y.astype(d_ref.dtype)
    p_ref[0] = jnp.sum(y.reshape(ho * wo, ce), axis=0, keepdims=True) * (1.0 / (ho * wo))


def mbconv_front_s1(x, exp_w, exp_b, dw_w, dw_b):
    n, H, W, cp = x.shape
    ce = exp_w.shape[1]
    return pl.pallas_call(
        _mbconv_front_s1_kernel,
        grid=(n,),
        in_specs=[
            pl.BlockSpec((1, H, W, cp), lambda i: (i, 0, 0, 0)),
            pl.BlockSpec((cp, ce), lambda i: (0, 0)),
            pl.BlockSpec((1, ce), lambda i: (0, 0)),
            pl.BlockSpec((9, ce), lambda i: (0, 0)),
            pl.BlockSpec((1, ce), lambda i: (0, 0)),
        ],
        out_specs=(pl.BlockSpec((1, H, W, ce), lambda i: (i, 0, 0, 0)),
                   pl.BlockSpec((1, 1, ce), lambda i: (i, 0, 0))),
        out_shape=(jax.ShapeDtypeStruct((n, H, W, ce), jnp.bfloat16),
                   jax.ShapeDtypeStruct((n, 1, ce), jnp.float32)),
        compiler_params=pltpu.CompilerParams(
            dimension_semantics=("parallel",), vmem_limit_bytes=VMEM_FUSED),
    )(x, exp_w, exp_b, dw_w, dw_b)


def mbconv_front_s2(ph, exp_w, exp_b, dw_w, dw_b):
    n, h4, wo, cp = ph.shape
    ho = h4 // 4
    ce = exp_w.shape[1]
    return pl.pallas_call(
        _mbconv_front_s2_kernel,
        grid=(n,),
        in_specs=[
            pl.BlockSpec((1, h4, wo, cp), lambda i: (i, 0, 0, 0)),
            pl.BlockSpec((cp, ce), lambda i: (0, 0)),
            pl.BlockSpec((1, ce), lambda i: (0, 0)),
            pl.BlockSpec((9, ce), lambda i: (0, 0)),
            pl.BlockSpec((1, ce), lambda i: (0, 0)),
        ],
        out_specs=(pl.BlockSpec((1, ho, wo, ce), lambda i: (i, 0, 0, 0)),
                   pl.BlockSpec((1, 1, ce), lambda i: (i, 0, 0))),
        out_shape=(jax.ShapeDtypeStruct((n, ho, wo, ce), jnp.bfloat16),
                   jax.ShapeDtypeStruct((n, 1, ce), jnp.float32)),
        compiler_params=pltpu.CompilerParams(
            dimension_semantics=("parallel",), vmem_limit_bytes=VMEM_FUSED),
    )(ph, exp_w, exp_b, dw_w, dw_b)


# ---------- fused SE MLP + gate + 1x1 project (+ residual) kernel -------------
def _se_project_kernel(*refs, has_residual):
    if has_residual:
        d_ref, p_ref, w1, b1, w2, b2, wp, bp, r_ref, o_ref = refs
    else:
        d_ref, p_ref, w1, b1, w2, b2, wp, bp, o_ref = refs
        r_ref = None
    d2 = d_ref[0].astype(jnp.float32)                      # (HW, Ce)
    pooled = p_ref[0]                                      # (1, Ce) f32
    # SE bottleneck MLP (tiny, kept f32).
    s = jnp.dot(pooled, w1[...], preferred_element_type=jnp.float32) + b1[...]
    s = s * jax.nn.sigmoid(s)                              # SiLU
    g = jax.nn.sigmoid(
        jnp.dot(s, w2[...], preferred_element_type=jnp.float32) + b2[...])
    gated = (d2 * g).astype(jnp.bfloat16)
    # 1x1 project conv as a bf16 MXU matmul (lane-dense, channel-padded out).
    o = jnp.dot(gated, wp[...], preferred_element_type=jnp.float32) + bp[...]
    if has_residual:
        o = o + r_ref[0].astype(jnp.float32)
    o_ref[0] = o.astype(o_ref.dtype)


def se_project(d, pooled, se_w1, se_b1, se_w2, se_b2, proj_w, proj_b, residual):
    n, hw, ce = d.shape
    r = se_w1.shape[1]
    cout = proj_w.shape[1]                                 # already padded to 128
    has_res = residual is not None
    in_specs = [
        pl.BlockSpec((1, hw, ce), lambda i: (i, 0, 0)),
        pl.BlockSpec((1, 1, ce), lambda i: (i, 0, 0)),
        pl.BlockSpec((ce, r), lambda i: (0, 0)),
        pl.BlockSpec((1, r), lambda i: (0, 0)),
        pl.BlockSpec((r, ce), lambda i: (0, 0)),
        pl.BlockSpec((1, ce), lambda i: (0, 0)),
        pl.BlockSpec((ce, cout), lambda i: (0, 0)),
        pl.BlockSpec((1, cout), lambda i: (0, 0)),
    ]
    args = [d, pooled, se_w1, se_b1, se_w2, se_b2, proj_w, proj_b]
    if has_res:
        in_specs.append(pl.BlockSpec((1, hw, cout), lambda i: (i, 0, 0)))
        args.append(residual)
    return pl.pallas_call(
        functools.partial(_se_project_kernel, has_residual=has_res),
        grid=(n,),
        in_specs=in_specs,
        out_specs=pl.BlockSpec((1, hw, cout), lambda i: (i, 0, 0)),
        out_shape=jax.ShapeDtypeStruct((n, hw, cout), jnp.bfloat16),
        compiler_params=pltpu.CompilerParams(
            dimension_semantics=("parallel",), vmem_limit_bytes=VMEM_FUSED),
    )(*args)


# --------------- fused head 1x1 conv + SiLU + GAP + classifier ----------------
def _head_kernel(h_ref, hw_ref, hb_ref, fw_ref, fb_ref, o_ref):
    hh = jnp.dot(h_ref[0], hw_ref[...],
                 preferred_element_type=jnp.float32) + hb_ref[...]
    hh = hh * jax.nn.sigmoid(hh)                           # SiLU
    # Global average pool: exact f32 reduce per image (no segment matrix).
    pooled = jnp.sum(hh, axis=0, keepdims=True) * (1.0 / hh.shape[0])
    logits = jnp.dot(pooled.astype(jnp.bfloat16), fw_ref[...],
                     preferred_element_type=jnp.float32) + fb_ref[...]
    o_ref[0] = logits.astype(o_ref.dtype)


def head_pool_fc(h2, params):
    n, H2, W2, cp = h2.shape
    nf = params["head_w"].shape[1]
    ncls = params["fc_w"].shape[1]
    ncls_p = _ru(ncls, 128)                                # lane-dense classifier out
    head_w = jnp.pad(params["head_w"], ((0, cp - C_B2), (0, 0))).astype(jnp.bfloat16)
    head_b = params["head_b"].reshape(1, nf).astype(jnp.float32)
    fc_w = jnp.pad(params["fc_w"], ((0, 0), (0, ncls_p - ncls))).astype(jnp.bfloat16)
    fc_b = jnp.pad(params["fc_b"], (0, ncls_p - ncls)).reshape(1, ncls_p)
    hw2 = H2 * W2
    out = pl.pallas_call(
        _head_kernel,
        grid=(n,),
        in_specs=[
            pl.BlockSpec((1, hw2, cp), lambda i: (i, 0, 0)),
            pl.BlockSpec((cp, nf), lambda i: (0, 0)),
            pl.BlockSpec((1, nf), lambda i: (0, 0)),
            pl.BlockSpec((nf, ncls_p), lambda i: (0, 0)),
            pl.BlockSpec((1, ncls_p), lambda i: (0, 0)),
        ],
        out_specs=pl.BlockSpec((1, 1, ncls_p), lambda i: (i, 0, 0)),
        out_shape=jax.ShapeDtypeStruct((n, 1, ncls_p), jnp.float32),
        compiler_params=pltpu.CompilerParams(
            dimension_semantics=("parallel",), vmem_limit_bytes=VMEM_FUSED),
    )(h2.reshape(n, hw2, cp), head_w, head_b, fc_w, fc_b)
    return out.reshape(n, ncls_p)


# ------------------------------- model glue ----------------------------------
def init_params(key):
    ks = list(jax.random.split(key, 40))
    it = iter(ks)

    def w(shape, scale=0.05):
        return scale * jax.random.normal(next(it), shape, jnp.float32)

    def mbconv_params(cin, cexp, cout, cse):
        return {
            "exp_w": w((cin, cexp)), "exp_b": w((cexp,)),
            "dw_w": w((9, cexp)), "dw_b": w((cexp,)),
            "se_w1": w((cexp, cse)), "se_b1": w((cse,)),
            "se_w2": w((cse, cexp)), "se_b2": w((cexp,)),
            "proj_w": w((cexp, cout)), "proj_b": w((cout,)),
        }

    return {
        "stem_w": w((9, C_IN, C_STEM)), "stem_b": w((C_STEM,)),
        "block1": mbconv_params(C_STEM, C_EXP, C_STEM, SE_R),
        "block2": mbconv_params(C_STEM, C_EXP, C_B2, SE_R),
        "head_w": w((C_B2, N_FEAT)), "head_b": w((N_FEAT,)),
        "fc_w": w((N_FEAT, NCLASSES)), "fc_b": w((NCLASSES,)),
    }


def mbconv_block(h, p, cin, stride, residual):
    """h: (n, H, W, C_PAD) bf16 with channels zero-padded to 128 lanes."""
    n, H, W, cp = h.shape
    ce = p["exp_w"].shape[1]
    cout = p["proj_w"].shape[1]
    exp_w = jnp.pad(p["exp_w"], ((0, cp - cin), (0, 0))).astype(jnp.bfloat16)
    exp_b = p["exp_b"].reshape(1, ce).astype(jnp.float32)
    dw_w = p["dw_w"].astype(jnp.float32)
    dw_b = p["dw_b"].reshape(1, ce).astype(jnp.float32)
    if stride == 1:
        d, pooled = mbconv_front_s1(h, exp_w, exp_b, dw_w, dw_b)
        ho, wo = H, W
    else:
        # Even/odd spatial phases of the *un-expanded* input (cheap, 1x data);
        # the expanded activation never round-trips through HBM.
        ho, wo = H // 2, W // 2
        ph = jnp.stack([h[:, 0::2, 0::2, :], h[:, 0::2, 1::2, :],
                        h[:, 1::2, 0::2, :], h[:, 1::2, 1::2, :]],
                       axis=1).reshape(n, 4 * ho, wo, cp)
        d, pooled = mbconv_front_s2(ph, exp_w, exp_b, dw_w, dw_b)
    proj_w = jnp.pad(p["proj_w"], ((0, 0), (0, cp - cout))).astype(jnp.bfloat16)
    proj_b = jnp.pad(p["proj_b"], (0, cp - cout)).reshape(1, cp).astype(jnp.float32)
    res = None if residual is None else residual.reshape(n, ho * wo, cp)
    out = se_project(d.reshape(n, ho * wo, ce), pooled,
                     p["se_w1"], p["se_b1"].reshape(1, SE_R),
                     p["se_w2"], p["se_b2"].reshape(1, ce),
                     proj_w, proj_b, res)
    return out.reshape(n, ho, wo, cp)


def efficientnet_b7_forward(params, x_nchw):
    # PyTorch-style NCHW input -> NHWC for the kernels.
    x = jnp.transpose(x_nchw, (0, 2, 3, 1)).astype(jnp.float32)
    n, H, W, cin = x.shape
    assert H % 4 == 0 and W % 4 == 0, "two stride-2 stages require H, W % 4 == 0"
    Ho, Wo = H // 2, W // 2
    # Stem 3x3/s2 conv + SiLU: im2col over the tiny Cin-wide input (wrapper),
    # then a single lane-dense tiled MXU kernel (K = 9*Cin padded to 128,
    # Cout padded to 128 so the store is unmasked).
    xp = jnp.pad(x, ((0, 0), (1, 1), (1, 1), (0, 0)))
    patches = jnp.concatenate(
        [xp[:, di:di + 2 * Ho:2, dj:dj + 2 * Wo:2, :]
         for di in range(3) for dj in range(3)], axis=-1)       # (n, Ho, Wo, 9*cin)
    stem_w = jnp.pad(params["stem_w"].reshape(9 * cin, C_STEM),
                     ((0, 0), (0, C_PAD - C_STEM)))
    stem_b = jnp.pad(params["stem_b"], (0, C_PAD - C_STEM))
    h0 = matmul_bias_act(patches.reshape(n * Ho * Wo, 9 * cin), stem_w, stem_b,
                         act="silu", out_dtype=jnp.bfloat16)
    h0 = h0.reshape(n, Ho, Wo, C_PAD)
    # MBConv blocks (expand+depthwise+SE-pool fused; SE-MLP+project+residual fused).
    h1 = mbconv_block(h0, params["block1"], C_STEM, stride=1, residual=h0)
    h2 = mbconv_block(h1, params["block2"], C_STEM, stride=2, residual=None)
    # Head 1x1 conv + SiLU + global average pool + Linear classifier (fused).
    logits = head_pool_fc(h2, params)
    return logits[:, :NCLASSES]                                  # (n, NCLASSES)


if __name__ == "__main__":
    key = jax.random.PRNGKey(0)
    pkey, xkey = jax.random.split(key)
    params = init_params(pkey)
    x = jax.random.normal(xkey, (2, C_IN, 16, 16), jnp.float32)   # NCHW
    fwd = jax.jit(efficientnet_b7_forward)
    out = jax.block_until_ready(fwd(params, x))
    assert out.shape == (2, NCLASSES), out.shape
    assert bool(jnp.all(jnp.isfinite(out)))
    print("KERNEL_OK")
</pallas_src>

<mosaic_0001>
module attributes {stable_mosaic.version = 11 : i64} {
  func.func @_matmul_kernel(%arg0: i32, %arg1: i32, %arg2: i32, %arg3: memref<128x128xbf16, #tpu.memory_space<vmem>>, %arg4: memref<128x128xbf16, #tpu.memory_space<vmem>>, %arg5: memref<1x128xf32, #tpu.memory_space<vmem>>, %arg6: memref<128x128xbf16, #tpu.memory_space<vmem>>, %arg7: memref<128x128xf32, #tpu.memory_space<vmem>>) attributes {dimension_semantics = [#tpu.dimension_semantics<parallel>, #tpu.dimension_semantics<parallel>, #tpu.dimension_semantics<arbitrary>], iteration_bounds = array<i64: 1, 1, 1>, scalar_prefetch = 0 : i64, scratch_operands = 1 : i64, tpu.core_type = #tpu.core_type<tc>, window_params = [{transform_indices = @transform_0, window_bounds = array<i64: 128, 128>}, {transform_indices = @transform_1, window_bounds = array<i64: 128, 128>}, {transform_indices = @transform_2, window_bounds = array<i64: 1, 128>}, {transform_indices = @transform_3, window_bounds = array<i64: 128, 128>}]} {
    %c0_i32 = arith.constant 0 : i32
    %0 = arith.cmpi eq, %arg2, %c0_i32 : i32
    %1 = arith.extui %0 : i1 to i32
    %c0_i32_0 = arith.constant 0 : i32
    %2 = arith.cmpi ne, %1, %c0_i32_0 : i32
    scf.if %2 {
      %cst_10 = arith.constant 0.000000e+00 : f32
      %12 = vector.broadcast %cst_10 : f32 to vector<128x128xf32>
      %c0_11 = arith.constant 0 : index
      %c0_12 = arith.constant 0 : index
      %13 = vector.load %arg7[%c0_11, %c0_12] : memref<128x128xf32, #tpu.memory_space<vmem>>, vector<128x128xf32>
      tpu.vector_store %arg7[%c0_11, %c0_12], %12 {strides = array<i32>} : memref<128x128xf32, #tpu.memory_space<vmem>>, vector<128x128xf32>,
    } else {
    }
    %c0 = arith.constant 0 : index
    %c0_1 = arith.constant 0 : index
    %3 = vector.load %arg7[%c0, %c0_1] : memref<128x128xf32, #tpu.memory_space<vmem>>, vector<128x128xf32>
    %c0_2 = arith.constant 0 : index
    %c0_3 = arith.constant 0 : index
    %4 = vector.load %arg3[%c0_2, %c0_3] : memref<128x128xbf16, #tpu.memory_space<vmem>>, vector<128x128xbf16>
    %c0_4 = arith.constant 0 : index
    %c0_5 = arith.constant 0 : index
    %5 = vector.load %arg4[%c0_4, %c0_5] : memref<128x128xbf16, #tpu.memory_space<vmem>>, vector<128x128xbf16>
    %cst = arith.constant dense<0.000000e+00> : vector<128x128xf32>
    %6 = tpu.matmul %4, %5, %cst {dimension_numbers = #tpu.dot_dimension_numbers<[1], [0], [0], [1], [0, 0, 1, 1], [], []>} : vector<128x128xbf16>, vector<128x128xbf16>, vector<128x128xf32> -> vector<128x128xf32>
    %7 = arith.addf %3, %6 : vector<128x128xf32>
    %c0_6 = arith.constant 0 : index
    %c0_7 = arith.constant 0 : index
    %8 = vector.load %arg7[%c0_6, %c0_7] : memref<128x128xf32, #tpu.memory_space<vmem>>, vector<128x128xf32>
    tpu.vector_store %arg7[%c0_6, %c0_7], %7 {strides = array<i32>} : memref<128x128xf32, #tpu.memory_space<vmem>>, vector<128x128xf32>,
    %c0_i32_8 = arith.constant 0 : i32
    %9 = arith.cmpi eq, %arg2, %c0_i32_8 : i32
    %10 = arith.extui %9 : i1 to i32
    %c0_i32_9 = arith.constant 0 : i32
    %11 = arith.cmpi ne, %10, %c0_i32_9 : i32
    scf.if %11 {
      %c0_10 = arith.constant 0 : index
      %c0_11 = arith.constant 0 : index
      %12 = vector.load %arg7[%c0_10, %c0_11] : memref<128x128xf32, #tpu.memory_space<vmem>>, vector<128x128xf32>
      %c0_12 = arith.constant 0 : index
      %c0_13 = arith.constant 0 : index
      %13 = vector.load %arg5[%c0_12, %c0_13] : memref<1x128xf32, #tpu.memory_space<vmem>>, vector<1x128xf32>
      %14 = vector.broadcast %13 : vector<1x128xf32> to vector<128x128xf32>
      %15 = arith.addf %12, %14 : vector<128x128xf32>
      %16 = arith.negf %15 : vector<128x128xf32>
      %17 = math.exp %16 : vector<128x128xf32>
      %cst_14 = arith.constant 1.000000e+00 : f32
      %18 = vector.broadcast %cst_14 : f32 to vector<128x128xf32>
      %19 = arith.addf %18, %17 : vector<128x128xf32>
      %20 = arith.divf %18, %19 : vector<128x128xf32>
      %21 = arith.mulf %15, %20 : vector<128x128xf32>
      %22 = arith.truncf %21 : vector<128x128xf32> to vector<128x128xbf16>
      %c0_15 = arith.constant 0 : index
      %c0_16 = arith.constant 0 : index
      %23 = vector.load %arg6[%c0_15, %c0_16] : memref<128x128xbf16, #tpu.memory_space<vmem>>, vector<128x128xbf16>
      tpu.vector_store %arg6[%c0_15, %c0_16], %22 {strides = array<i32>} : memref<128x128xbf16, #tpu.memory_space<vmem>>, vector<128x128xbf16>,
    } else {
    }
    return
  }
  func.func @transform_0(%arg0: i32, %arg1: i32, %arg2: i32) -> (i32, i32) {
    %c0_i32 = arith.constant 0 : i32
    return %arg0, %arg2 : i32, i32
  }
  func.func @transform_1(%arg0: i32, %arg1: i32, %arg2: i32) -> (i32, i32) {
    %c0_i32 = arith.constant 0 : i32
    return %arg2, %arg1 : i32, i32
  }
  func.func @transform_2(%arg0: i32, %arg1: i32, %arg2: i32) -> (i32, i32) {
    %c0_i32 = arith.constant 0 : i32
    %c0_i32_0 = arith.constant 0 : i32
    return %c0_i32, %arg1 : i32, i32
  }
  func.func @transform_3(%arg0: i32, %arg1: i32, %arg2: i32) -> (i32, i32) {
    %c0_i32 = arith.constant 0 : i32
    return %arg0, %arg1 : i32, i32
  }
}

module attributes {stable_mosaic.version = 11 : i64} {
  func.func @_mbconv_front_s1_kernel(%arg0: i32, %arg1: memref<1x8x8x128xbf16, #tpu.memory_space<vmem>>, %arg2: memref<128x128xbf16, #tpu.memory_space<vmem>>, %arg3: memref<1x128xf32, #tpu.memory_space<vmem>>, %arg4: memref<9x128xf32, #tpu.memory_space<vmem>>, %arg5: memref<1x128xf32, #tpu.memory_space<vmem>>, %arg6: memref<1x8x8x128xbf16, #tpu.memory_space<vmem>>, %arg7: memref<1x1x128xf32, #tpu.memory_space<vmem>>) attributes {dimension_semantics = [#tpu.dimension_semantics<parallel>], iteration_bounds = array<i64: 2>, scalar_prefetch = 0 : i64, scratch_operands = 0 : i64, tpu.core_type = #tpu.core_type<tc>, window_params = [{transform_indices = @transform_0, window_bounds = array<i64: 1, 8, 8, 128>}, {pipeline_mode = #tpu.pipeline_mode<synchronous>, transform_indices = @transform_1, window_bounds = array<i64: 128, 128>}, {pipeline_mode = #tpu.pipeline_mode<synchronous>, transform_indices = @transform_2, window_bounds = array<i64: 1, 128>}, {pipeline_mode = #tpu.pipeline_mode<synchronous>, transform_indices = @transform_3, window_bounds = array<i64: 9, 128>}, {pipeline_mode = #tpu.pipeline_mode<synchronous>, transform_indices = @transform_4, window_bounds = array<i64: 1, 128>}, {transform_indices = @transform_5, window_bounds = array<i64: 1, 8, 8, 128>}, {transform_indices = @transform_6, window_bounds = array<i64: 1, 1, 128>}]} {
    %c0 = arith.constant 0 : index
    %c0_0 = arith.constant 0 : index
    %c0_1 = arith.constant 0 : index
    %c0_2 = arith.constant 0 : index
    %0 = vector.load %arg1[%c0, %c0_0, %c0_1, %c0_2] : memref<1x8x8x128xbf16, #tpu.memory_space<vmem>>, vector<1x8x8x128xbf16>
    %1 = vector.shape_cast %0 : vector<1x8x8x128xbf16> to vector<8x8x128xbf16>
    %2 = vector.shape_cast %1 : vector<8x8x128xbf16> to vector<64x128xbf16>
    %c0_3 = arith.constant 0 : index
    %c0_4 = arith.constant 0 : index
    %3 = vector.load %arg2[%c0_3, %c0_4] : memref<128x128xbf16, #tpu.memory_space<vmem>>, vector<128x128xbf16>
    %cst = arith.constant dense<0.000000e+00> : vector<64x128xf32>
    %4 = tpu.matmul %2, %3, %cst {dimension_numbers = #tpu.dot_dimension_numbers<[1], [0], [0], [1], [0, 0, 1, 1], [], []>} : vector<64x128xbf16>, vector<128x128xbf16>, vector<64x128xf32> -> vector<64x128xf32>
    %c0_5 = arith.constant 0 : index
    %c0_6 = arith.constant 0 : index
    %5 = vector.load %arg3[%c0_5, %c0_6] : memref<1x128xf32, #tpu.memory_space<vmem>>, vector<1x128xf32>
    %6 = vector.broadcast %5 : vector<1x128xf32> to vector<64x128xf32>
    %7 = arith.addf %4, %6 : vector<64x128xf32>
    %8 = arith.negf %7 : vector<64x128xf32>
    %9 = math.exp %8 : vector<64x128xf32>
    %cst_7 = arith.constant 1.000000e+00 : f32
    %10 = vector.broadcast %cst_7 : f32 to vector<64x128xf32>
    %11 = arith.addf %10, %9 : vector<64x128xf32>
    %12 = arith.divf %10, %11 : vector<64x128xf32>
    %13 = arith.mulf %7, %12 : vector<64x128xf32>
    %14 = vector.shape_cast %13 : vector<64x128xf32> to vector<8x8x128xf32>
    %cst_8 = arith.constant 0.000000e+00 : f32
    %15 = vector.broadcast %cst_8 : f32 to vector<1x8x128xf32>
    %16 = tpu.concatenate %15, %14, %15 in 0 : vector<1x8x128xf32>, vector<8x8x128xf32>, vector<1x8x128xf32> -> vector<10x8x128xf32>
    %17 = tpu.iota {dimensions = array<i32: 1>} : vector<1x8x128xi32>
    %c1_i32 = arith.constant 1 : i32
    %18 = vector.broadcast %c1_i32 : i32 to vector<1x8x128xi32>
    %19 = arith.cmpi sge, %17, %18 : vector<1x8x128xi32>
    %20 = arith.extui %19 : vector<1x8x128xi1> to vector<1x8x128xi32>
    %21 = arith.sitofp %20 : vector<1x8x128xi32> to vector<1x8x128xf32>
    %c6_i32 = arith.constant 6 : i32
    %22 = vector.broadcast %c6_i32 : i32 to vector<1x8x128xi32>
    %23 = arith.cmpi sle, %17, %22 : vector<1x8x128xi32>
    %24 = arith.extui %23 : vector<1x8x128xi1> to vector<1x8x128xi32>
    %25 = arith.sitofp %24 : vector<1x8x128xi32> to vector<1x8x128xf32>
    %c0_9 = arith.constant 0 : index
    %c0_10 = arith.constant 0 : index
    %26 = vector.load %arg4[%c0_9, %c0_10] : memref<9x128xf32, #tpu.memory_space<vmem>>, vector<9x128xf32>
    %27 = vector.extract_strided_slice %16 {offsets = [0, 0, 0], sizes = [8, 8, 128], strides = [1, 1, 1]} : vector<10x8x128xf32> to vector<8x8x128xf32>
    %28 = vector.extract_strided_slice %26 {offsets = [1, 0], sizes = [1, 128], strides = [1, 1]} : vector<9x128xf32> to vector<1x128xf32>
    %29 = vector.shape_cast %28 : vector<1x128xf32> to vector<1x1x128xf32>
    %30 = vector.broadcast %29 : vector<1x1x128xf32> to vector<8x8x128xf32>
    %31 = arith.mulf %27, %30 : vector<8x8x128xf32>
    %c1_i32_11 = arith.constant 1 : i32
    %32 = tpu.dynamic_rotate %27 by %c1_i32_11 dim 1 : vector<8x8x128xf32>, i32 -> vector<8x8x128xf32>
    %33 = vector.extract_strided_slice %26 {offsets = [0, 0], sizes = [1, 128], strides = [1, 1]} : vector<9x128xf32> to vector<1x128xf32>
    %34 = vector.shape_cast %33 : vector<1x128xf32> to vector<1x1x128xf32>
    %35 = vector.broadcast %34 : vector<1x1x128xf32> to vector<1x8x128xf32>
    %36 = arith.mulf %21, %35 : vector<1x8x128xf32>
    %37 = vector.broadcast %36 : vector<1x8x128xf32> to vector<8x8x128xf32>
    %38 = arith.mulf %32, %37 : vector<8x8x128xf32>
    %39 = arith.addf %31, %38 : vector<8x8x128xf32>
    %c7_i32 = arith.constant 7 : i32
    %40 = tpu.dynamic_rotate %27 by %c7_i32 dim 1 : vector<8x8x128xf32>, i32 -> vector<8x8x128xf32>
    %41 = vector.extract_strided_slice %26 {offsets = [2, 0], sizes = [1, 128], strides = [1, 1]} : vector<9x128xf32> to vector<1x128xf32>
    %42 = vector.shape_cast %41 : vector<1x128xf32> to vector<1x1x128xf32>
    %43 = vector.broadcast %42 : vector<1x1x128xf32> to vector<1x8x128xf32>
    %44 = arith.mulf %25, %43 : vector<1x8x128xf32>
    %45 = vector.broadcast %44 : vector<1x8x128xf32> to vector<8x8x128xf32>
    %46 = arith.mulf %40, %45 : vector<8x8x128xf32>
    %47 = arith.addf %39, %46 : vector<8x8x128xf32>
    %48 = vector.extract_strided_slice %16 {offsets = [1, 0, 0], sizes = [8, 8, 128], strides = [1, 1, 1]} : vector<10x8x128xf32> to vector<8x8x128xf32>
    %49 = vector.extract_strided_slice %26 {offsets = [4, 0], sizes = [1, 128], strides = [1, 1]} : vector<9x128xf32> to vector<1x128xf32>
    %50 = vector.shape_cast %49 : vector<1x128xf32> to vector<1x1x128xf32>
    %51 = vector.broadcast %50 : vector<1x1x128xf32> to vector<8x8x128xf32>
    %52 = arith.mulf %48, %51 : vector<8x8x128xf32>
    %c1_i32_12 = arith.constant 1 : i32
    %53 = tpu.dynamic_rotate %48 by %c1_i32_12 dim 1 : vector<8x8x128xf32>, i32 -> vector<8x8x128xf32>
    %54 = vector.extract_strided_slice %26 {offsets = [3, 0], sizes = [1, 128], strides = [1, 1]} : vector<9x128xf32> to vector<1x128xf32>
    %55 = vector.shape_cast %54 : vector<1x128xf32> to vector<1x1x128xf32>
    %56 = vector.broadcast %55 : vector<1x1x128xf32> to vector<1x8x128xf32>
    %57 = arith.mulf %21, %56 : vector<1x8x128xf32>
    %58 = vector.broadcast %57 : vector<1x8x128xf32> to vector<8x8x128xf32>
    %59 = arith.mulf %53, %58 : vector<8x8x128xf32>
    %60 = arith.addf %52, %59 : vector<8x8x128xf32>
    %c7_i32_13 = arith.constant 7 : i32
    %61 = tpu.dynamic_rotate %48 by %c7_i32_13 dim 1 : vector<8x8x128xf32>, i32 -> vector<8x8x128xf32>
    %62 = vector.extract_strided_slice %26 {offsets = [5, 0], sizes = [1, 128], strides = [1, 1]} : vector<9x128xf32> to vector<1x128xf32>
    %63 = vector.shape_cast %62 : vector<1x128xf32> to vector<1x1x128xf32>
    %64 = vector.broadcast %63 : vector<1x1x128xf32> to vector<1x8x128xf32>
    %65 = arith.mulf %25, %64 : vector<1x8x128xf32>
    %66 = vector.broadcast %65 : vector<1x8x128xf32> to vector<8x8x128xf32>
    %67 = arith.mulf %61, %66 : vector<8x8x128xf32>
    %68 = arith.addf %60, %67 : vector<8x8x128xf32>
    %69 = arith.addf %47, %68 : vector<8x8x128xf32>
    %70 = vector.extract_strided_slice %16 {offsets = [2, 0, 0], sizes = [8, 8, 128], strides = [1, 1, 1]} : vector<10x8x128xf32> to vector<8x8x128xf32>
    %71 = vector.extract_strided_slice %26 {offsets = [7, 0], sizes = [1, 128], strides = [1, 1]} : vector<9x128xf32> to vector<1x128xf32>
    %72 = vector.shape_cast %71 : vector<1x128xf32> to vector<1x1x128xf32>
    %73 = vector.broadcast %72 : vector<1x1x128xf32> to vector<8x8x128xf32>
    %74 = arith.mulf %70, %73 : vector<8x8x128xf32>
    %c1_i32_14 = arith.constant 1 : i32
    %75 = tpu.dynamic_rotate %70 by %c1_i32_14 dim 1 : vector<8x8x128xf32>, i32 -> vector<8x8x128xf32>
    %76 = vector.extract_strided_slice %26 {offsets = [6, 0], sizes = [1, 128], strides = [1, 1]} : vector<9x128xf32> to vector<1x128xf32>
    %77 = vector.shape_cast %76 : vector<1x128xf32> to vector<1x1x128xf32>
    %78 = vector.broadcast %77 : vector<1x1x128xf32> to vector<1x8x128xf32>
    %79 = arith.mulf %21, %78 : vector<1x8x128xf32>
    %80 = vector.broadcast %79 : vector<1x8x128xf32> to vector<8x8x128xf32>
    %81 = arith.mulf %75, %80 : vector<8x8x128xf32>
    %82 = arith.addf %74, %81 : vector<8x8x128xf32>
    %c7_i32_15 = arith.constant 7 : i32
    %83 = tpu.dynamic_rotate %70 by %c7_i32_15 dim 1 : vector<8x8x128xf32>, i32 -> vector<8x8x128xf32>
    %84 = vector.extract_strided_slice %26 {offsets = [8, 0], sizes = [1, 128], strides = [1, 1]} : vector<9x128xf32> to vector<1x128xf32>
    %85 = vector.shape_cast %84 : vector<1x128xf32> to vector<1x1x128xf32>
    %86 = vector.broadcast %85 : vector<1x1x128xf32> to vector<1x8x128xf32>
    %87 = arith.mulf %25, %86 : vector<1x8x128xf32>
    %88 = vector.broadcast %87 : vector<1x8x128xf32> to vector<8x8x128xf32>
    %89 = arith.mulf %83, %88 : vector<8x8x128xf32>
    %90 = arith.addf %82, %89 : vector<8x8x128xf32>
    %91 = arith.addf %69, %90 : vector<8x8x128xf32>
    %c0_16 = arith.constant 0 : index
    %c0_17 = arith.constant 0 : index
    %92 = vector.load %arg5[%c0_16, %c0_17] : memref<1x128xf32, #tpu.memory_space<vmem>>, vector<1x128xf32>
    %93 = vector.shape_cast %92 : vector<1x128xf32> to vector<1x1x128xf32>
    %94 = vector.broadcast %93 : vector<1x1x128xf32> to vector<8x8x128xf32>
    %95 = arith.addf %91, %94 : vector<8x8x128xf32>
    %96 = arith.negf %95 : vector<8x8x128xf32>
    %97 = math.exp %96 : vector<8x8x128xf32>
    %cst_18 = arith.constant 1.000000e+00 : f32
    %98 = vector.broadcast %cst_18 : f32 to vector<8x8x128xf32>
    %99 = arith.addf %98, %97 : vector<8x8x128xf32>
    %100 = arith.divf %98, %99 : vector<8x8x128xf32>
    %101 = arith.mulf %95, %100 : vector<8x8x128xf32>
    %102 = arith.truncf %101 : vector<8x8x128xf32> to vector<8x8x128xbf16>
    %c0_19 = arith.constant 0 : index
    %c0_20 = arith.constant 0 : index
    %c0_21 = arith.constant 0 : index
    %c0_22 = arith.constant 0 : index
    %103 = vector.load %arg6[%c0_19, %c0_20, %c0_21, %c0_22] : memref<1x8x8x128xbf16, #tpu.memory_space<vmem>>, vector<1x8x8x128xbf16>
    %104 = vector.shape_cast %103 : vector<1x8x8x128xbf16> to vector<8x8x128xbf16>
    %105 = vector.shape_cast %102 : vector<8x8x128xbf16> to vector<1x8x8x128xbf16>
    tpu.vector_store %arg6[%c0_19, %c0_20, %c0_21, %c0_22], %105 {strides = array<i32>} : memref<1x8x8x128xbf16, #tpu.memory_space<vmem>>, vector<1x8x8x128xbf16>,
    %106 = vector.shape_cast %101 : vector<8x8x128xf32> to vector<64x128xf32>
    %cst_23 = arith.constant dense<0.000000e+00> : vector<128xf32>
    %107 = vector.multi_reduction <add>, %106, %cst_23 [0] : vector<64x128xf32> to vector<128xf32>
    %108 = vector.shape_cast %107 : vector<128xf32> to vector<1x128xf32>
    %cst_24 = arith.constant 1.562500e-02 : f32
    %109 = vector.broadcast %cst_24 : f32 to vector<1x128xf32>
    %110 = arith.mulf %108, %109 : vector<1x128xf32>
    %c0_25 = arith.constant 0 : index
    %c0_26 = arith.constant 0 : index
    %c0_27 = arith.constant 0 : index
    %111 = vector.load %arg7[%c0_25, %c0_26, %c0_27] : memref<1x1x128xf32, #tpu.memory_space<vmem>>, vector<1x1x128xf32>
    %112 = vector.shape_cast %111 : vector<1x1x128xf32> to vector<1x128xf32>
    %113 = vector.shape_cast %110 : vector<1x128xf32> to vector<1x1x128xf32>
    tpu.vector_store %arg7[%c0_25, %c0_26, %c0_27], %113 {strides = array<i32>} : memref<1x1x128xf32, #tpu.memory_space<vmem>>, vector<1x1x128xf32>,
    return
  }
  func.func @transform_0(%arg0: i32) -> (i32, i32, i32, i32) {
    %c0_i32 = arith.constant 0 : i32
    %c0_i32_0 = arith.constant 0 : i32
    %c0_i32_1 = arith.constant 0 : i32
    %c0_i32_2 = arith.constant 0 : i32
    return %arg0, %c0_i32, %c0_i32_0, %c0_i32_1 : i32, i32, i32, i32
  }
  func.func @transform_1(%arg0: i32) -> (i32, i32) {
    %c0_i32 = arith.constant 0 : i32
    %c0_i32_0 = arith.constant 0 : i32
    %c0_i32_1 = arith.constant 0 : i32
    return %c0_i32, %c0_i32_0 : i32, i32
  }
  func.func @transform_2(%arg0: i32) -> (i32, i32) {
    %c0_i32 = arith.constant 0 : i32
    %c0_i32_0 = arith.constant 0 : i32
    %c0_i32_1 = arith.constant 0 : i32
    return %c0_i32, %c0_i32_0 : i32, i32
  }
  func.func @transform_3(%arg0: i32) -> (i32, i32) {
    %c0_i32 = arith.constant 0 : i32
    %c0_i32_0 = arith.constant 0 : i32
    %c0_i32_1 = arith.constant 0 : i32
    return %c0_i32, %c0_i32_0 : i32, i32
  }
  func.func @transform_4(%arg0: i32) -> (i32, i32) {
    %c0_i32 = arith.constant 0 : i32
    %c0_i32_0 = arith.constant 0 : i32
    %c0_i32_1 = arith.constant 0 : i32
    return %c0_i32, %c0_i32_0 : i32, i32
  }
  func.func @transform_5(%arg0: i32) -> (i32, i32, i32, i32) {
    %c0_i32 = arith.constant 0 : i32
    %c0_i32_0 = arith.constant 0 : i32
    %c0_i32_1 = arith.constant 0 : i32
    %c0_i32_2 = arith.constant 0 : i32
    return %arg0, %c0_i32, %c0_i32_0, %c0_i32_1 : i32, i32, i32, i32
  }
  func.func @transform_6(%arg0: i32) -> (i32, i32, i32) {
    %c0_i32 = arith.constant 0 : i32
    %c0_i32_0 = arith.constant 0 : i32
    %c0_i32_1 = arith.constant 0 : i32
    return %arg0, %c0_i32, %c0_i32_0 : i32, i32, i32
  }
}

module attributes {stable_mosaic.version = 11 : i64} {
  func.func @_se_project_kernel(%arg0: i32, %arg1: memref<1x64x128xbf16, #tpu.memory_space<vmem>>, %arg2: memref<1x1x128xf32, #tpu.memory_space<vmem>>, %arg3: memref<128x8xf32, #tpu.memory_space<vmem>>, %arg4: memref<1x8xf32, #tpu.memory_space<vmem>>, %arg5: memref<8x128xf32, #tpu.memory_space<vmem>>, %arg6: memref<1x128xf32, #tpu.memory_space<vmem>>, %arg7: memref<128x128xbf16, #tpu.memory_space<vmem>>, %arg8: memref<1x128xf32, #tpu.memory_space<vmem>>, %arg9: memref<1x64x128xbf16, #tpu.memory_space<vmem>>, %arg10: memref<1x64x128xbf16, #tpu.memory_space<vmem>>) attributes {dimension_semantics = [#tpu.dimension_semantics<parallel>], iteration_bounds = array<i64: 2>, scalar_prefetch = 0 : i64, scratch_operands = 0 : i64, tpu.core_type = #tpu.core_type<tc>, window_params = [{transform_indices = @transform_0, window_bounds = array<i64: 1, 64, 128>}, {transform_indices = @transform_1, window_bounds = array<i64: 1, 1, 128>}, {pipeline_mode = #tpu.pipeline_mode<synchronous>, transform_indices = @transform_2, window_bounds = array<i64: 128, 8>}, {pipeline_mode = #tpu.pipeline_mode<synchronous>, transform_indices = @transform_3, window_bounds = array<i64: 1, 8>}, {pipeline_mode = #tpu.pipeline_mode<synchronous>, transform_indices = @transform_4, window_bounds = array<i64: 8, 128>}, {pipeline_mode = #tpu.pipeline_mode<synchronous>, transform_indices = @transform_5, window_bounds = array<i64: 1, 128>}, {pipeline_mode = #tpu.pipeline_mode<synchronous>, transform_indices = @transform_6, window_bounds = array<i64: 128, 128>}, {pipeline_mode = #tpu.pipeline_mode<synchronous>, transform_indices = @transform_7, window_bounds = array<i64: 1, 128>}, {transform_indices = @transform_8, window_bounds = array<i64: 1, 64, 128>}, {transform_indices = @transform_9, window_bounds = array<i64: 1, 64, 128>}]} {
    %c0 = arith.constant 0 : index
    %c0_0 = arith.constant 0 : index
    %c0_1 = arith.constant 0 : index
    %0 = vector.load %arg1[%c0, %c0_0, %c0_1] : memref<1x64x128xbf16, #tpu.memory_space<vmem>>, vector<1x64x128xbf16>
    %1 = vector.shape_cast %0 : vector<1x64x128xbf16> to vector<64x128xbf16>
    %2 = arith.extf %1 : vector<64x128xbf16> to vector<64x128xf32>
    %c0_2 = arith.constant 0 : index
    %c0_3 = arith.constant 0 : index
    %c0_4 = arith.constant 0 : index
    %3 = vector.load %arg2[%c0_2, %c0_3, %c0_4] : memref<1x1x128xf32, #tpu.memory_space<vmem>>, vector<1x1x128xf32>
    %4 = vector.shape_cast %3 : vector<1x1x128xf32> to vector<1x128xf32>
    %c0_5 = arith.constant 0 : index
    %c0_6 = arith.constant 0 : index
    %5 = vector.load %arg3[%c0_5, %c0_6] : memref<128x8xf32, #tpu.memory_space<vmem>>, vector<128x8xf32>
    %cst = arith.constant dense<0.000000e+00> : vector<1x8xf32>
    %6 = tpu.matmul %4, %5, %cst {dimension_numbers = #tpu.dot_dimension_numbers<[1], [0], [0], [1], [0, 0, 1, 1], [], []>} : vector<1x128xf32>, vector<128x8xf32>, vector<1x8xf32> -> vector<1x8xf32>
    %c0_7 = arith.constant 0 : index
    %c0_8 = arith.constant 0 : index
    %7 = vector.load %arg4[%c0_7, %c0_8] : memref<1x8xf32, #tpu.memory_space<vmem>>, vector<1x8xf32>
    %8 = arith.addf %6, %7 : vector<1x8xf32>
    %9 = arith.negf %8 : vector<1x8xf32>
    %10 = math.exp %9 : vector<1x8xf32>
    %cst_9 = arith.constant 1.000000e+00 : f32
    %11 = vector.broadcast %cst_9 : f32 to vector<1x8xf32>
    %12 = arith.addf %11, %10 : vector<1x8xf32>
    %13 = arith.divf %11, %12 : vector<1x8xf32>
    %14 = arith.mulf %8, %13 : vector<1x8xf32>
    %c0_10 = arith.constant 0 : index
    %c0_11 = arith.constant 0 : index
    %15 = vector.load %arg5[%c0_10, %c0_11] : memref<8x128xf32, #tpu.memory_space<vmem>>, vector<8x128xf32>
    %cst_12 = arith.constant dense<0.000000e+00> : vector<1x128xf32>
    %16 = tpu.matmul %14, %15, %cst_12 {dimension_numbers = #tpu.dot_dimension_numbers<[1], [0], [0], [1], [0, 0, 1, 1], [], []>} : vector<1x8xf32>, vector<8x128xf32>, vector<1x128xf32> -> vector<1x128xf32>
    %c0_13 = arith.constant 0 : index
    %c0_14 = arith.constant 0 : index
    %17 = vector.load %arg6[%c0_13, %c0_14] : memref<1x128xf32, #tpu.memory_space<vmem>>, vector<1x128xf32>
    %18 = arith.addf %16, %17 : vector<1x128xf32>
    %19 = arith.negf %18 : vector<1x128xf32>
    %20 = math.exp %19 : vector<1x128xf32>
    %cst_15 = arith.constant 1.000000e+00 : f32
    %21 = vector.broadcast %cst_15 : f32 to vector<1x128xf32>
    %22 = arith.addf %21, %20 : vector<1x128xf32>
    %23 = arith.divf %21, %22 : vector<1x128xf32>
    %24 = vector.broadcast %23 : vector<1x128xf32> to vector<64x128xf32>
    %25 = arith.mulf %2, %24 : vector<64x128xf32>
    %26 = arith.truncf %25 : vector<64x128xf32> to vector<64x128xbf16>
    %c0_16 = arith.constant 0 : index
    %c0_17 = arith.constant 0 : index
    %27 = vector.load %arg7[%c0_16, %c0_17] : memref<128x128xbf16, #tpu.memory_space<vmem>>, vector<128x128xbf16>
    %cst_18 = arith.constant dense<0.000000e+00> : vector<64x128xf32>
    %28 = tpu.matmul %26, %27, %cst_18 {dimension_numbers = #tpu.dot_dimension_numbers<[1], [0], [0], [1], [0, 0, 1, 1], [], []>} : vector<64x128xbf16>, vector<128x128xbf16>, vector<64x128xf32> -> vector<64x128xf32>
    %c0_19 = arith.constant 0 : index
    %c0_20 = arith.constant 0 : index
    %29 = vector.load %arg8[%c0_19, %c0_20] : memref<1x128xf32, #tpu.memory_space<vmem>>, vector<1x128xf32>
    %30 = vector.broadcast %29 : vector<1x128xf32> to vector<64x128xf32>
    %31 = arith.addf %28, %30 : vector<64x128xf32>
    %c0_21 = arith.constant 0 : index
    %c0_22 = arith.constant 0 : index
    %c0_23 = arith.constant 0 : index
    %32 = vector.load %arg9[%c0_21, %c0_22, %c0_23] : memref<1x64x128xbf16, #tpu.memory_space<vmem>>, vector<1x64x128xbf16>
    %33 = vector.shape_cast %32 : vector<1x64x128xbf16> to vector<64x128xbf16>
    %34 = arith.extf %33 : vector<64x128xbf16> to vector<64x128xf32>
    %35 = arith.addf %31, %34 : vector<64x128xf32>
    %36 = arith.truncf %35 : vector<64x128xf32> to vector<64x128xbf16>
    %c0_24 = arith.constant 0 : index
    %c0_25 = arith.constant 0 : index
    %c0_26 = arith.constant 0 : index
    %37 = vector.load %arg10[%c0_24, %c0_25, %c0_26] : memref<1x64x128xbf16, #tpu.memory_space<vmem>>, vector<1x64x128xbf16>
    %38 = vector.shape_cast %37 : vector<1x64x128xbf16> to vector<64x128xbf16>
    %39 = vector.shape_cast %36 : vector<64x128xbf16> to vector<1x64x128xbf16>
    tpu.vector_store %arg10[%c0_24, %c0_25, %c0_26], %39 {strides = array<i32>} : memref<1x64x128xbf16, #tpu.memory_space<vmem>>, vector<1x64x128xbf16>,
    return
  }
  func.func @transform_0(%arg0: i32) -> (i32, i32, i32) {
    %c0_i32 = arith.constant 0 : i32
    %c0_i32_0 = arith.constant 0 : i32
    %c0_i32_1 = arith.constant 0 : i32
    return %arg0, %c0_i32, %c0_i32_0 : i32, i32, i32
  }
  func.func @transform_1(%arg0: i32) -> (i32, i32, i32) {
    %c0_i32 = arith.constant 0 : i32
    %c0_i32_0 = arith.constant 0 : i32
    %c0_i32_1 = arith.constant 0 : i32
    return %arg0, %c0_i32, %c0_i32_0 : i32, i32, i32
  }
  func.func @transform_2(%arg0: i32) -> (i32, i32) {
    %c0_i32 = arith.constant 0 : i32
    %c0_i32_0 = arith.constant 0 : i32
    %c0_i32_1 = arith.constant 0 : i32
    return %c0_i32, %c0_i32_0 : i32, i32
  }
  func.func @transform_3(%arg0: i32) -> (i32, i32) {
    %c0_i32 = arith.constant 0 : i32
    %c0_i32_0 = arith.constant 0 : i32
    %c0_i32_1 = arith.constant 0 : i32
    return %c0_i32, %c0_i32_0 : i32, i32
  }
  func.func @transform_4(%arg0: i32) -> (i32, i32) {
    %c0_i32 = arith.constant 0 : i32
    %c0_i32_0 = arith.constant 0 : i32
    %c0_i32_1 = arith.constant 0 : i32
    return %c0_i32, %c0_i32_0 : i32, i32
  }
  func.func @transform_5(%arg0: i32) -> (i32, i32) {
    %c0_i32 = arith.constant 0 : i32
    %c0_i32_0 = arith.constant 0 : i32
    %c0_i32_1 = arith.constant 0 : i32
    return %c0_i32, %c0_i32_0 : i32, i32
  }
  func.func @transform_6(%arg0: i32) -> (i32, i32) {
    %c0_i32 = arith.constant 0 : i32
    %c0_i32_0 = arith.constant 0 : i32
    %c0_i32_1 = arith.constant 0 : i32
    return %c0_i32, %c0_i32_0 : i32, i32
  }
  func.func @transform_7(%arg0: i32) -> (i32, i32) {
    %c0_i32 = arith.constant 0 : i32
    %c0_i32_0 = arith.constant 0 : i32
    %c0_i32_1 = arith.constant 0 : i32
    return %c0_i32, %c0_i32_0 : i32, i32
  }
  func.func @transform_8(%arg0: i32) -> (i32, i32, i32) {
    %c0_i32 = arith.constant 0 : i32
    %c0_i32_0 = arith.constant 0 : i32
    %c0_i32_1 = arith.constant 0 : i32
    return %arg0, %c0_i32, %c0_i32_0 : i32, i32, i32
  }
  func.func @transform_9(%arg0: i32) -> (i32, i32, i32) {
    %c0_i32 = arith.constant 0 : i32
    %c0_i32_0 = arith.constant 0 : i32
    %c0_i32_1 = arith.constant 0 : i32
    return %arg0, %c0_i32, %c0_i32_0 : i32, i32, i32
  }
}

module attributes {stable_mosaic.version = 11 : i64} {
  func.func @_mbconv_front_s2_kernel(%arg0: i32, %arg1: memref<1x16x4x128xbf16, #tpu.memory_space<vmem>>, %arg2: memref<128x128xbf16, #tpu.memory_space<vmem>>, %arg3: memref<1x128xf32, #tpu.memory_space<vmem>>, %arg4: memref<9x128xf32, #tpu.memory_space<vmem>>, %arg5: memref<1x128xf32, #tpu.memory_space<vmem>>, %arg6: memref<1x4x4x128xbf16, #tpu.memory_space<vmem>>, %arg7: memref<1x1x128xf32, #tpu.memory_space<vmem>>) attributes {dimension_semantics = [#tpu.dimension_semantics<parallel>], iteration_bounds = array<i64: 2>, scalar_prefetch = 0 : i64, scratch_operands = 0 : i64, tpu.core_type = #tpu.core_type<tc>, window_params = [{transform_indices = @transform_0, window_bounds = array<i64: 1, 16, 4, 128>}, {pipeline_mode = #tpu.pipeline_mode<synchronous>, transform_indices = @transform_1, window_bounds = array<i64: 128, 128>}, {pipeline_mode = #tpu.pipeline_mode<synchronous>, transform_indices = @transform_2, window_bounds = array<i64: 1, 128>}, {pipeline_mode = #tpu.pipeline_mode<synchronous>, transform_indices = @transform_3, window_bounds = array<i64: 9, 128>}, {pipeline_mode = #tpu.pipeline_mode<synchronous>, transform_indices = @transform_4, window_bounds = array<i64: 1, 128>}, {transform_indices = @transform_5, window_bounds = array<i64: 1, 4, 4, 128>}, {transform_indices = @transform_6, window_bounds = array<i64: 1, 1, 128>}]} {
    %c0 = arith.constant 0 : index
    %c0_0 = arith.constant 0 : index
    %c0_1 = arith.constant 0 : index
    %c0_2 = arith.constant 0 : index
    %0 = vector.load %arg1[%c0, %c0_0, %c0_1, %c0_2] : memref<1x16x4x128xbf16, #tpu.memory_space<vmem>>, vector<1x16x4x128xbf16>
    %1 = vector.shape_cast %0 : vector<1x16x4x128xbf16> to vector<16x4x128xbf16>
    %2 = vector.shape_cast %1 : vector<16x4x128xbf16> to vector<64x128xbf16>
    %c0_3 = arith.constant 0 : index
    %c0_4 = arith.constant 0 : index
    %3 = vector.load %arg2[%c0_3, %c0_4] : memref<128x128xbf16, #tpu.memory_space<vmem>>, vector<128x128xbf16>
    %cst = arith.constant dense<0.000000e+00> : vector<64x128xf32>
    %4 = tpu.matmul %2, %3, %cst {dimension_numbers = #tpu.dot_dimension_numbers<[1], [0], [0], [1], [0, 0, 1, 1], [], []>} : vector<64x128xbf16>, vector<128x128xbf16>, vector<64x128xf32> -> vector<64x128xf32>
    %c0_5 = arith.constant 0 : index
    %c0_6 = arith.constant 0 : index
    %5 = vector.load %arg3[%c0_5, %c0_6] : memref<1x128xf32, #tpu.memory_space<vmem>>, vector<1x128xf32>
    %6 = vector.broadcast %5 : vector<1x128xf32> to vector<64x128xf32>
    %7 = arith.addf %4, %6 : vector<64x128xf32>
    %8 = arith.negf %7 : vector<64x128xf32>
    %9 = math.exp %8 : vector<64x128xf32>
    %cst_7 = arith.constant 1.000000e+00 : f32
    %10 = vector.broadcast %cst_7 : f32 to vector<64x128xf32>
    %11 = arith.addf %10, %9 : vector<64x128xf32>
    %12 = arith.divf %10, %11 : vector<64x128xf32>
    %13 = arith.mulf %7, %12 : vector<64x128xf32>
    %14 = vector.shape_cast %13 : vector<64x128xf32> to vector<4x4x4x128xf32>
    %15 = vector.extract_strided_slice %14 {offsets = [0, 0, 0, 0], sizes = [1, 4, 4, 128], strides = [1, 1, 1, 1]} : vector<4x4x4x128xf32> to vector<1x4x4x128xf32>
    %16 = vector.shape_cast %15 : vector<1x4x4x128xf32> to vector<4x4x128xf32>
    %17 = vector.extract_strided_slice %14 {offsets = [1, 0, 0, 0], sizes = [1, 4, 4, 128], strides = [1, 1, 1, 1]} : vector<4x4x4x128xf32> to vector<1x4x4x128xf32>
    %18 = vector.shape_cast %17 : vector<1x4x4x128xf32> to vector<4x4x128xf32>
    %19 = vector.extract_strided_slice %14 {offsets = [2, 0, 0, 0], sizes = [1, 4, 4, 128], strides = [1, 1, 1, 1]} : vector<4x4x4x128xf32> to vector<1x4x4x128xf32>
    %20 = vector.shape_cast %19 : vector<1x4x4x128xf32> to vector<4x4x128xf32>
    %21 = vector.extract_strided_slice %14 {offsets = [3, 0, 0, 0], sizes = [1, 4, 4, 128], strides = [1, 1, 1, 1]} : vector<4x4x4x128xf32> to vector<1x4x4x128xf32>
    %22 = vector.shape_cast %21 : vector<1x4x4x128xf32> to vector<4x4x128xf32>
    %23 = tpu.iota {dimensions = array<i32: 1>} : vector<1x4x128xi32>
    %c1_i32 = arith.constant 1 : i32
    %24 = vector.broadcast %c1_i32 : i32 to vector<1x4x128xi32>
    %25 = arith.cmpi sge, %23, %24 : vector<1x4x128xi32>
    %26 = arith.extui %25 : vector<1x4x128xi1> to vector<1x4x128xi32>
    %27 = arith.sitofp %26 : vector<1x4x128xi32> to vector<1x4x128xf32>
    %c0_8 = arith.constant 0 : index
    %c0_9 = arith.constant 0 : index
    %28 = vector.load %arg4[%c0_8, %c0_9] : memref<9x128xf32, #tpu.memory_space<vmem>>, vector<9x128xf32>
    %cst_10 = arith.constant 0.000000e+00 : f32
    %29 = vector.broadcast %cst_10 : f32 to vector<1x4x128xf32>
    %c1_i32_11 = arith.constant 1 : i32
    %30 = tpu.dynamic_rotate %18 by %c1_i32_11 dim 1 : vector<4x4x128xf32>, i32 -> vector<4x4x128xf32>
    %31 = vector.broadcast %27 : vector<1x4x128xf32> to vector<4x4x128xf32>
    %32 = arith.mulf %30, %31 : vector<4x4x128xf32>
    %c1_i32_12 = arith.constant 1 : i32
    %33 = tpu.dynamic_rotate %22 by %c1_i32_12 dim 1 : vector<4x4x128xf32>, i32 -> vector<4x4x128xf32>
    %34 = vector.broadcast %27 : vector<1x4x128xf32> to vector<4x4x128xf32>
    %35 = arith.mulf %33, %34 : vector<4x4x128xf32>
    %36 = vector.extract_strided_slice %28 {offsets = [4, 0], sizes = [1, 128], strides = [1, 1]} : vector<9x128xf32> to vector<1x128xf32>
    %37 = vector.shape_cast %36 : vector<1x128xf32> to vector<1x1x128xf32>
    %38 = vector.broadcast %37 : vector<1x1x128xf32> to vector<4x4x128xf32>
    %39 = arith.mulf %16, %38 : vector<4x4x128xf32>
    %40 = vector.extract_strided_slice %28 {offsets = [3, 0], sizes = [1, 128], strides = [1, 1]} : vector<9x128xf32> to vector<1x128xf32>
    %41 = vector.shape_cast %40 : vector<1x128xf32> to vector<1x1x128xf32>
    %42 = vector.broadcast %41 : vector<1x1x128xf32> to vector<4x4x128xf32>
    %43 = arith.mulf %32, %42 : vector<4x4x128xf32>
    %44 = arith.addf %39, %43 : vector<4x4x128xf32>
    %45 = vector.extract_strided_slice %28 {offsets = [5, 0], sizes = [1, 128], strides = [1, 1]} : vector<9x128xf32> to vector<1x128xf32>
    %46 = vector.shape_cast %45 : vector<1x128xf32> to vector<1x1x128xf32>
    %47 = vector.broadcast %46 : vector<1x1x128xf32> to vector<4x4x128xf32>
    %48 = arith.mulf %18, %47 : vector<4x4x128xf32>
    %49 = arith.addf %44, %48 : vector<4x4x128xf32>
    %50 = vector.extract_strided_slice %20 {offsets = [0, 0, 0], sizes = [3, 4, 128], strides = [1, 1, 1]} : vector<4x4x128xf32> to vector<3x4x128xf32>
    %51 = tpu.concatenate %29, %50 in 0 : vector<1x4x128xf32>, vector<3x4x128xf32> -> vector<4x4x128xf32>
    %52 = vector.extract_strided_slice %28 {offsets = [1, 0], sizes = [1, 128], strides = [1, 1]} : vector<9x128xf32> to vector<1x128xf32>
    %53 = vector.shape_cast %52 : vector<1x128xf32> to vector<1x1x128xf32>
    %54 = vector.broadcast %53 : vector<1x1x128xf32> to vector<4x4x128xf32>
    %55 = arith.mulf %51, %54 : vector<4x4x128xf32>
    %56 = arith.addf %49, %55 : vector<4x4x128xf32>
    %57 = vector.extract_strided_slice %28 {offsets = [7, 0], sizes = [1, 128], strides = [1, 1]} : vector<9x128xf32> to vector<1x128xf32>
    %58 = vector.shape_cast %57 : vector<1x128xf32> to vector<1x1x128xf32>
    %59 = vector.broadcast %58 : vector<1x1x128xf32> to vector<4x4x128xf32>
    %60 = arith.mulf %20, %59 : vector<4x4x128xf32>
    %61 = arith.addf %56, %60 : vector<4x4x128xf32>
    %62 = vector.extract_strided_slice %35 {offsets = [0, 0, 0], sizes = [3, 4, 128], strides = [1, 1, 1]} : vector<4x4x128xf32> to vector<3x4x128xf32>
    %63 = tpu.concatenate %29, %62 in 0 : vector<1x4x128xf32>, vector<3x4x128xf32> -> vector<4x4x128xf32>
    %64 = vector.extract_strided_slice %28 {offsets = [0, 0], sizes = [1, 128], strides = [1, 1]} : vector<9x128xf32> to vector<1x128xf32>
    %65 = vector.shape_cast %64 : vector<1x128xf32> to vector<1x1x128xf32>
    %66 = vector.broadcast %65 : vector<1x1x128xf32> to vector<4x4x128xf32>
    %67 = arith.mulf %63, %66 : vector<4x4x128xf32>
    %68 = arith.addf %61, %67 : vector<4x4x128xf32>
    %69 = vector.extract_strided_slice %22 {offsets = [0, 0, 0], sizes = [3, 4, 128], strides = [1, 1, 1]} : vector<4x4x128xf32> to vector<3x4x128xf32>
    %70 = tpu.concatenate %29, %69 in 0 : vector<1x4x128xf32>, vector<3x4x128xf32> -> vector<4x4x128xf32>
    %71 = vector.extract_strided_slice %28 {offsets = [2, 0], sizes = [1, 128], strides = [1, 1]} : vector<9x128xf32> to vector<1x128xf32>
    %72 = vector.shape_cast %71 : vector<1x128xf32> to vector<1x1x128xf32>
    %73 = vector.broadcast %72 : vector<1x1x128xf32> to vector<4x4x128xf32>
    %74 = arith.mulf %70, %73 : vector<4x4x128xf32>
    %75 = arith.addf %68, %74 : vector<4x4x128xf32>
    %76 = vector.extract_strided_slice %28 {offsets = [6, 0], sizes = [1, 128], strides = [1, 1]} : vector<9x128xf32> to vector<1x128xf32>
    %77 = vector.shape_cast %76 : vector<1x128xf32> to vector<1x1x128xf32>
    %78 = vector.broadcast %77 : vector<1x1x128xf32> to vector<4x4x128xf32>
    %79 = arith.mulf %35, %78 : vector<4x4x128xf32>
    %80 = arith.addf %75, %79 : vector<4x4x128xf32>
    %81 = vector.extract_strided_slice %28 {offsets = [8, 0], sizes = [1, 128], strides = [1, 1]} : vector<9x128xf32> to vector<1x128xf32>
    %82 = vector.shape_cast %81 : vector<1x128xf32> to vector<1x1x128xf32>
    %83 = vector.broadcast %82 : vector<1x1x128xf32> to vector<4x4x128xf32>
    %84 = arith.mulf %22, %83 : vector<4x4x128xf32>
    %85 = arith.addf %80, %84 : vector<4x4x128xf32>
    %c0_13 = arith.constant 0 : index
    %c0_14 = arith.constant 0 : index
    %86 = vector.load %arg5[%c0_13, %c0_14] : memref<1x128xf32, #tpu.memory_space<vmem>>, vector<1x128xf32>
    %87 = vector.shape_cast %86 : vector<1x128xf32> to vector<1x1x128xf32>
    %88 = vector.broadcast %87 : vector<1x1x128xf32> to vector<4x4x128xf32>
    %89 = arith.addf %85, %88 : vector<4x4x128xf32>
    %90 = arith.negf %89 : vector<4x4x128xf32>
    %91 = math.exp %90 : vector<4x4x128xf32>
    %cst_15 = arith.constant 1.000000e+00 : f32
    %92 = vector.broadcast %cst_15 : f32 to vector<4x4x128xf32>
    %93 = arith.addf %92, %91 : vector<4x4x128xf32>
    %94 = arith.divf %92, %93 : vector<4x4x128xf32>
    %95 = arith.mulf %89, %94 : vector<4x4x128xf32>
    %96 = arith.truncf %95 : vector<4x4x128xf32> to vector<4x4x128xbf16>
    %c0_16 = arith.constant 0 : index
    %c0_17 = arith.constant 0 : index
    %c0_18 = arith.constant 0 : index
    %c0_19 = arith.constant 0 : index
    %97 = vector.load %arg6[%c0_16, %c0_17, %c0_18, %c0_19] : memref<1x4x4x128xbf16, #tpu.memory_space<vmem>>, vector<1x4x4x128xbf16>
    %98 = vector.shape_cast %97 : vector<1x4x4x128xbf16> to vector<4x4x128xbf16>
    %99 = vector.shape_cast %96 : vector<4x4x128xbf16> to vector<1x4x4x128xbf16>
    tpu.vector_store %arg6[%c0_16, %c0_17, %c0_18, %c0_19], %99 {strides = array<i32>} : memref<1x4x4x128xbf16, #tpu.memory_space<vmem>>, vector<1x4x4x128xbf16>,
    %100 = vector.shape_cast %95 : vector<4x4x128xf32> to vector<16x128xf32>
    %cst_20 = arith.constant dense<0.000000e+00> : vector<128xf32>
    %101 = vector.multi_reduction <add>, %100, %cst_20 [0] : vector<16x128xf32> to vector<128xf32>
    %102 = vector.shape_cast %101 : vector<128xf32> to vector<1x128xf32>
    %cst_21 = arith.constant 6.250000e-02 : f32
    %103 = vector.broadcast %cst_21 : f32 to vector<1x128xf32>
    %104 = arith.mulf %102, %103 : vector<1x128xf32>
    %c0_22 = arith.constant 0 : index
    %c0_23 = arith.constant 0 : index
    %c0_24 = arith.constant 0 : index
    %105 = vector.load %arg7[%c0_22, %c0_23, %c0_24] : memref<1x1x128xf32, #tpu.memory_space<vmem>>, vector<1x1x128xf32>
    %106 = vector.shape_cast %105 : vector<1x1x128xf32> to vector<1x128xf32>
    %107 = vector.shape_cast %104 : vector<1x128xf32> to vector<1x1x128xf32>
    tpu.vector_store %arg7[%c0_22, %c0_23, %c0_24], %107 {strides = array<i32>} : memref<1x1x128xf32, #tpu.memory_space<vmem>>, vector<1x1x128xf32>,
    return
  }
  func.func @transform_0(%arg0: i32) -> (i32, i32, i32, i32) {
    %c0_i32 = arith.constant 0 : i32
    %c0_i32_0 = arith.constant 0 : i32
    %c0_i32_1 = arith.constant 0 : i32
    %c0_i32_2 = arith.constant 0 : i32
    return %arg0, %c0_i32, %c0_i32_0, %c0_i32_1 : i32, i32, i32, i32
  }
  func.func @transform_1(%arg0: i32) -> (i32, i32) {
    %c0_i32 = arith.constant 0 : i32
    %c0_i32_0 = arith.constant 0 : i32
    %c0_i32_1 = arith.constant 0 : i32
    return %c0_i32, %c0_i32_0 : i32, i32
  }
  func.func @transform_2(%arg0: i32) -> (i32, i32) {
    %c0_i32 = arith.constant 0 : i32
    %c0_i32_0 = arith.constant 0 : i32
    %c0_i32_1 = arith.constant 0 : i32
    return %c0_i32, %c0_i32_0 : i32, i32
  }
  func.func @transform_3(%arg0: i32) -> (i32, i32) {
    %c0_i32 = arith.constant 0 : i32
    %c0_i32_0 = arith.constant 0 : i32
    %c0_i32_1 = arith.constant 0 : i32
    return %c0_i32, %c0_i32_0 : i32, i32
  }
  func.func @transform_4(%arg0: i32) -> (i32, i32) {
    %c0_i32 = arith.constant 0 : i32
    %c0_i32_0 = arith.constant 0 : i32
    %c0_i32_1 = arith.constant 0 : i32
    return %c0_i32, %c0_i32_0 : i32, i32
  }
  func.func @transform_5(%arg0: i32) -> (i32, i32, i32, i32) {
    %c0_i32 = arith.constant 0 : i32
    %c0_i32_0 = arith.constant 0 : i32
    %c0_i32_1 = arith.constant 0 : i32
    %c0_i32_2 = arith.constant 0 : i32
    return %arg0, %c0_i32, %c0_i32_0, %c0_i32_1 : i32, i32, i32, i32
  }
  func.func @transform_6(%arg0: i32) -> (i32, i32, i32) {
    %c0_i32 = arith.constant 0 : i32
    %c0_i32_0 = arith.constant 0 : i32
    %c0_i32_1 = arith.constant 0 : i32
    return %arg0, %c0_i32, %c0_i32_0 : i32, i32, i32
  }
}

module attributes {stable_mosaic.version = 11 : i64} {
  func.func @_se_project_kernel(%arg0: i32, %arg1: memref<1x16x128xbf16, #tpu.memory_space<vmem>>, %arg2: memref<1x1x128xf32, #tpu.memory_space<vmem>>, %arg3: memref<128x8xf32, #tpu.memory_space<vmem>>, %arg4: memref<1x8xf32, #tpu.memory_space<vmem>>, %arg5: memref<8x128xf32, #tpu.memory_space<vmem>>, %arg6: memref<1x128xf32, #tpu.memory_space<vmem>>, %arg7: memref<128x128xbf16, #tpu.memory_space<vmem>>, %arg8: memref<1x128xf32, #tpu.memory_space<vmem>>, %arg9: memref<1x16x128xbf16, #tpu.memory_space<vmem>>) attributes {dimension_semantics = [#tpu.dimension_semantics<parallel>], iteration_bounds = array<i64: 2>, scalar_prefetch = 0 : i64, scratch_operands = 0 : i64, tpu.core_type = #tpu.core_type<tc>, window_params = [{transform_indices = @transform_0, window_bounds = array<i64: 1, 16, 128>}, {transform_indices = @transform_1, window_bounds = array<i64: 1, 1, 128>}, {pipeline_mode = #tpu.pipeline_mode<synchronous>, transform_indices = @transform_2, window_bounds = array<i64: 128, 8>}, {pipeline_mode = #tpu.pipeline_mode<synchronous>, transform_indices = @transform_3, window_bounds = array<i64: 1, 8>}, {pipeline_mode = #tpu.pipeline_mode<synchronous>, transform_indices = @transform_4, window_bounds = array<i64: 8, 128>}, {pipeline_mode = #tpu.pipeline_mode<synchronous>, transform_indices = @transform_5, window_bounds = array<i64: 1, 128>}, {pipeline_mode = #tpu.pipeline_mode<synchronous>, transform_indices = @transform_6, window_bounds = array<i64: 128, 128>}, {pipeline_mode = #tpu.pipeline_mode<synchronous>, transform_indices = @transform_7, window_bounds = array<i64: 1, 128>}, {transform_indices = @transform_8, window_bounds = array<i64: 1, 16, 128>}]} {
    %c0 = arith.constant 0 : index
    %c0_0 = arith.constant 0 : index
    %c0_1 = arith.constant 0 : index
    %0 = vector.load %arg1[%c0, %c0_0, %c0_1] : memref<1x16x128xbf16, #tpu.memory_space<vmem>>, vector<1x16x128xbf16>
    %1 = vector.shape_cast %0 : vector<1x16x128xbf16> to vector<16x128xbf16>
    %2 = arith.extf %1 : vector<16x128xbf16> to vector<16x128xf32>
    %c0_2 = arith.constant 0 : index
    %c0_3 = arith.constant 0 : index
    %c0_4 = arith.constant 0 : index
    %3 = vector.load %arg2[%c0_2, %c0_3, %c0_4] : memref<1x1x128xf32, #tpu.memory_space<vmem>>, vector<1x1x128xf32>
    %4 = vector.shape_cast %3 : vector<1x1x128xf32> to vector<1x128xf32>
    %c0_5 = arith.constant 0 : index
    %c0_6 = arith.constant 0 : index
    %5 = vector.load %arg3[%c0_5, %c0_6] : memref<128x8xf32, #tpu.memory_space<vmem>>, vector<128x8xf32>
    %cst = arith.constant dense<0.000000e+00> : vector<1x8xf32>
    %6 = tpu.matmul %4, %5, %cst {dimension_numbers = #tpu.dot_dimension_numbers<[1], [0], [0], [1], [0, 0, 1, 1], [], []>} : vector<1x128xf32>, vector<128x8xf32>, vector<1x8xf32> -> vector<1x8xf32>
    %c0_7 = arith.constant 0 : index
    %c0_8 = arith.constant 0 : index
    %7 = vector.load %arg4[%c0_7, %c0_8] : memref<1x8xf32, #tpu.memory_space<vmem>>, vector<1x8xf32>
    %8 = arith.addf %6, %7 : vector<1x8xf32>
    %9 = arith.negf %8 : vector<1x8xf32>
    %10 = math.exp %9 : vector<1x8xf32>
    %cst_9 = arith.constant 1.000000e+00 : f32
    %11 = vector.broadcast %cst_9 : f32 to vector<1x8xf32>
    %12 = arith.addf %11, %10 : vector<1x8xf32>
    %13 = arith.divf %11, %12 : vector<1x8xf32>
    %14 = arith.mulf %8, %13 : vector<1x8xf32>
    %c0_10 = arith.constant 0 : index
    %c0_11 = arith.constant 0 : index
    %15 = vector.load %arg5[%c0_10, %c0_11] : memref<8x128xf32, #tpu.memory_space<vmem>>, vector<8x128xf32>
    %cst_12 = arith.constant dense<0.000000e+00> : vector<1x128xf32>
    %16 = tpu.matmul %14, %15, %cst_12 {dimension_numbers = #tpu.dot_dimension_numbers<[1], [0], [0], [1], [0, 0, 1, 1], [], []>} : vector<1x8xf32>, vector<8x128xf32>, vector<1x128xf32> -> vector<1x128xf32>
    %c0_13 = arith.constant 0 : index
    %c0_14 = arith.constant 0 : index
    %17 = vector.load %arg6[%c0_13, %c0_14] : memref<1x128xf32, #tpu.memory_space<vmem>>, vector<1x128xf32>
    %18 = arith.addf %16, %17 : vector<1x128xf32>
    %19 = arith.negf %18 : vector<1x128xf32>
    %20 = math.exp %19 : vector<1x128xf32>
    %cst_15 = arith.constant 1.000000e+00 : f32
    %21 = vector.broadcast %cst_15 : f32 to vector<1x128xf32>
    %22 = arith.addf %21, %20 : vector<1x128xf32>
    %23 = arith.divf %21, %22 : vector<1x128xf32>
    %24 = vector.broadcast %23 : vector<1x128xf32> to vector<16x128xf32>
    %25 = arith.mulf %2, %24 : vector<16x128xf32>
    %26 = arith.truncf %25 : vector<16x128xf32> to vector<16x128xbf16>
    %c0_16 = arith.constant 0 : index
    %c0_17 = arith.constant 0 : index
    %27 = vector.load %arg7[%c0_16, %c0_17] : memref<128x128xbf16, #tpu.memory_space<vmem>>, vector<128x128xbf16>
    %cst_18 = arith.constant dense<0.000000e+00> : vector<16x128xf32>
    %28 = tpu.matmul %26, %27, %cst_18 {dimension_numbers = #tpu.dot_dimension_numbers<[1], [0], [0], [1], [0, 0, 1, 1], [], []>} : vector<16x128xbf16>, vector<128x128xbf16>, vector<16x128xf32> -> vector<16x128xf32>
    %c0_19 = arith.constant 0 : index
    %c0_20 = arith.constant 0 : index
    %29 = vector.load %arg8[%c0_19, %c0_20] : memref<1x128xf32, #tpu.memory_space<vmem>>, vector<1x128xf32>
    %30 = vector.broadcast %29 : vector<1x128xf32> to vector<16x128xf32>
    %31 = arith.addf %28, %30 : vector<16x128xf32>
    %32 = arith.truncf %31 : vector<16x128xf32> to vector<16x128xbf16>
    %c0_21 = arith.constant 0 : index
    %c0_22 = arith.constant 0 : index
    %c0_23 = arith.constant 0 : index
    %33 = vector.load %arg9[%c0_21, %c0_22, %c0_23] : memref<1x16x128xbf16, #tpu.memory_space<vmem>>, vector<1x16x128xbf16>
    %34 = vector.shape_cast %33 : vector<1x16x128xbf16> to vector<16x128xbf16>
    %35 = vector.shape_cast %32 : vector<16x128xbf16> to vector<1x16x128xbf16>
    tpu.vector_store %arg9[%c0_21, %c0_22, %c0_23], %35 {strides = array<i32>} : memref<1x16x128xbf16, #tpu.memory_space<vmem>>, vector<1x16x128xbf16>,
    return
  }
  func.func @transform_0(%arg0: i32) -> (i32, i32, i32) {
    %c0_i32 = arith.constant 0 : i32
    %c0_i32_0 = arith.constant 0 : i32
    %c0_i32_1 = arith.constant 0 : i32
    return %arg0, %c0_i32, %c0_i32_0 : i32, i32, i32
  }
  func.func @transform_1(%arg0: i32) -> (i32, i32, i32) {
    %c0_i32 = arith.constant 0 : i32
    %c0_i32_0 = arith.constant 0 : i32
    %c0_i32_1 = arith.constant 0 : i32
    return %arg0, %c0_i32, %c0_i32_0 : i32, i32, i32
  }
  func.func @transform_2(%arg0: i32) -> (i32, i32) {
    %c0_i32 = arith.constant 0 : i32
    %c0_i32_0 = arith.constant 0 : i32
    %c0_i32_1 = arith.constant 0 : i32
    return %c0_i32, %c0_i32_0 : i32, i32
  }
  func.func @transform_3(%arg0: i32) -> (i32, i32) {
    %c0_i32 = arith.constant 0 : i32
    %c0_i32_0 = arith.constant 0 : i32
    %c0_i32_1 = arith.constant 0 : i32
    return %c0_i32, %c0_i32_0 : i32, i32
  }
  func.func @transform_4(%arg0: i32) -> (i32, i32) {
    %c0_i32 = arith.constant 0 : i32
    %c0_i32_0 = arith.constant 0 : i32
    %c0_i32_1 = arith.constant 0 : i32
    return %c0_i32, %c0_i32_0 : i32, i32
  }
  func.func @transform_5(%arg0: i32) -> (i32, i32) {
    %c0_i32 = arith.constant 0 : i32
    %c0_i32_0 = arith.constant 0 : i32
    %c0_i32_1 = arith.constant 0 : i32
    return %c0_i32, %c0_i32_0 : i32, i32
  }
  func.func @transform_6(%arg0: i32) -> (i32, i32) {
    %c0_i32 = arith.constant 0 : i32
    %c0_i32_0 = arith.constant 0 : i32
    %c0_i32_1 = arith.constant 0 : i32
    return %c0_i32, %c0_i32_0 : i32, i32
  }
  func.func @transform_7(%arg0: i32) -> (i32, i32) {
    %c0_i32 = arith.constant 0 : i32
    %c0_i32_0 = arith.constant 0 : i32
    %c0_i32_1 = arith.constant 0 : i32
    return %c0_i32, %c0_i32_0 : i32, i32
  }
  func.func @transform_8(%arg0: i32) -> (i32, i32, i32) {
    %c0_i32 = arith.constant 0 : i32
    %c0_i32_0 = arith.constant 0 : i32
    %c0_i32_1 = arith.constant 0 : i32
    return %arg0, %c0_i32, %c0_i32_0 : i32, i32, i32
  }
}

module attributes {stable_mosaic.version = 11 : i64} {
  func.func @_head_kernel(%arg0: i32, %arg1: memref<1x16x128xbf16, #tpu.memory_space<vmem>>, %arg2: memref<128x256xbf16, #tpu.memory_space<vmem>>, %arg3: memref<1x256xf32, #tpu.memory_space<vmem>>, %arg4: memref<256x128xbf16, #tpu.memory_space<vmem>>, %arg5: memref<1x128xf32, #tpu.memory_space<vmem>>, %arg6: memref<1x1x128xf32, #tpu.memory_space<vmem>>) attributes {dimension_semantics = [#tpu.dimension_semantics<parallel>], iteration_bounds = array<i64: 2>, scalar_prefetch = 0 : i64, scratch_operands = 0 : i64, tpu.core_type = #tpu.core_type<tc>, window_params = [{transform_indices = @transform_0, window_bounds = array<i64: 1, 16, 128>}, {pipeline_mode = #tpu.pipeline_mode<synchronous>, transform_indices = @transform_1, window_bounds = array<i64: 128, 256>}, {pipeline_mode = #tpu.pipeline_mode<synchronous>, transform_indices = @transform_2, window_bounds = array<i64: 1, 256>}, {pipeline_mode = #tpu.pipeline_mode<synchronous>, transform_indices = @transform_3, window_bounds = array<i64: 256, 128>}, {pipeline_mode = #tpu.pipeline_mode<synchronous>, transform_indices = @transform_4, window_bounds = array<i64: 1, 128>}, {transform_indices = @transform_5, window_bounds = array<i64: 1, 1, 128>}]} {
    %c0 = arith.constant 0 : index
    %c0_0 = arith.constant 0 : index
    %c0_1 = arith.constant 0 : index
    %0 = vector.load %arg1[%c0, %c0_0, %c0_1] : memref<1x16x128xbf16, #tpu.memory_space<vmem>>, vector<1x16x128xbf16>
    %1 = vector.shape_cast %0 : vector<1x16x128xbf16> to vector<16x128xbf16>
    %c0_2 = arith.constant 0 : index
    %c0_3 = arith.constant 0 : index
    %2 = vector.load %arg2[%c0_2, %c0_3] : memref<128x256xbf16, #tpu.memory_space<vmem>>, vector<128x256xbf16>
    %cst = arith.constant dense<0.000000e+00> : vector<16x256xf32>
    %3 = tpu.matmul %1, %2, %cst {dimension_numbers = #tpu.dot_dimension_numbers<[1], [0], [0], [1], [0, 0, 1, 1], [], []>} : vector<16x128xbf16>, vector<128x256xbf16>, vector<16x256xf32> -> vector<16x256xf32>
    %c0_4 = arith.constant 0 : index
    %c0_5 = arith.constant 0 : index
    %4 = vector.load %arg3[%c0_4, %c0_5] : memref<1x256xf32, #tpu.memory_space<vmem>>, vector<1x256xf32>
    %5 = vector.broadcast %4 : vector<1x256xf32> to vector<16x256xf32>
    %6 = arith.addf %3, %5 : vector<16x256xf32>
    %7 = arith.negf %6 : vector<16x256xf32>
    %8 = math.exp %7 : vector<16x256xf32>
    %cst_6 = arith.constant 1.000000e+00 : f32
    %9 = vector.broadcast %cst_6 : f32 to vector<16x256xf32>
    %10 = arith.addf %9, %8 : vector<16x256xf32>
    %11 = arith.divf %9, %10 : vector<16x256xf32>
    %12 = arith.mulf %6, %11 : vector<16x256xf32>
    %cst_7 = arith.constant dense<0.000000e+00> : vector<256xf32>
    %13 = vector.multi_reduction <add>, %12, %cst_7 [0] : vector<16x256xf32> to vector<256xf32>
    %14 = vector.shape_cast %13 : vector<256xf32> to vector<1x256xf32>
    %cst_8 = arith.constant 6.250000e-02 : f32
    %15 = vector.broadcast %cst_8 : f32 to vector<1x256xf32>
    %16 = arith.mulf %14, %15 : vector<1x256xf32>
    %17 = arith.truncf %16 : vector<1x256xf32> to vector<1x256xbf16>
    %c0_9 = arith.constant 0 : index
    %c0_10 = arith.constant 0 : index
    %18 = vector.load %arg4[%c0_9, %c0_10] : memref<256x128xbf16, #tpu.memory_space<vmem>>, vector<256x128xbf16>
    %cst_11 = arith.constant dense<0.000000e+00> : vector<1x128xf32>
    %19 = tpu.matmul %17, %18, %cst_11 {dimension_numbers = #tpu.dot_dimension_numbers<[1], [0], [0], [1], [0, 0, 1, 1], [], []>} : vector<1x256xbf16>, vector<256x128xbf16>, vector<1x128xf32> -> vector<1x128xf32>
    %c0_12 = arith.constant 0 : index
    %c0_13 = arith.constant 0 : index
    %20 = vector.load %arg5[%c0_12, %c0_13] : memref<1x128xf32, #tpu.memory_space<vmem>>, vector<1x128xf32>
    %21 = arith.addf %19, %20 : vector<1x128xf32>
    %c0_14 = arith.constant 0 : index
    %c0_15 = arith.constant 0 : index
    %c0_16 = arith.constant 0 : index
    %22 = vector.load %arg6[%c0_14, %c0_15, %c0_16] : memref<1x1x128xf32, #tpu.memory_space<vmem>>, vector<1x1x128xf32>
    %23 = vector.shape_cast %22 : vector<1x1x128xf32> to vector<1x128xf32>
    %24 = vector.shape_cast %21 : vector<1x128xf32> to vector<1x1x128xf32>
    tpu.vector_store %arg6[%c0_14, %c0_15, %c0_16], %24 {strides = array<i32>} : memref<1x1x128xf32, #tpu.memory_space<vmem>>, vector<1x1x128xf32>,
    return
  }
  func.func @transform_0(%arg0: i32) -> (i32, i32, i32) {
    %c0_i32 = arith.constant 0 : i32
    %c0_i32_0 = arith.constant 0 : i32
    %c0_i32_1 = arith.constant 0 : i32
    return %arg0, %c0_i32, %c0_i32_0 : i32, i32, i32
  }
  func.func @transform_1(%arg0: i32) -> (i32, i32) {
    %c0_i32 = arith.constant 0 : i32
    %c0_i32_0 = arith.constant 0 : i32
    %c0_i32_1 = arith.constant 0 : i32
    return %c0_i32, %c0_i32_0 : i32, i32
  }
  func.func @transform_2(%arg0: i32) -> (i32, i32) {
    %c0_i32 = arith.constant 0 : i32
    %c0_i32_0 = arith.constant 0 : i32
    %c0_i32_1 = arith.constant 0 : i32
    return %c0_i32, %c0_i32_0 : i32, i32
  }
  func.func @transform_3(%arg0: i32) -> (i32, i32) {
    %c0_i32 = arith.constant 0 : i32
    %c0_i32_0 = arith.constant 0 : i32
    %c0_i32_1 = arith.constant 0 : i32
    return %c0_i32, %c0_i32_0 : i32, i32
  }
  func.func @transform_4(%arg0: i32) -> (i32, i32) {
    %c0_i32 = arith.constant 0 : i32
    %c0_i32_0 = arith.constant 0 : i32
    %c0_i32_1 = arith.constant 0 : i32
    return %c0_i32, %c0_i32_0 : i32, i32
  }
  func.func @transform_5(%arg0: i32) -> (i32, i32, i32) {
    %c0_i32 = arith.constant 0 : i32
    %c0_i32_0 = arith.constant 0 : i32
    %c0_i32_1 = arith.constant 0 : i32
    return %arg0, %c0_i32, %c0_i32_0 : i32, i32, i32
  }
}

</mosaic_0001>

<llo_original>
// kernel: efficientnet_b7_forward.6
$region0: #{efficientnet_b7_forward.6}
  #allocation0 [shape = 'u32[]', space=smem, size = 0x4, offset = 0x4, fixed_abs, tag = 'smem constant byte address 0x4 - core index']
  #allocation1 [shape = 'u32[72,128]{1,0:T(1,128)}', space=vmem, size = 0x9000, scoped, tag = 'internal scratch']
  #allocation2 [shape = 'f32[128,128]{1,0:T(8,128)}', space=vmem, size = 0x10000, scoped, tag = 'scratch operand']
  %s0 = inlined_call_operand.vmem [shape: bf16[128,128], index: 0, kind: input, shape index: {}]
  %s1 = inlined_call_operand.vmem [shape: bf16[128,128], index: 1, kind: input, shape index: {}]
  %s2 = inlined_call_operand.vmem [shape: f32[1,128], index: 2, kind: input, shape index: {}]
  %s3 = inlined_call_operand.vmem [shape: bf16[128,128], index: 3, kind: output, shape index: {}]
  %s4 = sld [smem:[#allocation0]]
  $region30: #{efficientnet_b7_forward.6} parent=0
    _
  %s6 = ssub.s32 1, %s4
  %s7 = scalar_select 0, %s6, %s4
  // Predicated region
  $region2: #{efficientnet_b7_forward.6} parent=0 // pred_check
    _
  $region3: #{efficientnet_b7_forward.6} parent=0 // pred_check_branch
    %9 = sbr.rel (0) target = $region5
  $region4: #{efficientnet_b7_forward.6} parent=0 // pred_region
    _
  $region5: #{efficientnet_b7_forward.6} parent=0 // pred_fallthru
    _
  // Predicated region
  $region6: #{efficientnet_b7_forward.6} parent=0 // pred_check
    _
  $region7: #{efficientnet_b7_forward.6} parent=0 // pred_check_branch
    %11 = sbr.rel (0) target = $region9
  $region8: #{efficientnet_b7_forward.6} parent=0 // pred_region
    _
  $region9: #{efficientnet_b7_forward.6} parent=0 // pred_fallthru
    _
  // Predicated region
  $region10: #{efficientnet_b7_forward.6} parent=0 // pred_check
    _
  $region11: #{efficientnet_b7_forward.6} parent=0 // pred_check_branch
    %13 = sbr.rel (0) target = $region13
  $region12: #{efficientnet_b7_forward.6} parent=0 // pred_region
    _
  $region13: #{efficientnet_b7_forward.6} parent=0 // pred_fallthru
    _
  %p14 = scmp.eq.s32.totalorder 0, 0
  // Predicated region
  $region14: #{efficientnet_b7_forward.6} parent=0 // pred_check
    %p15 = pneg %p14
  $region15: #{efficientnet_b7_forward.6} parent=0 // pred_check_branch
    %17 = sbr.rel (%p15) target = $region17
  $region16: #{efficientnet_b7_forward.6} parent=0 // pred_region
    %18 = vst [vmem:[#allocation2] sm:$0xff] 0.0
    %19 = vst [vmem:[#allocation2 + $0x8] sm:$0xff] 0.0
    %20 = vst [vmem:[#allocation2 + $0x10] sm:$0xff] 0.0
    %21 = vst [vmem:[#allocation2 + $0x18] sm:$0xff] 0.0
    %22 = vst [vmem:[#allocation2 + $0x20] sm:$0xff] 0.0
    %23 = vst [vmem:[#allocation2 + $0x28] sm:$0xff] 0.0
    %24 = vst [vmem:[#allocation2 + $0x30] sm:$0xff] 0.0
    %25 = vst [vmem:[#allocation2 + $0x38] sm:$0xff] 0.0
    %26 = vst [vmem:[#allocation2 + $0x40] sm:$0xff] 0.0
    %27 = vst [vmem:[#allocation2 + $0x48] sm:$0xff] 0.0
    %28 = vst [vmem:[#allocation2 + $0x50] sm:$0xff] 0.0
    %29 = vst [vmem:[#allocation2 + $0x58] sm:$0xff] 0.0
    %30 = vst [vmem:[#allocation2 + $0x60] sm:$0xff] 0.0
    %31 = vst [vmem:[#allocation2 + $0x68] sm:$0xff] 0.0
    %32 = vst [vmem:[#allocation2 + $0x70] sm:$0xff] 0.0
    %33 = vst [vmem:[#allocation2 + $0x78] sm:$0xff] 0.0
  $region17: #{efficientnet_b7_forward.6} parent=0 // pred_fallthru
    _
  %v34 = vld [vmem:[#allocation2] sm:$0xff]
  %v35 = vld [vmem:[#allocation2 + $0x8] sm:$0xff]
  %v36 = vld [vmem:[#allocation2 + $0x10] sm:$0xff]
  %v37 = vld [vmem:[#allocation2 + $0x18] sm:$0xff]
  %v38 = vld [vmem:[#allocation2 + $0x20] sm:$0xff]
  %v39 = vld [vmem:[#allocation2 + $0x28] sm:$0xff]
  %v40 = vld [vmem:[#allocation2 + $0x30] sm:$0xff]
  %v41 = vld [vmem:[#allocation2 + $0x38] sm:$0xff]
  %v42 = vld [vmem:[#allocation2 + $0x40] sm:$0xff]
  %v43 = vld [vmem:[#allocation2 + $0x48] sm:$0xff]
  %v44 = vld [vmem:[#allocation2 + $0x50] sm:$0xff]
  %v45 = vld [vmem:[#allocation2 + $0x58] sm:$0xff]
  %v46 = vld [vmem:[#allocation2 + $0x60] sm:$0xff]
  %v47 = vld [vmem:[#allocation2 + $0x68] sm:$0xff]
  %v48 = vld [vmem:[#allocation2 + $0x70] sm:$0xff]
  %v49 = vld [vmem:[#allocation2 + $0x78] sm:$0xff]
  %v50 = vld [vmem:[%s0] sm:$0xf]
  %v51 = vld [vmem:[%s0 + $0x4] sm:$0xf]
  %v52 = vld [vmem:[%s0 + $0x8] sm:$0xf]
  %v53 = vld [vmem:[%s0 + $0xc] sm:$0xf]
  %v54 = vld [vmem:[%s0 + $0x10] sm:$0xf]
  %v55 = vld [vmem:[%s0 + $0x14] sm:$0xf]
  %v56 = vld [vmem:[%s0 + $0x18] sm:$0xf]
  %v57 = vld [vmem:[%s0 + $0x1c] sm:$0xf]
  %v58 = vld [vmem:[%s0 + $0x20] sm:$0xf]
  %v59 = vld [vmem:[%s0 + $0x24] sm:$0xf]
  %v60 = vld [vmem:[%s0 + $0x28] sm:$0xf]
  %v61 = vld [vmem:[%s0 + $0x2c] sm:$0xf]
  %v62 = vld [vmem:[%s0 + $0x30] sm:$0xf]
  %v63 = vld [vmem:[%s0 + $0x34] sm:$0xf]
  %v64 = vld [vmem:[%s0 + $0x38] sm:$0xf]
  %v65 = vld [vmem:[%s0 + $0x3c] sm:$0xf]
  %v66 = vld [vmem:[%s1] sm:$0xf]
  %v67 = vld [vmem:[%s1 + $0x4] sm:$0xf]
  %v68 = vld [vmem:[%s1 + $0x8] sm:$0xf]
  %v69 = vld [vmem:[%s1 + $0xc] sm:$0xf]
  %v70 = vld [vmem:[%s1 + $0x10] sm:$0xf]
  %v71 = vld [vmem:[%s1 + $0x14] sm:$0xf]
  %v72 = vld [vmem:[%s1 + $0x18] sm:$0xf]
  %v73 = vld [vmem:[%s1 + $0x1c] sm:$0xf]
  %v74 = vld [vmem:[%s1 + $0x20] sm:$0xf]
  %v75 = vld [vmem:[%s1 + $0x24] sm:$0xf]
  %v76 = vld [vmem:[%s1 + $0x28] sm:$0xf]
  %v77 = vld [vmem:[%s1 + $0x2c] sm:$0xf]
  %v78 = vld [vmem:[%s1 + $0x30] sm:$0xf]
  %v79 = vld [vmem:[%s1 + $0x34] sm:$0xf]
  %v80 = vld [vmem:[%s1 + $0x38] sm:$0xf]
  %v81 = vld [vmem:[%s1 + $0x3c] sm:$0xf]
  %v98 = vunpack.c.l.b16 %v50
  %v99 = vunpack.c.l.b16 %v51
  %v100 = vunpack.c.l.b16 %v52
  %v101 = vunpack.c.l.b16 %v53
  %v102 = vunpack.c.l.b16 %v54
  %v103 = vunpack.c.l.b16 %v55
  %v104 = vunpack.c.l.b16 %v56
  %v105 = vunpack.c.l.b16 %v57
  %v106 = vunpack.c.l.b16 %v58
  %v107 = vunpack.c.l.b16 %v59
  %v108 = vunpack.c.l.b16 %v60
  %v109 = vunpack.c.l.b16 %v61
  %v110 = vunpack.c.l.b16 %v62
  %v111 = vunpack.c.l.b16 %v63
  %v112 = vunpack.c.l.b16 %v64
  %v113 = vunpack.c.l.b16 %v65
  %v114 = vpack.c.b16 %v99, %v98
  %v115 = vpack.c.b16 %v101, %v100
  %v116 = vpack.c.b16 %v103, %v102
  %v117 = vpack.c.b16 %v105, %v104
  %v118 = vpack.c.b16 %v107, %v106
  %v119 = vpack.c.b16 %v109, %v108
  %v120 = vpack.c.b16 %v111, %v110
  %v121 = vpack.c.b16 %v113, %v112
  %v146 = vunpack.c.l.b16 %v66
  %v147 = vunpack.c.l.b16 %v67
  %v148 = vunpack.c.l.b16 %v68
  %v149 = vunpack.c.l.b16 %v69
  %v150 = vunpack.c.l.b16 %v70
  %v151 = vunpack.c.l.b16 %v71
  %v152 = vunpack.c.l.b16 %v72
  %v153 = vunpack.c.l.b16 %v73
  %v154 = vunpack.c.l.b16 %v74
  %v155 = vunpack.c.l.b16 %v75
  %v156 = vunpack.c.l.b16 %v76
  %v157 = vunpack.c.l.b16 %v77
  %v158 = vunpack.c.l.b16 %v78
  %v159 = vunpack.c.l.b16 %v79
  %v160 = vunpack.c.l.b16 %v80
  %v161 = vunpack.c.l.b16 %v81
  %v162 = vpack.c.b16 %v147, %v146
  %v163 = vpack.c.b16 %v149, %v148
  %v164 = vpack.c.b16 %v151, %v150
  %v165 = vpack.c.b16 %v153, %v152
  %v166 = vpack.c.b16 %v155, %v154
  %v167 = vpack.c.b16 %v157, %v156
  %v168 = vpack.c.b16 %v159, %v158
  %v169 = vpack.c.b16 %v161, %v160
  %178 = vmatpush.bf16.msra.mxu0 %v169
  %179 = vmatpush.bf16.msra.mxu0 %v168
  %180 = vmatpush.bf16.msra.mxu0 %v167
  %181 = vmatpush.bf16.msra.mxu0 %v166
  %182 = vmatpush.bf16.msra.mxu0 %v165
  %183 = vmatpush.bf16.msra.mxu0 %v164
  %184 = vmatpush.bf16.msra.mxu0 %v163
  %185 = vmatpush.bf16.msra.mxu0 %v162
  %186 = vmatmul.bf16.gmra.mxu0 %v114
  %v187 = vpop.f32.mrf.mxu0
  %v188 = vadd.f32 0.0, %v187
  %v189 = vpop.f32.mrf.mxu0
  %v190 = vadd.f32 0.0, %v189
  %191 = vmatmul.bf16.gmra.mxu0 %v115
  %v192 = vpop.f32.mrf.mxu0
  %v193 = vadd.f32 0.0, %v192
  %v194 = vpop.f32.mrf.mxu0
  %v195 = vadd.f32 0.0, %v194
  %196 = vmatmul.bf16.gmra.mxu0 %v116
  %v197 = vpop.f32.mrf.mxu0
  %v198 = vadd.f32 0.0, %v197
  %v199 = vpop.f32.mrf.mxu0
  %v200 = vadd.f32 0.0, %v199
  %201 = vmatmul.bf16.gmra.mxu0 %v117
  %v202 = vpop.f32.mrf.mxu0
  %v203 = vadd.f32 0.0, %v202
  %v204 = vpop.f32.mrf.mxu0
  %v205 = vadd.f32 0.0, %v204
  %206 = vmatmul.bf16.gmra.mxu0 %v118
  %v207 = vpop.f32.mrf.mxu0
  %v208 = vadd.f32 0.0, %v207
  %v209 = vpop.f32.mrf.mxu0
  %v210 = vadd.f32 0.0, %v209
  %211 = vmatmul.bf16.gmra.mxu0 %v119
  %v212 = vpop.f32.mrf.mxu0
  %v213 = vadd.f32 0.0, %v212
  %v214 = vpop.f32.mrf.mxu0
  %v215 = vadd.f32 0.0, %v214
  %216 = vmatmul.bf16.gmra.mxu0 %v120
  %v217 = vpop.f32.mrf.mxu0
  %v218 = vadd.f32 0.0, %v217
  %v219 = vpop.f32.mrf.mxu0
  %v220 = vadd.f32 0.0, %v219
  %221 = vmatmul.bf16.gmra.mxu0 %v121
  %v222 = vpop.f32.mrf.mxu0
  %v223 = vadd.f32 0.0, %v222
  %v224 = vpop.f32.mrf.mxu0
  %v225 = vadd.f32 0.0, %v224
  %226 = vdwg.mxu0
  %v227 = vadd.f32 %v34, %v188
  %v228 = vadd.f32 %v35, %v190
  %v229 = vadd.f32 %v36, %v193
  %v230 = vadd.f32 %v37, %v195
  %v231 = vadd.f32 %v38, %v198
  %v232 = vadd.f32 %v39, %v200
  %v233 = vadd.f32 %v40, %v203
  %v234 = vadd.f32 %v41, %v205
  %v235 = vadd.f32 %v42, %v208
  %v236 = vadd.f32 %v43, %v210
  %v237 = vadd.f32 %v44, %v213
  %v238 = vadd.f32 %v45, %v215
  %v239 = vadd.f32 %v46, %v218
  %v240 = vadd.f32 %v47, %v220
  %v241 = vadd.f32 %v48, %v223
  %v242 = vadd.f32 %v49, %v225
  %243 = vst [vmem:[#allocation2] sm:$0xff] %v227
  %244 = vst [vmem:[#allocation2 + $0x8] sm:$0xff] %v228
  %245 = vst [vmem:[#allocation2 + $0x10] sm:$0xff] %v229
  %246 = vst [vmem:[#allocation2 + $0x18] sm:$0xff] %v230
  %247 = vst [vmem:[#allocation2 + $0x20] sm:$0xff] %v231
  %248 = vst [vmem:[#allocation2 + $0x28] sm:$0xff] %v232
  %249 = vst [vmem:[#allocation2 + $0x30] sm:$0xff] %v233
  %250 = vst [vmem:[#allocation2 + $0x38] sm:$0xff] %v234
  %251 = vst [vmem:[#allocation2 + $0x40] sm:$0xff] %v235
  %252 = vst [vmem:[#allocation2 + $0x48] sm:$0xff] %v236
  %253 = vst [vmem:[#allocation2 + $0x50] sm:$0xff] %v237
  %254 = vst [vmem:[#allocation2 + $0x58] sm:$0xff] %v238
  %255 = vst [vmem:[#allocation2 + $0x60] sm:$0xff] %v239
  %256 = vst [vmem:[#allocation2 + $0x68] sm:$0xff] %v240
  %257 = vst [vmem:[#allocation2 + $0x70] sm:$0xff] %v241
  %258 = vst [vmem:[#allocation2 + $0x78] sm:$0xff] %v242
  // Predicated region
  $region18: #{efficientnet_b7_forward.6} parent=0 // pred_check
    %p259 = pneg %p14
  $region19: #{efficientnet_b7_forward.6} parent=0 // pred_check_branch
    %261 = sbr.rel (%p259) target = $region21
  $region20: #{efficientnet_b7_forward.6} parent=0 // pred_region
    %v262 = vld [vmem:[#allocation2] sm:$0xff]
    %v263 = vld [vmem:[#allocation2 + $0x8] sm:$0xff]
    %v264 = vld [vmem:[#allocation2 + $0x10] sm:$0xff]
    %v265 = vld [vmem:[#allocation2 + $0x18] sm:$0xff]
    %v266 = vld [vmem:[#allocation2 + $0x20] sm:$0xff]
    %v267 = vld [vmem:[#allocation2 + $0x28] sm:$0xff]
    %v268 = vld [vmem:[#allocation2 + $0x30] sm:$0xff]
    %v269 = vld [vmem:[#allocation2 + $0x38] sm:$0xff]
    %v270 = vld [vmem:[#allocation2 + $0x40] sm:$0xff]
    %v271 = vld [vmem:[#allocation2 + $0x48] sm:$0xff]
    %v272 = vld [vmem:[#allocation2 + $0x50] sm:$0xff]
    %v273 = vld [vmem:[#allocation2 + $0x58] sm:$0xff]
    %v274 = vld [vmem:[#allocation2 + $0x60] sm:$0xff]
    %v275 = vld [vmem:[#allocation2 + $0x68] sm:$0xff]
    %v276 = vld [vmem:[#allocation2 + $0x70] sm:$0xff]
    %v277 = vld [vmem:[#allocation2 + $0x78] sm:$0xff]
    %v278 = vld [vmem:[%s2] sm:$0x1]
    %v280 = vperm.slane %v278, 0
    %v282 = vadd.f32 %v262, %v280
    %v283 = vadd.f32 %v263, %v280
    %v284 = vadd.f32 %v264, %v280
    %v285 = vadd.f32 %v265, %v280
    %v286 = vadd.f32 %v266, %v280
    %v287 = vadd.f32 %v267, %v280
    %v288 = vadd.f32 %v268, %v280
    %v289 = vadd.f32 %v269, %v280
    %v290 = vadd.f32 %v270, %v280
    %v291 = vadd.f32 %v271, %v280
    %v292 = vadd.f32 %v272, %v280
    %v293 = vadd.f32 %v273, %v280
    %v294 = vadd.f32 %v274, %v280
    %v295 = vadd.f32 %v275, %v280
    %v296 = vadd.f32 %v276, %v280
    %v297 = vadd.f32 %v277, %v280
    %v298 = vxor.u32 %v282, 2147483648
    %v299 = vxor.u32 %v283, 2147483648
    %v300 = vxor.u32 %v284, 2147483648
    %v301 = vxor.u32 %v285, 2147483648
    %v302 = vxor.u32 %v286, 2147483648
    %v303 = vxor.u32 %v287, 2147483648
    %v304 = vxor.u32 %v288, 2147483648
    %v305 = vxor.u32 %v289, 2147483648
    %v306 = vxor.u32 %v290, 2147483648
    %v307 = vxor.u32 %v291, 2147483648
    %v308 = vxor.u32 %v292, 2147483648
    %v309 = vxor.u32 %v293, 2147483648
    %v310 = vxor.u32 %v294, 2147483648
    %v311 = vxor.u32 %v295, 2147483648
    %v312 = vxor.u32 %v296, 2147483648
    %v313 = vxor.u32 %v297, 2147483648
    %v314 = vmul.f32 %v298, 1.442695
    %v315 = vpow.pop %v314
    %v316 = vmul.f32 %v299, 1.442695
    %v317 = vpow.pop %v316
    %v318 = vmul.f32 %v300, 1.442695
    %v319 = vpow.pop %v318
    %v320 = vmul.f32 %v301, 1.442695
    %v321 = vpow.pop %v320
    %v322 = vmul.f32 %v302, 1.442695
    %v323 = vpow.pop %v322
    %v324 = vmul.f32 %v303, 1.442695
    %v325 = vpow.pop %v324
    %v326 = vmul.f32 %v304, 1.442695
    %v327 = vpow.pop %v326
    %v328 = vmul.f32 %v305, 1.442695
    %v329 = vpow.pop %v328
    %v330 = vmul.f32 %v306, 1.442695
    %v331 = vpow.pop %v330
    %v332 = vmul.f32 %v307, 1.442695
    %v333 = vpow.pop %v332
    %v334 = vmul.f32 %v308, 1.442695
    %v335 = vpow.pop %v334
    %v336 = vmul.f32 %v309, 1.442695
    %v337 = vpow.pop %v336
    %v338 = vmul.f32 %v310, 1.442695
    %v339 = vpow.pop %v338
    %v340 = vmul.f32 %v311, 1.442695
    %v341 = vpow.pop %v340
    %v342 = vmul.f32 %v312, 1.442695
    %v343 = vpow.pop %v342
    %v344 = vmul.f32 %v313, 1.442695
    %v345 = vpow.pop %v344
    %v346 = vadd.f32 %v315, 1.0
    %v347 = vadd.f32 %v317, 1.0
    %v348 = vadd.f32 %v319, 1.0
    %v349 = vadd.f32 %v321, 1.0
    %v350 = vadd.f32 %v323, 1.0
    %v351 = vadd.f32 %v325, 1.0
    %v352 = vadd.f32 %v327, 1.0
    %v353 = vadd.f32 %v329, 1.0
    %v354 = vadd.f32 %v331, 1.0
    %v355 = vadd.f32 %v333, 1.0
    %v356 = vadd.f32 %v335, 1.0
    %v357 = vadd.f32 %v337, 1.0
    %v358 = vadd.f32 %v339, 1.0
    %v359 = vadd.f32 %v341, 1.0
    %v360 = vadd.f32 %v343, 1.0
    %v361 = vadd.f32 %v345, 1.0
    %v362 = vrcp.pop %v346
    %v363 = vmul.f32 %v346, %v362
    %v364 = vsub.f32 1.0, %v363
    %v365 = vmul.f32 %v362, %v364
    %v366 = vadd.f32 %v362, %v365
    %vm367 = vweird.f32 %v346
    %vm368 = vweird.f32 %v362
    %vm369 = vmor %vm367, %vm368
    %v370 = vsel %vm369, %v362, %v366
    %v371 = vand.u32 2147483647, %v346
    %vm372 = vcmp.eq.f32.partialorder %v371, 8.507059e+37
    %v373 = vand.u32 %v346, 2147483648
    %v374 = vor.u32 1.1754944e-38, %v373
    %v375 = vsel %vm372, %v374, %v370
    %v376 = vmul.f32 1.0, %v375
    %v377 = vrcp.pop %v347
    %v378 = vmul.f32 %v347, %v377
    %v379 = vsub.f32 1.0, %v378
    %v380 = vmul.f32 %v377, %v379
    %v381 = vadd.f32 %v377, %v380
    %vm382 = vweird.f32 %v347
    %vm383 = vweird.f32 %v377
    %vm384 = vmor %vm382, %vm383
    %v385 = vsel %vm384, %v377, %v381
    %v386 = vand.u32 2147483647, %v347
    %vm387 = vcmp.eq.f32.partialorder %v386, 8.507059e+37
    %v388 = vand.u32 %v347, 2147483648
    %v389 = vor.u32 1.1754944e-38, %v388
    %v390 = vsel %vm387, %v389, %v385
    %v391 = vmul.f32 1.0, %v390
    %v392 = vrcp.pop %v348
    %v393 = vmul.f32 %v348, %v392
    %v394 = vsub.f32 1.0, %v393
    %v395 = vmul.f32 %v392, %v394
    %v396 = vadd.f32 %v392, %v395
    %vm397 = vweird.f32 %v348
    %vm398 = vweird.f32 %v392
    %vm399 = vmor %vm397, %vm398
    %v400 = vsel %vm399, %v392, %v396
    %v401 = vand.u32 2147483647, %v348
    %vm402 = vcmp.eq.f32.partialorder %v401, 8.507059e+37
    %v403 = vand.u32 %v348, 2147483648
    %v404 = vor.u32 1.1754944e-38, %v403
    %v405 = vsel %vm402, %v404, %v400
    %v406 = vmul.f32 1.0, %v405
    %v407 = vrcp.pop %v349
    %v408 = vmul.f32 %v349, %v407
    %v409 = vsub.f32 1.0, %v408
    %v410 = vmul.f32 %v407, %v409
    %v411 = vadd.f32 %v407, %v410
    %vm412 = vweird.f32 %v349
    %vm413 = vweird.f32 %v407
    %vm414 = vmor %vm412, %vm413
    %v415 = vsel %vm414, %v407, %v411
    %v416 = vand.u32 2147483647, %v349
    %vm417 = vcmp.eq.f32.partialorder %v416, 8.507059e+37
    %v418 = vand.u32 %v349, 2147483648
    %v419 = vor.u32 1.1754944e-38, %v418
    %v420 = vsel %vm417, %v419, %v415
    %v421 = vmul.f32 1.0, %v420
    %v422 = vrcp.pop %v350
    %v423 = vmul.f32 %v350, %v422
    %v424 = vsub.f32 1.0, %v423
    %v425 = vmul.f32 %v422, %v424
    %v426 = vadd.f32 %v422, %v425
    %vm427 = vweird.f32 %v350
    %vm428 = vweird.f32 %v422
    %vm429 = vmor %vm427, %vm428
    %v430 = vsel %vm429, %v422, %v426
    %v431 = vand.u32 2147483647, %v350
    %vm432 = vcmp.eq.f32.partialorder %v431, 8.507059e+37
    %v433 = vand.u32 %v350, 2147483648
    %v434 = vor.u32 1.1754944e-38, %v433
    %v435 = vsel %vm432, %v434, %v430
    %v436 = vmul.f32 1.0, %v435
    %v437 = vrcp.pop %v351
    %v438 = vmul.f32 %v351, %v437
    %v439 = vsub.f32 1.0, %v438
    %v440 = vmul.f32 %v437, %v439
    %v441 = vadd.f32 %v437, %v440
    %vm442 = vweird.f32 %v351
    %vm443 = vweird.f32 %v437
    %vm444 = vmor %vm442, %vm443
    %v445 = vsel %vm444, %v437, %v441
    %v446 = vand.u32 2147483647, %v351
    %vm447 = vcmp.eq.f32.partialorder %v446, 8.507059e+37
    %v448 = vand.u32 %v351, 2147483648
    %v449 = vor.u32 1.1754944e-38, %v448
    %v450 = vsel %vm447, %v449, %v445
    %v451 = vmul.f32 1.0, %v450
    %v452 = vrcp.pop %v352
    %v453 = vmul.f32 %v352, %v452
    %v454 = vsub.f32 1.0, %v453
    %v455 = vmul.f32 %v452, %v454
    %v456 = vadd.f32 %v452, %v455
    %vm457 = vweird.f32 %v352
    %vm458 = vweird.f32 %v452
    %vm459 = vmor %vm457, %vm458
    %v460 = vsel %vm459, %v452, %v456
    %v461 = vand.u32 2147483647, %v352
    %vm462 = vcmp.eq.f32.partialorder %v461, 8.507059e+37
    %v463 = vand.u32 %v352, 2147483648
    %v464 = vor.u32 1.1754944e-38, %v463
    %v465 = vsel %vm462, %v464, %v460
    %v466 = vmul.f32 1.0, %v465
    %v467 = vrcp.pop %v353
    %v468 = vmul.f32 %v353, %v467
    %v469 = vsub.f32 1.0, %v468
    %v470 = vmul.f32 %v467, %v469
    %v471 = vadd.f32 %v467, %v470
    %vm472 = vweird.f32 %v353
    %vm473 = vweird.f32 %v467
    %vm474 = vmor %vm472, %vm473
    %v475 = vsel %vm474, %v467, %v471
    %v476 = vand.u32 2147483647, %v353
    %vm477 = vcmp.eq.f32.partialorder %v476, 8.507059e+37
    %v478 = vand.u32 %v353, 2147483648
    %v479 = vor.u32 1.1754944e-38, %v478
    %v480 = vsel %vm477, %v479, %v475
    %v481 = vmul.f32 1.0, %v480
    %v482 = vrcp.pop %v354
    %v483 = vmul.f32 %v354, %v482
    %v484 = vsub.f32 1.0, %v483
    %v485 = vmul.f32 %v482, %v484
    %v486 = vadd.f32 %v482, %v485
    %vm487 = vweird.f32 %v354
    %vm488 = vweird.f32 %v482
    %vm489 = vmor %vm487, %vm488
    %v490 = vsel %vm489, %v482, %v486
    %v491 = vand.u32 2147483647, %v354
    %vm492 = vcmp.eq.f32.partialorder %v491, 8.507059e+37
    %v493 = vand.u32 %v354, 2147483648
    %v494 = vor.u32 1.1754944e-38, %v493
    %v495 = vsel %vm492, %v494, %v490
    %v496 = vmul.f32 1.0, %v495
    %v497 = vrcp.pop %v355
    %v498 = vmul.f32 %v355, %v497
    %v499 = vsub.f32 1.0, %v498
    %v500 = vmul.f32 %v497, %v499
    %v501 = vadd.f32 %v497, %v500
    %vm502 = vweird.f32 %v355
    %vm503 = vweird.f32 %v497
    %vm504 = vmor %vm502, %vm503
    %v505 = vsel %vm504, %v497, %v501
    %v506 = vand.u32 2147483647, %v355
    %vm507 = vcmp.eq.f32.partialorder %v506, 8.507059e+37
    %v508 = vand.u32 %v355, 2147483648
    %v509 = vor.u32 1.1754944e-38, %v508
    %v510 = vsel %vm507, %v509, %v505
    %v511 = vmul.f32 1.0, %v510
    %v512 = vrcp.pop %v356
    %v513 = vmul.f32 %v356, %v512
    %v514 = vsub.f32 1.0, %v513
    %v515 = vmul.f32 %v512, %v514
    %v516 = vadd.f32 %v512, %v515
    %vm517 = vweird.f32 %v356
    %vm518 = vweird.f32 %v512
    %vm519 = vmor %vm517, %vm518
    %v520 = vsel %vm519, %v512, %v516
    %v521 = vand.u32 2147483647, %v356
    %vm522 = vcmp.eq.f32.partialorder %v521, 8.507059e+37
    %v523 = vand.u32 %v356, 2147483648
    %v524 = vor.u32 1.1754944e-38, %v523
    %v525 = vsel %vm522, %v524, %v520
    %v526 = vmul.f32 1.0, %v525
    %v527 = vrcp.pop %v357
    %v528 = vmul.f32 %v357, %v527
    %v529 = vsub.f32 1.0, %v528
    %v530 = vmul.f32 %v527, %v529
    %v531 = vadd.f32 %v527, %v530
    %vm532 = vweird.f32 %v357
    %vm533 = vweird.f32 %v527
    %vm534 = vmor %vm532, %vm533
    %v535 = vsel %vm534, %v527, %v531
    %v536 = vand.u32 2147483647, %v357
    %vm537 = vcmp.eq.f32.partialorder %v536, 8.507059e+37
    %v538 = vand.u32 %v357, 2147483648
    %v539 = vor.u32 1.1754944e-38, %v538
    %v540 = vsel %vm537, %v539, %v535
    %v541 = vmul.f32 1.0, %v540
    %v542 = vrcp.pop %v358
    %v543 = vmul.f32 %v358, %v542
    %v544 = vsub.f32 1.0, %v543
    %v545 = vmul.f32 %v542, %v544
    %v546 = vadd.f32 %v542, %v545
    %vm547 = vweird.f32 %v358
    %vm548 = vweird.f32 %v542
    %vm549 = vmor %vm547, %vm548
    %v550 = vsel %vm549, %v542, %v546
    %v551 = vand.u32 2147483647, %v358
    %vm552 = vcmp.eq.f32.partialorder %v551, 8.507059e+37
    %v553 = vand.u32 %v358, 2147483648
    %v554 = vor.u32 1.1754944e-38, %v553
    %v555 = vsel %vm552, %v554, %v550
    %v556 = vmul.f32 1.0, %v555
    %v557 = vrcp.pop %v359
    %v558 = vmul.f32 %v359, %v557
    %v559 = vsub.f32 1.0, %v558
    %v560 = vmul.f32 %v557, %v559
    %v561 = vadd.f32 %v557, %v560
    %vm562 = vweird.f32 %v359
    %vm563 = vweird.f32 %v557
    %vm564 = vmor %vm562, %vm563
    %v565 = vsel %vm564, %v557, %v561
    %v566 = vand.u32 2147483647, %v359
    %vm567 = vcmp.eq.f32.partialorder %v566, 8.507059e+37
    %v568 = vand.u32 %v359, 2147483648
    %v569 = vor.u32 1.1754944e-38, %v568
    %v570 = vsel %vm567, %v569, %v565
    %v571 = vmul.f32 1.0, %v570
    %v572 = vrcp.pop %v360
    %v573 = vmul.f32 %v360, %v572
    %v574 = vsub.f32 1.0, %v573
    %v575 = vmul.f32 %v572, %v574
    %v576 = vadd.f32 %v572, %v575
    %vm577 = vweird.f32 %v360
    %vm578 = vweird.f32 %v572
    %vm579 = vmor %vm577, %vm578
    %v580 = vsel %vm579, %v572, %v576
    %v581 = vand.u32 2147483647, %v360
    %vm582 = vcmp.eq.f32.partialorder %v581, 8.507059e+37
    %v583 = vand.u32 %v360, 2147483648
    %v584 = vor.u32 1.1754944e-38, %v583
    %v585 = vsel %vm582, %v584, %v580
    %v586 = vmul.f32 1.0, %v585
    %v587 = vrcp.pop %v361
    %v588 = vmul.f32 %v361, %v587
    %v589 = vsub.f32 1.0, %v588
    %v590 = vmul.f32 %v587, %v589
    %v591 = vadd.f32 %v587, %v590
    %vm592 = vweird.f32 %v361
    %vm593 = vweird.f32 %v587
    %vm594 = vmor %vm592, %vm593
    %v595 = vsel %vm594, %v587, %v591
    %v596 = vand.u32 2147483647, %v361
    %vm597 = vcmp.eq.f32.partialorder %v596, 8.507059e+37
    %v598 = vand.u32 %v361, 2147483648
    %v599 = vor.u32 1.1754944e-38, %v598
    %v600 = vsel %vm597, %v599, %v595
    %v601 = vmul.f32 1.0, %v600
    %v602 = vmul.f32 %v282, %v376
    %v603 = vmul.f32 %v283, %v391
    %v604 = vmul.f32 %v284, %v406
    %v605 = vmul.f32 %v285, %v421
    %v606 = vmul.f32 %v286, %v436
    %v607 = vmul.f32 %v287, %v451
    %v608 = vmul.f32 %v288, %v466
    %v609 = vmul.f32 %v289, %v481
    %v610 = vmul.f32 %v290, %v496
    %v611 = vmul.f32 %v291, %v511
    %v612 = vmul.f32 %v292, %v526
    %v613 = vmul.f32 %v293, %v541
    %v614 = vmul.f32 %v294, %v556
    %v615 = vmul.f32 %v295, %v571
    %v616 = vmul.f32 %v296, %v586
    %v617 = vmul.f32 %v297, %v601
    %v618 = vpack.c.bf16 %v602, %v602
    %v619 = vpack.c.bf16 %v603, %v603
    %v620 = vpack.c.bf16 %v604, %v604
    %v621 = vpack.c.bf16 %v605, %v605
    %v622 = vpack.c.bf16 %v606, %v606
    %v623 = vpack.c.bf16 %v607, %v607
    %v624 = vpack.c.bf16 %v608, %v608
    %v625 = vpack.c.bf16 %v609, %v609
    %v626 = vpack.c.bf16 %v610, %v610
    %v627 = vpack.c.bf16 %v611, %v611
    %v628 = vpack.c.bf16 %v612, %v612
    %v629 = vpack.c.bf16 %v613, %v613
    %v630 = vpack.c.bf16 %v614, %v614
    %v631 = vpack.c.bf16 %v615, %v615
    %v632 = vpack.c.bf16 %v616, %v616
    %v633 = vpack.c.bf16 %v617, %v617
    %634 = vst [vmem:[%s3] sm:$0xf] %v618
    %635 = vst [vmem:[%s3 + $0x4] sm:$0xf] %v619
    %636 = vst [vmem:[%s3 + $0x8] sm:$0xf] %v620
    %637 = vst [vmem:[%s3 + $0xc] sm:$0xf] %v621
    %638 = vst [vmem:[%s3 + $0x10] sm:$0xf] %v622
    %639 = vst [vmem:[%s3 + $0x14] sm:$0xf] %v623
    %640 = vst [vmem:[%s3 + $0x18] sm:$0xf] %v624
    %641 = vst [vmem:[%s3 + $0x1c] sm:$0xf] %v625
    %642 = vst [vmem:[%s3 + $0x20] sm:$0xf] %v626
    %643 = vst [vmem:[%s3 + $0x24] sm:$0xf] %v627
    %644 = vst [vmem:[%s3 + $0x28] sm:$0xf] %v628
    %645 = vst [vmem:[%s3 + $0x2c] sm:$0xf] %v629
    %646 = vst [vmem:[%s3 + $0x30] sm:$0xf] %v630
    %647 = vst [vmem:[%s3 + $0x34] sm:$0xf] %v631
    %648 = vst [vmem:[%s3 + $0x38] sm:$0xf] %v632
    %649 = vst [vmem:[%s3 + $0x3c] sm:$0xf] %v633
  $region21: #{efficientnet_b7_forward.6} parent=0 // pred_fallthru
    _
  // Predicated region
  $region22: #{efficientnet_b7_forward.6} parent=0 // pred_check
    _
  $region23: #{efficientnet_b7_forward.6} parent=0 // pred_check_branch
    %651 = sbr.rel (0) target = $region25
  $region24: #{efficientnet_b7_forward.6} parent=0 // pred_region
    _
  $region25: #{efficientnet_b7_forward.6} parent=0 // pred_fallthru
    _
  // Predicated region
  $region26: #{efficientnet_b7_forward.6} parent=0 // pred_check
    _
  $region27: #{efficientnet_b7_forward.6} parent=0 // pred_check_branch
    %653 = sbr.rel (0) target = $region29
  $region28: #{efficientnet_b7_forward.6} parent=0 // pred_region
    _
  $region29: #{efficientnet_b7_forward.6} parent=0 // pred_fallthru
    _

// kernel: efficientnet_b7_forward.7
$region0: #{efficientnet_b7_forward.7}
  #allocation0 [shape = 'u32[]', space=smem, size = 0x4, offset = 0x4, fixed_abs, tag = 'smem constant byte address 0x4 - core index']
  #allocation1 [shape = 'u32[72,128]{1,0:T(1,128)}', space=vmem, size = 0x9000, scoped, tag = 'internal scratch']
  %s0 = inlined_call_operand.vmem [shape: bf16[2,8,8,128], index: 0, kind: input, shape index: {}]
  %s1 = inlined_call_operand.vmem [shape: bf16[128,128], index: 1, kind: input, shape index: {}]
  %s2 = inlined_call_operand.vmem [shape: f32[1,128], index: 2, kind: input, shape index: {}]
  %s3 = inlined_call_operand.vmem [shape: f32[9,128], index: 3, kind: input, shape index: {}]
  %s4 = inlined_call_operand.vmem [shape: f32[1,128], index: 4, kind: input, shape index: {}]
  %s5 = inlined_call_operand.vmem [shape: bf16[2,8,8,128], index: 5, kind: output, shape index: {0}]
  %s6 = inlined_call_operand.vmem [shape: f32[2,1,128], index: 6, kind: output, shape index: {1}]
  %7 = xla_tuple %s5, %s6
  %s8 = sld [smem:[#allocation0]]
  $region61: #{efficientnet_b7_forward.7} parent=0
    _
  %s10 = ssub.s32 1, %s8
  %s11 = scalar_select 0, %s10, %s8
  loop: start=0, step=1, limit=4
  $region2: #{efficientnet_b7_forward.7} parent=0 // loop_pre_header
    _
  $region3: #{efficientnet_b7_forward.7} parent=0 // loop_header
    %s13 = sphi 0, %s17
    %p14 = scmp.ge.s32.totalorder %s13, 4
    %s23 = sphi 0, %s25
    %s26 = sphi 0, %s23
    %s27 = sphi 0, %s26
    %s43 = sphi 0, %s27
    %s47 = sphi 0, %s47
    %s49 = sphi 0, %s47
    %s50 = sphi 0, %s49
    %s64 = sphi 0, %s50
    %s68 = sphi 0, %s68
    %s70 = sphi 0, %s68
    %s71 = sphi 0, %s70
    %s85 = sphi 0, %s71
    %s89 = sphi 0, %s89
    %s91 = sphi 0, %s89
    %s92 = sphi 0, %s91
    %s106 = sphi 0, %s92
    %s110 = sphi 0, %s110
    %s112 = sphi 0, %s110
    %s113 = sphi 0, %s112
    %s127 = sphi 0, %s113
    %s133 = sphi 0, %s135
    %s136 = sphi 0, %s133
    %s137 = sphi 0, %s136
    %s153 = sphi 0, %s137
    %s159 = sphi 0, %s161
    %s162 = sphi 0, %s159
    %s163 = sphi 0, %s162
    %s179 = sphi 0, %s163
  $region4: #{efficientnet_b7_forward.7} parent=0 // loop_header_branch
    %16 = sbr.rel (%p14) target = $region8
  $region5: #{efficientnet_b7_forward.7} parent=0 // loop_body
    %s18 = ssub.s32 %s13, 1
    %s19 = ssub.s32 %s13, 2
    %s20 = sadd.s32 %s13, 1
    %s21 = ssub.s32 %s13, %s20
    %p22 = scmp.eq.s32.totalorder %s21, 0
    %s24 = sadd.s32 %s23, 1
    %s25 = scalar_select %p22, %s23, %s24
    %p28 = pneg %p22
    %p29 = scmp.eq.s32.totalorder %s13, 1
    %p30 = por %p28, %p29
    %p31 = scmp.ne.s32.totalorder %s23, %s26
    %p32 = scmp.eq.s32.totalorder %s13, 0
    %p33 = por %p31, %p32
    %p34 = scmp.ne.s32.totalorder %s23, %s26
    %p35 = scmp.eq.s32.totalorder %s18, 1
    %p36 = por %p34, %p35
    %p37 = scmp.ne.s32.totalorder %s26, %s27
    %p38 = scmp.eq.s32.totalorder %s18, 0
    %p39 = por %p37, %p38
    %p40 = scmp.ne.s32.totalorder %s26, %s27
    %p41 = scmp.eq.s32.totalorder %s19, 1
    %p42 = por %p40, %p41
    %p44 = scmp.ne.s32.totalorder %s27, %s43
    %p45 = scmp.eq.s32.totalorder %s19, 0
    %p46 = por %p44, %p45
    %s48 = sadd.s32 %s47, 1
    %p51 = scmp.eq.s32.totalorder %s13, 1
    %p52 = scmp.ne.s32.totalorder %s47, %s49
    %p53 = scmp.eq.s32.totalorder %s13, 0
    %p54 = por %p52, %p53
    %p55 = scmp.ne.s32.totalorder %s47, %s49
    %p56 = scmp.eq.s32.totalorder %s18, 1
    %p57 = por %p55, %p56
    %p58 = scmp.ne.s32.totalorder %s49, %s50
    %p59 = scmp.eq.s32.totalorder %s18, 0
    %p60 = por %p58, %p59
    %p61 = scmp.ne.s32.totalorder %s49, %s50
    %p62 = scmp.eq.s32.totalorder %s19, 1
    %p63 = por %p61, %p62
    %p65 = scmp.ne.s32.totalorder %s50, %s64
    %p66 = scmp.eq.s32.totalorder %s19, 0
    %p67 = por %p65, %p66
    %s69 = sadd.s32 %s68, 1
    %p72 = scmp.eq.s32.totalorder %s13, 1
    %p73 = scmp.ne.s32.totalorder %s68, %s70
    %p74 = scmp.eq.s32.totalorder %s13, 0
    %p75 = por %p73, %p74
    %p76 = scmp.ne.s32.totalorder %s68, %s70
    %p77 = scmp.eq.s32.totalorder %s18, 1
    %p78 = por %p76, %p77
    %p79 = scmp.ne.s32.totalorder %s70, %s71
    %p80 = scmp.eq.s32.totalorder %s18, 0
    %p81 = por %p79, %p80
    %p82 = scmp.ne.s32.totalorder %s70, %s71
    %p83 = scmp.eq.s32.totalorder %s19, 1
    %p84 = por %p82, %p83
    %p86 = scmp.ne.s32.totalorder %s71, %s85
    %p87 = scmp.eq.s32.totalorder %s19, 0
    %p88 = por %p86, %p87
    %s90 = sadd.s32 %s89, 1
    %p93 = scmp.eq.s32.totalorder %s13, 1
    %p94 = scmp.ne.s32.totalorder %s89, %s91
    %p95 = scmp.eq.s32.totalorder %s13, 0
    %p96 = por %p94, %p95
    %p97 = scmp.ne.s32.totalorder %s89, %s91
    %p98 = scmp.eq.s32.totalorder %s18, 1
    %p99 = por %p97, %p98
    %p100 = scmp.ne.s32.totalorder %s91, %s92
    %p101 = scmp.eq.s32.totalorder %s18, 0
    %p102 = por %p100, %p101
    %p103 = scmp.ne.s32.totalorder %s91, %s92
    %p104 = scmp.eq.s32.totalorder %s19, 1
    %p105 = por %p103, %p104
    %p107 = scmp.ne.s32.totalorder %s92, %s106
    %p108 = scmp.eq.s32.totalorder %s19, 0
    %p109 = por %p107, %p108
    %s111 = sadd.s32 %s110, 1
    %p114 = scmp.eq.s32.totalorder %s13, 1
    %p115 = scmp.ne.s32.totalorder %s110, %s112
    %p116 = scmp.eq.s32.totalorder %s13, 0
    %p117 = por %p115, %p116
    %p118 = scmp.ne.s32.totalorder %s110, %s112
    %p119 = scmp.eq.s32.totalorder %s18, 1
    %p120 = por %p118, %p119
    %p121 = scmp.ne.s32.totalorder %s112, %s113
    %p122 = scmp.eq.s32.totalorder %s18, 0
    %p123 = por %p121, %p122
    %p124 = scmp.ne.s32.totalorder %s112, %s113
    %p125 = scmp.eq.s32.totalorder %s19, 1
    %p126 = por %p124, %p125
    %p128 = scmp.ne.s32.totalorder %s113, %s127
    %p129 = scmp.eq.s32.totalorder %s19, 0
    %p130 = por %p128, %p129
    %s131 = ssub.s32 %s13, %s20
    %p132 = scmp.eq.s32.totalorder %s131, 0
    %s134 = sadd.s32 %s133, 1
    %s135 = scalar_select %p132, %s133, %s134
    %p138 = pneg %p132
    %p139 = scmp.eq.s32.totalorder %s13, 1
    %p140 = por %p138, %p139
    %p141 = scmp.ne.s32.totalorder %s133, %s136
    %p142 = scmp.eq.s32.totalorder %s13, 0
    %p143 = por %p141, %p142
    %p144 = scmp.ne.s32.totalorder %s133, %s136
    %p145 = scmp.eq.s32.totalorder %s18, 1
    %p146 = por %p144, %p145
    %p147 = scmp.ne.s32.totalorder %s136, %s137
    %p148 = scmp.eq.s32.totalorder %s18, 0
    %p149 = por %p147, %p148
    %p150 = scmp.ne.s32.totalorder %s136, %s137
    %p151 = scmp.eq.s32.totalorder %s19, 1
    %p152 = por %p150, %p151
    %p154 = scmp.ne.s32.totalorder %s137, %s153
    %p155 = scmp.eq.s32.totalorder %s19, 0
    %p156 = por %p154, %p155
    %s157 = ssub.s32 %s13, %s20
    %p158 = scmp.eq.s32.totalorder %s157, 0
    %s160 = sadd.s32 %s159, 1
    %s161 = scalar_select %p158, %s159, %s160
    %p164 = pneg %p158
    %p165 = scmp.eq.s32.totalorder %s13, 1
    %p166 = por %p164, %p165
    %p167 = scmp.ne.s32.totalorder %s159, %s162
    %p168 = scmp.eq.s32.totalorder %s13, 0
    %p169 = por %p167, %p168
    %p170 = scmp.ne.s32.totalorder %s159, %s162
    %p171 = scmp.eq.s32.totalorder %s18, 1
    %p172 = por %p170, %p171
    %p173 = scmp.ne.s32.totalorder %s162, %s163
    %p174 = scmp.eq.s32.totalorder %s18, 0
    %p175 = por %p173, %p174
    %p176 = scmp.ne.s32.totalorder %s162, %s163
    %p177 = scmp.eq.s32.totalorder %s19, 1
    %p178 = por %p176, %p177
    %p180 = scmp.ne.s32.totalorder %s163, %s179
    %p181 = scmp.eq.s32.totalorder %s19, 0
    %p182 = por %p180, %p181
    %p183 = scmp.le.s32.totalorder 1, %s13
    %p184 = scmp.lt.s32.totalorder %s13, 3
    %p185 = pnand %p183, %p184
    %p186 = pneg %p185
    // Predicated region
    $region9: #{efficientnet_b7_forward.7} parent=5 // pred_check
      _
    $region10: #{efficientnet_b7_forward.7} parent=5 // pred_check_branch
      %188 = sbr.rel (%p185) target = $region12
    $region11: #{efficientnet_b7_forward.7} parent=5 // pred_region
      %s189 = ssub.s32 %s13, 1
      // Predicated region
      $region13: #{efficientnet_b7_forward.7} parent=11 // pred_check
        %p190 = pneg %p60
      $region14: #{efficientnet_b7_forward.7} parent=11 // pred_check_branch
        %192 = sbr.rel (%p190) target = $region16
      $region15: #{efficientnet_b7_forward.7} parent=11 // pred_region
        _
      $region16: #{efficientnet_b7_forward.7} parent=11 // pred_fallthru
        _
      // Predicated region
      $region17: #{efficientnet_b7_forward.7} parent=11 // pred_check
        %p193 = pneg %p81
      $region18: #{efficientnet_b7_forward.7} parent=11 // pred_check_branch
        %195 = sbr.rel (%p193) target = $region20
      $region19: #{efficientnet_b7_forward.7} parent=11 // pred_region
        _
      $region20: #{efficientnet_b7_forward.7} parent=11 // pred_fallthru
        _
      // Predicated region
      $region21: #{efficientnet_b7_forward.7} parent=11 // pred_check
        %p196 = pneg %p102
      $region22: #{efficientnet_b7_forward.7} parent=11 // pred_check_branch
        %198 = sbr.rel (%p196) target = $region24
      $region23: #{efficientnet_b7_forward.7} parent=11 // pred_region
        _
      $region24: #{efficientnet_b7_forward.7} parent=11 // pred_fallthru
        _
      // Predicated region
      $region25: #{efficientnet_b7_forward.7} parent=11 // pred_check
        %p199 = pneg %p123
      $region26: #{efficientnet_b7_forward.7} parent=11 // pred_check_branch
        %201 = sbr.rel (%p199) target = $region28
      $region27: #{efficientnet_b7_forward.7} parent=11 // pred_region
        _
      $region28: #{efficientnet_b7_forward.7} parent=11 // pred_fallthru
        _
    $region12: #{efficientnet_b7_forward.7} parent=5 // pred_fallthru
      _
    %p202 = scmp.lt.s32.totalorder %s13, 2
    // Predicated region
    $region29: #{efficientnet_b7_forward.7} parent=5 // pred_check
      %p203 = pneg %p202
    $region30: #{efficientnet_b7_forward.7} parent=5 // pred_check_branch
      %205 = sbr.rel (%p203) target = $region32
    $region31: #{efficientnet_b7_forward.7} parent=5 // pred_region
      // Predicated region
      $region33: #{efficientnet_b7_forward.7} parent=31 // pred_check
        %p206 = pneg %p33
      $region34: #{efficientnet_b7_forward.7} parent=31 // pred_check_branch
        %208 = sbr.rel (%p206) target = $region36
      $region35: #{efficientnet_b7_forward.7} parent=31 // pred_region
        %p209 = scmp.lt.s32.totalorder %s13, 1
        %s210 = scalar_select %p209, %s13, 1
        %s211 = smul.addr %s210, 8
        %s212 = smul.addr %s211, 4
        %s213 = scalar_lea.vmem %s0, %s212
      $region36: #{efficientnet_b7_forward.7} parent=31 // pred_fallthru
        _
    $region32: #{efficientnet_b7_forward.7} parent=5 // pred_fallthru
      _
    %p214 = scmp.le.s32.totalorder 1, %s13
    %p215 = scmp.lt.s32.totalorder %s13, 3
    %p216 = pnand %p214, %p215
    %p217 = pneg %p216
    // Predicated region
    $region37: #{efficientnet_b7_forward.7} parent=5 // pred_check
      _
    $region38: #{efficientnet_b7_forward.7} parent=5 // pred_check_branch
      %219 = sbr.rel (%p216) target = $region40
    $region39: #{efficientnet_b7_forward.7} parent=5 // pred_region
      %s220 = ssub.s32 %s13, 1
      %p221 = scmp.lt.s32.totalorder %s18, 1
      %s222 = scalar_select %p221, %s18, 1
      %s223 = smul.addr %s222, 8
      %s224 = smul.addr %s223, 4
      %s225 = scalar_lea.vmem %s0, %s224
      %p226 = pneg %p39
      %p227 = pneg %p36
      %p228 = pneg %p60
      %p229 = pneg %p57
      %p230 = pneg %p81
      %p231 = pneg %p78
      %p232 = pneg %p102
      %p233 = pneg %p99
      %p234 = pneg %p123
      %p235 = pneg %p120
      %p236 = pneg %p149
      %p237 = pneg %p146
      %p238 = scmp.lt.s32.totalorder %s18, 1
      %s239 = scalar_select %p238, %s18, 1
      %s240 = smul.addr %s239, 8
      %s241 = smul.addr %s240, 4
      %s242 = scalar_lea.vmem %s5, %s241
      %p243 = pneg %p175
      %p244 = pneg %p172
      %p245 = scmp.lt.s32.totalorder %s18, 1
      %s246 = scalar_select %p245, %s18, 1
      %s247 = scalar_lea.vmem %s6, %s246
      %p248 = scmp.lt.s32.totalorder %s18, 1
      %s249 = scalar_select %p248, %s18, 1
      %s250 = smul.addr %s249, 8
      %s251 = smul.addr %s250, 4
      %s252 = scalar_lea.vmem %s0, %s251
      %p253 = scmp.lt.s32.totalorder %s18, 1
      %s254 = scalar_select %p253, %s18, 1
      %s255 = smul.addr %s254, 8
      %s256 = smul.addr %s255, 4
      %s257 = scalar_lea.vmem %s5, %s256
      %p258 = scmp.lt.s32.totalorder %s18, 1
      %s259 = scalar_select %p258, %s18, 1
      %s260 = scalar_lea.vmem %s6, %s259
      %v261 = vld [vmem:[%s252] sm:$0xf]
      %v262 = vld [vmem:[%s252 + $0x4] sm:$0xf]
      %v263 = vld [vmem:[%s252 + $0x8] sm:$0xf]
      %v264 = vld [vmem:[%s252 + $0xc] sm:$0xf]
      %v265 = vld [vmem:[%s252 + $0x10] sm:$0xf]
      %v266 = vld [vmem:[%s252 + $0x14] sm:$0xf]
      %v267 = vld [vmem:[%s252 + $0x18] sm:$0xf]
      %v268 = vld [vmem:[%s252 + $0x1c] sm:$0xf]
      %v269 = vld [vmem:[%s1] sm:$0xf]
      %v270 = vld [vmem:[%s1 + $0x4] sm:$0xf]
      %v271 = vld [vmem:[%s1 + $0x8] sm:$0xf]
      %v272 = vld [vmem:[%s1 + $0xc] sm:$0xf]
      %v273 = vld [vmem:[%s1 + $0x10] sm:$0xf]
      %v274 = vld [vmem:[%s1 + $0x14] sm:$0xf]
      %v275 = vld [vmem:[%s1 + $0x18] sm:$0xf]
      %v276 = vld [vmem:[%s1 + $0x1c] sm:$0xf]
      %v277 = vld [vmem:[%s1 + $0x20] sm:$0xf]
      %v278 = vld [vmem:[%s1 + $0x24] sm:$0xf]
      %v279 = vld [vmem:[%s1 + $0x28] sm:$0xf]
      %v280 = vld [vmem:[%s1 + $0x2c] sm:$0xf]
      %v281 = vld [vmem:[%s1 + $0x30] sm:$0xf]
      %v282 = vld [vmem:[%s1 + $0x34] sm:$0xf]
      %v283 = vld [vmem:[%s1 + $0x38] sm:$0xf]
      %v284 = vld [vmem:[%s1 + $0x3c] sm:$0xf]
      %v285 = vld [vmem:[%s2] sm:$0x1]
      %v287 = vperm.slane %v285, 0
      %v297 = vunpack.c.l.b16 %v261
      %v298 = vunpack.c.l.b16 %v262
      %v299 = vunpack.c.l.b16 %v263
      %v300 = vunpack.c.l.b16 %v264
      %v301 = vunpack.c.l.b16 %v265
      %v302 = vunpack.c.l.b16 %v266
      %v303 = vunpack.c.l.b16 %v267
      %v304 = vunpack.c.l.b16 %v268
      %v305 = vpack.c.b16 %v298, %v297
      %v306 = vpack.c.b16 %v300, %v299
      %v307 = vpack.c.b16 %v302, %v301
      %v308 = vpack.c.b16 %v304, %v303
      %v329 = vunpack.c.l.b16 %v269
      %v330 = vunpack.c.l.b16 %v270
      %v331 = vunpack.c.l.b16 %v271
      %v332 = vunpack.c.l.b16 %v272
      %v333 = vunpack.c.l.b16 %v273
      %v334 = vunpack.c.l.b16 %v274
      %v335 = vunpack.c.l.b16 %v275
      %v336 = vunpack.c.l.b16 %v276
      %v337 = vunpack.c.l.b16 %v277
      %v338 = vunpack.c.l.b16 %v278
      %v339 = vunpack.c.l.b16 %v279
      %v340 = vunpack.c.l.b16 %v280
      %v341 = vunpack.c.l.b16 %v281
      %v342 = vunpack.c.l.b16 %v282
      %v343 = vunpack.c.l.b16 %v283
      %v344 = vunpack.c.l.b16 %v284
      %v345 = vpack.c.b16 %v330, %v329
      %v346 = vpack.c.b16 %v332, %v331
      %v347 = vpack.c.b16 %v334, %v333
      %v348 = vpack.c.b16 %v336, %v335
      %v349 = vpack.c.b16 %v338, %v337
      %v350 = vpack.c.b16 %v340, %v339
      %v351 = vpack.c.b16 %v342, %v341
      %v352 = vpack.c.b16 %v344, %v343
      %361 = vmatpush.bf16.msra.mxu0 %v352
      %362 = vmatpush.bf16.msra.mxu0 %v351
      %363 = vmatpush.bf16.msra.mxu0 %v350
      %364 = vmatpush.bf16.msra.mxu0 %v349
      %365 = vmatpush.bf16.msra.mxu0 %v348
      %366 = vmatpush.bf16.msra.mxu0 %v347
      %367 = vmatpush.bf16.msra.mxu0 %v346
      %368 = vmatpush.bf16.msra.mxu0 %v345
      %369 = vmatmul.bf16.gmra.mxu0 %v305
      %v370 = vpop.f32.mrf.mxu0
      %v371 = vadd.f32 %v287, %v370
      %v372 = vpop.f32.mrf.mxu0
      %v373 = vadd.f32 %v287, %v372
      %374 = vmatmul.bf16.gmra.mxu0 %v306
      %v375 = vpop.f32.mrf.mxu0
      %v376 = vadd.f32 %v287, %v375
      %v377 = vpop.f32.mrf.mxu0
      %v378 = vadd.f32 %v287, %v377
      %379 = vmatmul.bf16.gmra.mxu0 %v307
      %v380 = vpop.f32.mrf.mxu0
      %v381 = vadd.f32 %v287, %v380
      %v382 = vpop.f32.mrf.mxu0
      %v383 = vadd.f32 %v287, %v382
      %384 = vmatmul.bf16.gmra.mxu0 %v308
      %v385 = vpop.f32.mrf.mxu0
      %v386 = vadd.f32 %v287, %v385
      %v387 = vpop.f32.mrf.mxu0
      %v388 = vadd.f32 %v287, %v387
      %389 = vdwg.mxu0
      %v390 = vxor.u32 %v371, 2147483648
      %v391 = vxor.u32 %v373, 2147483648
      %v392 = vxor.u32 %v376, 2147483648
      %v393 = vxor.u32 %v378, 2147483648
      %v394 = vxor.u32 %v381, 2147483648
      %v395 = vxor.u32 %v383, 2147483648
      %v396 = vxor.u32 %v386, 2147483648
      %v397 = vxor.u32 %v388, 2147483648
      %v398 = vmul.f32 %v390, 1.442695
      %v399 = vpow.pop %v398
      %v400 = vmul.f32 %v391, 1.442695
      %v401 = vpow.pop %v400
      %v402 = vmul.f32 %v392, 1.442695
      %v403 = vpow.pop %v402
      %v404 = vmul.f32 %v393, 1.442695
      %v405 = vpow.pop %v404
      %v406 = vmul.f32 %v394, 1.442695
      %v407 = vpow.pop %v406
      %v408 = vmul.f32 %v395, 1.442695
      %v409 = vpow.pop %v408
      %v410 = vmul.f32 %v396, 1.442695
      %v411 = vpow.pop %v410
      %v412 = vmul.f32 %v397, 1.442695
      %v413 = vpow.pop %v412
      %v414 = vadd.f32 %v399, 1.0
      %v415 = vadd.f32 %v401, 1.0
      %v416 = vadd.f32 %v403, 1.0
      %v417 = vadd.f32 %v405, 1.0
      %v418 = vadd.f32 %v407, 1.0
      %v419 = vadd.f32 %v409, 1.0
      %v420 = vadd.f32 %v411, 1.0
      %v421 = vadd.f32 %v413, 1.0
      %v422 = vrcp.pop %v414
      %v423 = vmul.f32 %v414, %v422
      %v424 = vsub.f32 1.0, %v423
      %v425 = vmul.f32 %v422, %v424
      %v426 = vadd.f32 %v422, %v425
      %vm427 = vweird.f32 %v414
      %vm428 = vweird.f32 %v422
      %vm429 = vmor %vm427, %vm428
      %v430 = vsel %vm429, %v422, %v426
      %v431 = vand.u32 2147483647, %v414
      %vm432 = vcmp.eq.f32.partialorder %v431, 8.507059e+37
      %v433 = vand.u32 %v414, 2147483648
      %v434 = vor.u32 1.1754944e-38, %v433
      %v435 = vsel %vm432, %v434, %v430
      %v436 = vmul.f32 1.0, %v435
      %v437 = vrcp.pop %v415
      %v438 = vmul.f32 %v415, %v437
      %v439 = vsub.f32 1.0, %v438
      %v440 = vmul.f32 %v437, %v439
      %v441 = vadd.f32 %v437, %v440
      %vm442 = vweird.f32 %v415
      %vm443 = vweird.f32 %v437
      %vm444 = vmor %vm442, %vm443
      %v445 = vsel %vm444, %v437, %v441
      %v446 = vand.u32 2147483647, %v415
      %vm447 = vcmp.eq.f32.partialorder %v446, 8.507059e+37
      %v448 = vand.u32 %v415, 2147483648
      %v449 = vor.u32 1.1754944e-38, %v448
      %v450 = vsel %vm447, %v449, %v445
      %v451 = vmul.f32 1.0, %v450
      %v452 = vrcp.pop %v416
      %v453 = vmul.f32 %v416, %v452
      %v454 = vsub.f32 1.0, %v453
      %v455 = vmul.f32 %v452, %v454
      %v456 = vadd.f32 %v452, %v455
      %vm457 = vweird.f32 %v416
      %vm458 = vweird.f32 %v452
      %vm459 = vmor %vm457, %vm458
      %v460 = vsel %vm459, %v452, %v456
      %v461 = vand.u32 2147483647, %v416
      %vm462 = vcmp.eq.f32.partialorder %v461, 8.507059e+37
      %v463 = vand.u32 %v416, 2147483648
      %v464 = vor.u32 1.1754944e-38, %v463
      %v465 = vsel %vm462, %v464, %v460
      %v466 = vmul.f32 1.0, %v465
      %v467 = vrcp.pop %v417
      %v468 = vmul.f32 %v417, %v467
      %v469 = vsub.f32 1.0, %v468
      %v470 = vmul.f32 %v467, %v469
      %v471 = vadd.f32 %v467, %v470
      %vm472 = vweird.f32 %v417
      %vm473 = vweird.f32 %v467
      %vm474 = vmor %vm472, %vm473
      %v475 = vsel %vm474, %v467, %v471
      %v476 = vand.u32 2147483647, %v417
      %vm477 = vcmp.eq.f32.partialorder %v476, 8.507059e+37
      %v478 = vand.u32 %v417, 2147483648
      %v479 = vor.u32 1.1754944e-38, %v478
      %v480 = vsel %vm477, %v479, %v475
      %v481 = vmul.f32 1.0, %v480
      %v482 = vrcp.pop %v418
      %v483 = vmul.f32 %v418, %v482
      %v484 = vsub.f32 1.0, %v483
      %v485 = vmul.f32 %v482, %v484
      %v486 = vadd.f32 %v482, %v485
      %vm487 = vweird.f32 %v418
      %vm488 = vweird.f32 %v482
      %vm489 = vmor %vm487, %vm488
      %v490 = vsel %vm489, %v482, %v486
      %v491 = vand.u32 2147483647, %v418
      %vm492 = vcmp.eq.f32.partialorder %v491, 8.507059e+37
      %v493 = vand.u32 %v418, 2147483648
      %v494 = vor.u32 1.1754944e-38, %v493
      %v495 = vsel %vm492, %v494, %v490
      %v496 = vmul.f32 1.0, %v495
      %v497 = vrcp.pop %v419
      %v498 = vmul.f32 %v419, %v497
      %v499 = vsub.f32 1.0, %v498
      %v500 = vmul.f32 %v497, %v499
      %v501 = vadd.f32 %v497, %v500
      %vm502 = vweird.f32 %v419
      %vm503 = vweird.f32 %v497
      %vm504 = vmor %vm502, %vm503
      %v505 = vsel %vm504, %v497, %v501
      %v506 = vand.u32 2147483647, %v419
      %vm507 = vcmp.eq.f32.partialorder %v506, 8.507059e+37
      %v508 = vand.u32 %v419, 2147483648
      %v509 = vor.u32 1.1754944e-38, %v508
      %v510 = vsel %vm507, %v509, %v505
      %v511 = vmul.f32 1.0, %v510
      %v512 = vrcp.pop %v420
      %v513 = vmul.f32 %v420, %v512
      %v514 = vsub.f32 1.0, %v513
      %v515 = vmul.f32 %v512, %v514
      %v516 = vadd.f32 %v512, %v515
      %vm517 = vweird.f32 %v420
      %vm518 = vweird.f32 %v512
      %vm519 = vmor %vm517, %vm518
      %v520 = vsel %vm519, %v512, %v516
      %v521 = vand.u32 2147483647, %v420
      %vm522 = vcmp.eq.f32.partialorder %v521, 8.507059e+37
      %v523 = vand.u32 %v420, 2147483648
      %v524 = vor.u32 1.1754944e-38, %v523
      %v525 = vsel %vm522, %v524, %v520
      %v526 = vmul.f32 1.0, %v525
      %v527 = vrcp.pop %v421
      %v528 = vmul.f32 %v421, %v527
      %v529 = vsub.f32 1.0, %v528
      %v530 = vmul.f32 %v527, %v529
      %v531 = vadd.f32 %v527, %v530
      %vm532 = vweird.f32 %v421
      %vm533 = vweird.f32 %v527
      %vm534 = vmor %vm532, %vm533
      %v535 = vsel %vm534, %v527, %v531
      %v536 = vand.u32 2147483647, %v421
      %vm537 = vcmp.eq.f32.partialorder %v536, 8.507059e+37
      %v538 = vand.u32 %v421, 2147483648
      %v539 = vor.u32 1.1754944e-38, %v538
      %v540 = vsel %vm537, %v539, %v535
      %v541 = vmul.f32 1.0, %v540
      %v542 = vmul.f32 %v371, %v436
      %v543 = vmul.f32 %v373, %v451
      %v544 = vmul.f32 %v376, %v466
      %v545 = vmul.f32 %v378, %v481
      %v546 = vmul.f32 %v381, %v496
      %v547 = vmul.f32 %v383, %v511
      %v548 = vmul.f32 %v386, %v526
      %v549 = vmul.f32 %v388, %v541
      %v550 = vlaneseq
      %v551 = vshrl.u32 %v550, 7
      %vm552 = vcmp.ge.s32.totalorder %v551, 1
      %v553 = vsel %vm552, 1, 0
      %v554 = vcvt.s32.f32 %v553
      %vm555 = vcmp.le.s32.totalorder %v551, 6
      %v556 = vsel %vm555, 1, 0
      %v557 = vcvt.s32.f32 %v556
      %v558 = vld [vmem:[%s3] sm:$0xff]
      %v559 = vld [vmem:[%s3 + $0x8] sm:$0x1]
      %v560 = vperm.slane %v558, 1
      %v561 = vmul.f32 %v560, 0.0
      %v562 = vmul.f32 %v542, %v560
      %v563 = vmul.f32 %v543, %v560
      %v564 = vmul.f32 %v544, %v560
      %v565 = vmul.f32 %v545, %v560
      %v566 = vmul.f32 %v546, %v560
      %v567 = vmul.f32 %v547, %v560
      %v568 = vmul.f32 %v548, %v560
      %v569 = vrot.slane %v542, 7
      %v570 = vrot.slane %v543, 7
      %v571 = vrot.slane %v544, 7
      %v572 = vrot.slane %v545, 7
      %v573 = vrot.slane %v546, 7
      %v574 = vrot.slane %v547, 7
      %v575 = vrot.slane %v548, 7
      %v576 = vperm.slane %v558, 0
      %v577 = vmul.f32 %v554, %v576
      %v578 = vmul.f32 0.0, %v577
      %v579 = vmul.f32 %v569, %v577
      %v580 = vmul.f32 %v570, %v577
      %v581 = vmul.f32 %v571, %v577
      %v582 = vmul.f32 %v572, %v577
      %v583 = vmul.f32 %v573, %v577
      %v584 = vmul.f32 %v574, %v577
      %v585 = vmul.f32 %v575, %v577
      %v586 = vadd.f32 %v561, %v578
      %v587 = vadd.f32 %v562, %v579
      %v588 = vadd.f32 %v563, %v580
      %v589 = vadd.f32 %v564, %v581
      %v590 = vadd.f32 %v565, %v582
      %v591 = vadd.f32 %v566, %v583
      %v592 = vadd.f32 %v567, %v584
      %v593 = vadd.f32 %v568, %v585
      %v594 = vrot.slane %v542, 1
      %v595 = vrot.slane %v543, 1
      %v596 = vrot.slane %v544, 1
      %v597 = vrot.slane %v545, 1
      %v598 = vrot.slane %v546, 1
      %v599 = vrot.slane %v547, 1
      %v600 = vrot.slane %v548, 1
      %v601 = vperm.slane %v558, 2
      %v602 = vmul.f32 %v557, %v601
      %v603 = vmul.f32 0.0, %v602
      %v604 = vmul.f32 %v594, %v602
      %v605 = vmul.f32 %v595, %v602
      %v606 = vmul.f32 %v596, %v602
      %v607 = vmul.f32 %v597, %v602
      %v608 = vmul.f32 %v598, %v602
      %v609 = vmul.f32 %v599, %v602
      %v610 = vmul.f32 %v600, %v602
      %v611 = vadd.f32 %v586, %v603
      %v612 = vadd.f32 %v587, %v604
      %v613 = vadd.f32 %v588, %v605
      %v614 = vadd.f32 %v589, %v606
      %v615 = vadd.f32 %v590, %v607
      %v616 = vadd.f32 %v591, %v608
      %v617 = vadd.f32 %v592, %v609
      %v618 = vadd.f32 %v593, %v610
      %v619 = vperm.slane %v558, 4
      %v620 = vmul.f32 %v542, %v619
      %v621 = vmul.f32 %v543, %v619
      %v622 = vmul.f32 %v544, %v619
      %v623 = vmul.f32 %v545, %v619
      %v624 = vmul.f32 %v546, %v619
      %v625 = vmul.f32 %v547, %v619
      %v626 = vmul.f32 %v548, %v619
      %v627 = vmul.f32 %v549, %v619
      %v628 = vrot.slane %v549, 7
      %v629 = vperm.slane %v558, 3
      %v630 = vmul.f32 %v554, %v629
      %v631 = vmul.f32 %v569, %v630
      %v632 = vmul.f32 %v570, %v630
      %v633 = vmul.f32 %v571, %v630
      %v634 = vmul.f32 %v572, %v630
      %v635 = vmul.f32 %v573, %v630
      %v636 = vmul.f32 %v574, %v630
      %v637 = vmul.f32 %v575, %v630
      %v638 = vmul.f32 %v628, %v630
      %v639 = vadd.f32 %v620, %v631
      %v640 = vadd.f32 %v621, %v632
      %v641 = vadd.f32 %v622, %v633
      %v642 = vadd.f32 %v623, %v634
      %v643 = vadd.f32 %v624, %v635
      %v644 = vadd.f32 %v625, %v636
      %v645 = vadd.f32 %v626, %v637
      %v646 = vadd.f32 %v627, %v638
      %v647 = vrot.slane %v549, 1
      %v648 = vperm.slane %v558, 5
      %v649 = vmul.f32 %v557, %v648
      %v650 = vmul.f32 %v594, %v649
      %v651 = vmul.f32 %v595, %v649
      %v652 = vmul.f32 %v596, %v649
      %v653 = vmul.f32 %v597, %v649
      %v654 = vmul.f32 %v598, %v649
      %v655 = vmul.f32 %v599, %v649
      %v656 = vmul.f32 %v600, %v649
      %v657 = vmul.f32 %v647, %v649
      %v658 = vadd.f32 %v639, %v650
      %v659 = vadd.f32 %v640, %v651
      %v660 = vadd.f32 %v641, %v652
      %v661 = vadd.f32 %v642, %v653
      %v662 = vadd.f32 %v643, %v654
      %v663 = vadd.f32 %v644, %v655
      %v664 = vadd.f32 %v645, %v656
      %v665 = vadd.f32 %v646, %v657
      %v666 = vadd.f32 %v611, %v658
      %v667 = vadd.f32 %v612, %v659
      %v668 = vadd.f32 %v613, %v660
      %v669 = vadd.f32 %v614, %v661
      %v670 = vadd.f32 %v615, %v662
      %v671 = vadd.f32 %v616, %v663
      %v672 = vadd.f32 %v617, %v664
      %v673 = vadd.f32 %v618, %v665
      %v674 = vperm.slane %v558, 7
      %v675 = vmul.f32 %v543, %v674
      %v676 = vmul.f32 %v544, %v674
      %v677 = vmul.f32 %v545, %v674
      %v678 = vmul.f32 %v546, %v674
      %v679 = vmul.f32 %v547, %v674
      %v680 = vmul.f32 %v548, %v674
      %v681 = vmul.f32 %v549, %v674
      %v682 = vmul.f32 %v674, 0.0
      %v683 = vperm.slane %v558, 6
      %v684 = vmul.f32 %v554, %v683
      %v685 = vmul.f32 %v570, %v684
      %v686 = vmul.f32 %v571, %v684
      %v687 = vmul.f32 %v572, %v684
      %v688 = vmul.f32 %v573, %v684
      %v689 = vmul.f32 %v574, %v684
      %v690 = vmul.f32 %v575, %v684
      %v691 = vmul.f32 %v628, %v684
      %v692 = vmul.f32 0.0, %v684
      %v693 = vadd.f32 %v675, %v685
      %v694 = vadd.f32 %v676, %v686
      %v695 = vadd.f32 %v677, %v687
      %v696 = vadd.f32 %v678, %v688
      %v697 = vadd.f32 %v679, %v689
      %v698 = vadd.f32 %v680, %v690
      %v699 = vadd.f32 %v681, %v691
      %v700 = vadd.f32 %v682, %v692
      %v701 = vperm.slane %v559, 0
      %v702 = vmul.f32 %v557, %v701
      %v703 = vmul.f32 %v595, %v702
      %v704 = vmul.f32 %v596, %v702
      %v705 = vmul.f32 %v597, %v702
      %v706 = vmul.f32 %v598, %v702
      %v707 = vmul.f32 %v599, %v702
      %v708 = vmul.f32 %v600, %v702
      %v709 = vmul.f32 %v647, %v702
      %v710 = vmul.f32 0.0, %v702
      %v711 = vadd.f32 %v693, %v703
      %v712 = vadd.f32 %v694, %v704
      %v713 = vadd.f32 %v695, %v705
      %v714 = vadd.f32 %v696, %v706
      %v715 = vadd.f32 %v697, %v707
      %v716 = vadd.f32 %v698, %v708
      %v717 = vadd.f32 %v699, %v709
      %v718 = vadd.f32 %v700, %v710
      %v719 = vadd.f32 %v666, %v711
      %v720 = vadd.f32 %v667, %v712
      %v721 = vadd.f32 %v668, %v713
      %v722 = vadd.f32 %v669, %v714
      %v723 = vadd.f32 %v670, %v715
      %v724 = vadd.f32 %v671, %v716
      %v725 = vadd.f32 %v672, %v717
      %v726 = vadd.f32 %v673, %v718
      %v727 = vld [vmem:[%s4] sm:$0x1]
      %v729 = vperm.slane %v727, 0
      %v731 = vadd.f32 %v719, %v729
      %v732 = vadd.f32 %v720, %v729
      %v733 = vadd.f32 %v721, %v729
      %v734 = vadd.f32 %v722, %v729
      %v735 = vadd.f32 %v723, %v729
      %v736 = vadd.f32 %v724, %v729
      %v737 = vadd.f32 %v725, %v729
      %v738 = vadd.f32 %v726, %v729
      %v739 = vxor.u32 %v731, 2147483648
      %v740 = vxor.u32 %v732, 2147483648
      %v741 = vxor.u32 %v733, 2147483648
      %v742 = vxor.u32 %v734, 2147483648
      %v743 = vxor.u32 %v735, 2147483648
      %v744 = vxor.u32 %v736, 2147483648
      %v745 = vxor.u32 %v737, 2147483648
      %v746 = vxor.u32 %v738, 2147483648
      %v747 = vmul.f32 %v739, 1.442695
      %v748 = vpow.pop %v747
      %v749 = vmul.f32 %v740, 1.442695
      %v750 = vpow.pop %v749
      %v751 = vmul.f32 %v741, 1.442695
      %v752 = vpow.pop %v751
      %v753 = vmul.f32 %v742, 1.442695
      %v754 = vpow.pop %v753
      %v755 = vmul.f32 %v743, 1.442695
      %v756 = vpow.pop %v755
      %v757 = vmul.f32 %v744, 1.442695
      %v758 = vpow.pop %v757
      %v759 = vmul.f32 %v745, 1.442695
      %v760 = vpow.pop %v759
      %v761 = vmul.f32 %v746, 1.442695
      %v762 = vpow.pop %v761
      %v763 = vadd.f32 %v748, 1.0
      %v764 = vadd.f32 %v750, 1.0
      %v765 = vadd.f32 %v752, 1.0
      %v766 = vadd.f32 %v754, 1.0
      %v767 = vadd.f32 %v756, 1.0
      %v768 = vadd.f32 %v758, 1.0
      %v769 = vadd.f32 %v760, 1.0
      %v770 = vadd.f32 %v762, 1.0
      %v771 = vrcp.pop %v763
      %v772 = vmul.f32 %v763, %v771
      %v773 = vsub.f32 1.0, %v772
      %v774 = vmul.f32 %v771, %v773
      %v775 = vadd.f32 %v771, %v774
      %vm776 = vweird.f32 %v763
      %vm777 = vweird.f32 %v771
      %vm778 = vmor %vm776, %vm777
      %v779 = vsel %vm778, %v771, %v775
      %v780 = vand.u32 2147483647, %v763
      %vm781 = vcmp.eq.f32.partialorder %v780, 8.507059e+37
      %v782 = vand.u32 %v763, 2147483648
      %v783 = vor.u32 1.1754944e-38, %v782
      %v784 = vsel %vm781, %v783, %v779
      %v785 = vmul.f32 1.0, %v784
      %v786 = vrcp.pop %v764
      %v787 = vmul.f32 %v764, %v786
      %v788 = vsub.f32 1.0, %v787
      %v789 = vmul.f32 %v786, %v788
      %v790 = vadd.f32 %v786, %v789
      %vm791 = vweird.f32 %v764
      %vm792 = vweird.f32 %v786
      %vm793 = vmor %vm791, %vm792
      %v794 = vsel %vm793, %v786, %v790
      %v795 = vand.u32 2147483647, %v764
      %vm796 = vcmp.eq.f32.partialorder %v795, 8.507059e+37
      %v797 = vand.u32 %v764, 2147483648
      %v798 = vor.u32 1.1754944e-38, %v797
      %v799 = vsel %vm796, %v798, %v794
      %v800 = vmul.f32 1.0, %v799
      %v801 = vrcp.pop %v765
      %v802 = vmul.f32 %v765, %v801
      %v803 = vsub.f32 1.0, %v802
      %v804 = vmul.f32 %v801, %v803
      %v805 = vadd.f32 %v801, %v804
      %vm806 = vweird.f32 %v765
      %vm807 = vweird.f32 %v801
      %vm808 = vmor %vm806, %vm807
      %v809 = vsel %vm808, %v801, %v805
      %v810 = vand.u32 2147483647, %v765
      %vm811 = vcmp.eq.f32.partialorder %v810, 8.507059e+37
      %v812 = vand.u32 %v765, 2147483648
      %v813 = vor.u32 1.1754944e-38, %v812
      %v814 = vsel %vm811, %v813, %v809
      %v815 = vmul.f32 1.0, %v814
      %v816 = vrcp.pop %v766
      %v817 = vmul.f32 %v766, %v816
      %v818 = vsub.f32 1.0, %v817
      %v819 = vmul.f32 %v816, %v818
      %v820 = vadd.f32 %v816, %v819
      %vm821 = vweird.f32 %v766
      %vm822 = vweird.f32 %v816
      %vm823 = vmor %vm821, %vm822
      %v824 = vsel %vm823, %v816, %v820
      %v825 = vand.u32 2147483647, %v766
      %vm826 = vcmp.eq.f32.partialorder %v825, 8.507059e+37
      %v827 = vand.u32 %v766, 2147483648
      %v828 = vor.u32 1.1754944e-38, %v827
      %v829 = vsel %vm826, %v828, %v824
      %v830 = vmul.f32 1.0, %v829
      %v831 = vrcp.pop %v767
      %v832 = vmul.f32 %v767, %v831
      %v833 = vsub.f32 1.0, %v832
      %v834 = vmul.f32 %v831, %v833
      %v835 = vadd.f32 %v831, %v834
      %vm836 = vweird.f32 %v767
      %vm837 = vweird.f32 %v831
      %vm838 = vmor %vm836, %vm837
      %v839 = vsel %vm838, %v831, %v835
      %v840 = vand.u32 2147483647, %v767
      %vm841 = vcmp.eq.f32.partialorder %v840, 8.507059e+37
      %v842 = vand.u32 %v767, 2147483648
      %v843 = vor.u32 1.1754944e-38, %v842
      %v844 = vsel %vm841, %v843, %v839
      %v845 = vmul.f32 1.0, %v844
      %v846 = vrcp.pop %v768
      %v847 = vmul.f32 %v768, %v846
      %v848 = vsub.f32 1.0, %v847
      %v849 = vmul.f32 %v846, %v848
      %v850 = vadd.f32 %v846, %v849
      %vm851 = vweird.f32 %v768
      %vm852 = vweird.f32 %v846
      %vm853 = vmor %vm851, %vm852
      %v854 = vsel %vm853, %v846, %v850
      %v855 = vand.u32 2147483647, %v768
      %vm856 = vcmp.eq.f32.partialorder %v855, 8.507059e+37
      %v857 = vand.u32 %v768, 2147483648
      %v858 = vor.u32 1.1754944e-38, %v857
      %v859 = vsel %vm856, %v858, %v854
      %v860 = vmul.f32 1.0, %v859
      %v861 = vrcp.pop %v769
      %v862 = vmul.f32 %v769, %v861
      %v863 = vsub.f32 1.0, %v862
      %v864 = vmul.f32 %v861, %v863
      %v865 = vadd.f32 %v861, %v864
      %vm866 = vweird.f32 %v769
      %vm867 = vweird.f32 %v861
      %vm868 = vmor %vm866, %vm867
      %v869 = vsel %vm868, %v861, %v865
      %v870 = vand.u32 2147483647, %v769
      %vm871 = vcmp.eq.f32.partialorder %v870, 8.507059e+37
      %v872 = vand.u32 %v769, 2147483648
      %v873 = vor.u32 1.1754944e-38, %v872
      %v874 = vsel %vm871, %v873, %v869
      %v875 = vmul.f32 1.0, %v874
      %v876 = vrcp.pop %v770
      %v877 = vmul.f32 %v770, %v876
      %v878 = vsub.f32 1.0, %v877
      %v879 = vmul.f32 %v876, %v878
      %v880 = vadd.f32 %v876, %v879
      %vm881 = vweird.f32 %v770
      %vm882 = vweird.f32 %v876
      %vm883 = vmor %vm881, %vm882
      %v884 = vsel %vm883, %v876, %v880
      %v885 = vand.u32 2147483647, %v770
      %vm886 = vcmp.eq.f32.partialorder %v885, 8.507059e+37
      %v887 = vand.u32 %v770, 2147483648
      %v888 = vor.u32 1.1754944e-38, %v887
      %v889 = vsel %vm886, %v888, %v884
      %v890 = vmul.f32 1.0, %v889
      %v891 = vmul.f32 %v731, %v785
      %v892 = vmul.f32 %v732, %v800
      %v893 = vmul.f32 %v733, %v815
      %v894 = vmul.f32 %v734, %v830
      %v895 = vmul.f32 %v735, %v845
      %v896 = vmul.f32 %v736, %v860
      %v897 = vmul.f32 %v737, %v875
      %v898 = vmul.f32 %v738, %v890
      %v899 = vpack.c.bf16 %v891, %v891
      %v900 = vpack.c.bf16 %v892, %v892
      %v901 = vpack.c.bf16 %v893, %v893
      %v902 = vpack.c.bf16 %v894, %v894
      %v903 = vpack.c.bf16 %v895, %v895
      %v904 = vpack.c.bf16 %v896, %v896
      %v905 = vpack.c.bf16 %v897, %v897
      %v906 = vpack.c.bf16 %v898, %v898
      %907 = vst [vmem:[%s257] sm:$0xf] %v899
      %908 = vst [vmem:[%s257 + $0x4] sm:$0xf] %v900
      %909 = vst [vmem:[%s257 + $0x8] sm:$0xf] %v901
      %910 = vst [vmem:[%s257 + $0xc] sm:$0xf] %v902
      %911 = vst [vmem:[%s257 + $0x10] sm:$0xf] %v903
      %912 = vst [vmem:[%s257 + $0x14] sm:$0xf] %v904
      %913 = vst [vmem:[%s257 + $0x18] sm:$0xf] %v905
      %914 = vst [vmem:[%s257 + $0x1c] sm:$0xf] %v906
      %v915 = vadd.f32 %v891, %v892
      %v916 = vadd.f32 %v915, %v893
      %v917 = vadd.f32 %v916, %v894
      %v918 = vadd.f32 %v917, %v895
      %v919 = vadd.f32 %v918, %v896
      %v920 = vadd.f32 %v919, %v897
      %v921 = vadd.f32 %v920, %v898
      %v922 = vrot.slane %v921, 4
      %v923 = vadd.f32 %v921, %v922
      %v924 = vrot.slane %v923, 2
      %v925 = vadd.f32 %v923, %v924
      %v926 = vrot.slane %v925, 1
      %v927 = vadd.f32 %v925, %v926
      %v928 = vmul.f32 %v927, 0.015625
      %929 = vst [vmem:[%s260] sm:$0x1] %v928
      %p930 = scmp.lt.s32.totalorder %s18, 1
      %s931 = scalar_select %p930, %s18, 1
      %s932 = smul.addr %s931, 8
      %s933 = smul.addr %s932, 4
      %s934 = scalar_lea.vmem %s5, %s933
      %p935 = scmp.lt.s32.totalorder %s18, 1
      %s936 = scalar_select %p935, %s18, 1
      %s937 = scalar_lea.vmem %s6, %s936
      // Predicated region
      $region41: #{efficientnet_b7_forward.7} parent=39 // pred_check
        %p938 = pneg %p146
      $region42: #{efficientnet_b7_forward.7} parent=39 // pred_check_branch
        %940 = sbr.rel (%p938) target = $region44
      $region43: #{efficientnet_b7_forward.7} parent=39 // pred_region
        _
      $region44: #{efficientnet_b7_forward.7} parent=39 // pred_fallthru
        _
      // Predicated region
      $region45: #{efficientnet_b7_forward.7} parent=39 // pred_check
        %p941 = pneg %p172
      $region46: #{efficientnet_b7_forward.7} parent=39 // pred_check_branch
        %943 = sbr.rel (%p941) target = $region48
      $region47: #{efficientnet_b7_forward.7} parent=39 // pred_region
        _
      $region48: #{efficientnet_b7_forward.7} parent=39 // pred_fallthru
        _
    $region40: #{efficientnet_b7_forward.7} parent=5 // pred_fallthru
      _
    %p944 = scmp.le.s32.totalorder 2, %s13
    // Predicated region
    $region49: #{efficientnet_b7_forward.7} parent=5 // pred_check
      %p945 = pneg %p944
    $region50: #{efficientnet_b7_forward.7} parent=5 // pred_check_branch
      %947 = sbr.rel (%p945) target = $region52
    $region51: #{efficientnet_b7_forward.7} parent=5 // pred_region
      %s948 = ssub.s32 %s13, 2
      // Predicated region
      $region53: #{efficientnet_b7_forward.7} parent=51 // pred_check
        %p949 = pneg %p152
      $region54: #{efficientnet_b7_forward.7} parent=51 // pred_check_branch
        %951 = sbr.rel (%p949) target = $region56
      $region55: #{efficientnet_b7_forward.7} parent=51 // pred_region
        %p952 = scmp.lt.s32.totalorder %s19, 1
        %s953 = scalar_select %p952, %s19, 1
        %s954 = smul.addr %s953, 8
        %s955 = smul.addr %s954, 4
        %s956 = scalar_lea.vmem %s5, %s955
      $region56: #{efficientnet_b7_forward.7} parent=51 // pred_fallthru
        _
      // Predicated region
      $region57: #{efficientnet_b7_forward.7} parent=51 // pred_check
        %p957 = pneg %p178
      $region58: #{efficientnet_b7_forward.7} parent=51 // pred_check_branch
        %959 = sbr.rel (%p957) target = $region60
      $region59: #{efficientnet_b7_forward.7} parent=51 // pred_region
        %p960 = scmp.lt.s32.totalorder %s19, 1
        %s961 = scalar_select %p960, %s19, 1
        %s962 = scalar_lea.vmem %s6, %s961
      $region60: #{efficientnet_b7_forward.7} parent=51 // pred_fallthru
        _
    $region52: #{efficientnet_b7_forward.7} parent=5 // pred_fallthru
      _
  $region6: #{efficientnet_b7_forward.7} parent=0 // loop_footer
    %s17 = sadd.s32 1, %s13
  $region7: #{efficientnet_b7_forward.7} parent=0 // loop_footer_branch
    %12 = sbr.rel target = $region3
  $region8: #{efficientnet_b7_forward.7} parent=0 // loop_exit
    _

// kernel: efficientnet_b7_forward.8
$region0: #{efficientnet_b7_forward.8}
  #allocation0 [shape = 'u32[]', space=smem, size = 0x4, offset = 0x4, fixed_abs, tag = 'smem constant byte address 0x4 - core index']
  #allocation1 [shape = 'u32[72,128]{1,0:T(1,128)}', space=vmem, size = 0x9000, scoped, tag = 'internal scratch']
  %s0 = inlined_call_operand.vmem [shape: bf16[2,64,128], index: 0, kind: input, shape index: {}]
  %s1 = inlined_call_operand.vmem [shape: f32[2,1,128], index: 1, kind: input, shape index: {}]
  %s2 = inlined_call_operand.vmem [shape: f32[128,8], index: 2, kind: input, shape index: {}]
  %s3 = inlined_call_operand.vmem [shape: f32[1,8], index: 3, kind: input, shape index: {}]
  %s4 = inlined_call_operand.vmem [shape: f32[8,128], index: 4, kind: input, shape index: {}]
  %s5 = inlined_call_operand.vmem [shape: f32[1,128], index: 5, kind: input, shape index: {}]
  %s6 = inlined_call_operand.vmem [shape: bf16[128,128], index: 6, kind: input, shape index: {}]
  %s7 = inlined_call_operand.vmem [shape: f32[1,128], index: 7, kind: input, shape index: {}]
  %s8 = inlined_call_operand.vmem [shape: bf16[2,64,128], index: 8, kind: input, shape index: {}]
  %s9 = inlined_call_operand.vmem [shape: bf16[2,64,128], index: 9, kind: output, shape index: {}]
  %s10 = sld [smem:[#allocation0]]
  $region69: #{efficientnet_b7_forward.8} parent=0
    _
  %s12 = ssub.s32 1, %s10
  %s13 = scalar_select 0, %s12, %s10
  loop: start=0, step=1, limit=4
  $region2: #{efficientnet_b7_forward.8} parent=0 // loop_pre_header
    _
  $region3: #{efficientnet_b7_forward.8} parent=0 // loop_header
    %s15 = sphi 0, %s19
    %p16 = scmp.ge.s32.totalorder %s15, 4
    %s25 = sphi 0, %s27
    %s28 = sphi 0, %s25
    %s29 = sphi 0, %s28
    %s45 = sphi 0, %s29
    %s51 = sphi 0, %s53
    %s54 = sphi 0, %s51
    %s55 = sphi 0, %s54
    %s71 = sphi 0, %s55
    %s75 = sphi 0, %s75
    %s77 = sphi 0, %s75
    %s78 = sphi 0, %s77
    %s92 = sphi 0, %s78
    %s96 = sphi 0, %s96
    %s98 = sphi 0, %s96
    %s99 = sphi 0, %s98
    %s113 = sphi 0, %s99
    %s117 = sphi 0, %s117
    %s119 = sphi 0, %s117
    %s120 = sphi 0, %s119
    %s134 = sphi 0, %s120
    %s138 = sphi 0, %s138
    %s140 = sphi 0, %s138
    %s141 = sphi 0, %s140
    %s155 = sphi 0, %s141
    %s159 = sphi 0, %s159
    %s161 = sphi 0, %s159
    %s162 = sphi 0, %s161
    %s176 = sphi 0, %s162
    %s180 = sphi 0, %s180
    %s182 = sphi 0, %s180
    %s183 = sphi 0, %s182
    %s197 = sphi 0, %s183
    %s203 = sphi 0, %s205
    %s206 = sphi 0, %s203
    %s207 = sphi 0, %s206
    %s223 = sphi 0, %s207
    %s229 = sphi 0, %s231
    %s232 = sphi 0, %s229
    %s233 = sphi 0, %s232
    %s249 = sphi 0, %s233
  $region4: #{efficientnet_b7_forward.8} parent=0 // loop_header_branch
    %18 = sbr.rel (%p16) target = $region8
  $region5: #{efficientnet_b7_forward.8} parent=0 // loop_body
    %s20 = ssub.s32 %s15, 1
    %s21 = ssub.s32 %s15, 2
    %s22 = sadd.s32 %s15, 1
    %s23 = ssub.s32 %s15, %s22
    %p24 = scmp.eq.s32.totalorder %s23, 0
    %s26 = sadd.s32 %s25, 1
    %s27 = scalar_select %p24, %s25, %s26
    %p30 = pneg %p24
    %p31 = scmp.eq.s32.totalorder %s15, 1
    %p32 = por %p30, %p31
    %p33 = scmp.ne.s32.totalorder %s25, %s28
    %p34 = scmp.eq.s32.totalorder %s15, 0
    %p35 = por %p33, %p34
    %p36 = scmp.ne.s32.totalorder %s25, %s28
    %p37 = scmp.eq.s32.totalorder %s20, 1
    %p38 = por %p36, %p37
    %p39 = scmp.ne.s32.totalorder %s28, %s29
    %p40 = scmp.eq.s32.totalorder %s20, 0
    %p41 = por %p39, %p40
    %p42 = scmp.ne.s32.totalorder %s28, %s29
    %p43 = scmp.eq.s32.totalorder %s21, 1
    %p44 = por %p42, %p43
    %p46 = scmp.ne.s32.totalorder %s29, %s45
    %p47 = scmp.eq.s32.totalorder %s21, 0
    %p48 = por %p46, %p47
    %s49 = ssub.s32 %s15, %s22
    %p50 = scmp.eq.s32.totalorder %s49, 0
    %s52 = sadd.s32 %s51, 1
    %s53 = scalar_select %p50, %s51, %s52
    %p56 = pneg %p50
    %p57 = scmp.eq.s32.totalorder %s15, 1
    %p58 = por %p56, %p57
    %p59 = scmp.ne.s32.totalorder %s51, %s54
    %p60 = scmp.eq.s32.totalorder %s15, 0
    %p61 = por %p59, %p60
    %p62 = scmp.ne.s32.totalorder %s51, %s54
    %p63 = scmp.eq.s32.totalorder %s20, 1
    %p64 = por %p62, %p63
    %p65 = scmp.ne.s32.totalorder %s54, %s55
    %p66 = scmp.eq.s32.totalorder %s20, 0
    %p67 = por %p65, %p66
    %p68 = scmp.ne.s32.totalorder %s54, %s55
    %p69 = scmp.eq.s32.totalorder %s21, 1
    %p70 = por %p68, %p69
    %p72 = scmp.ne.s32.totalorder %s55, %s71
    %p73 = scmp.eq.s32.totalorder %s21, 0
    %p74 = por %p72, %p73
    %s76 = sadd.s32 %s75, 1
    %p79 = scmp.eq.s32.totalorder %s15, 1
    %p80 = scmp.ne.s32.totalorder %s75, %s77
    %p81 = scmp.eq.s32.totalorder %s15, 0
    %p82 = por %p80, %p81
    %p83 = scmp.ne.s32.totalorder %s75, %s77
    %p84 = scmp.eq.s32.totalorder %s20, 1
    %p85 = por %p83, %p84
    %p86 = scmp.ne.s32.totalorder %s77, %s78
    %p87 = scmp.eq.s32.totalorder %s20, 0
    %p88 = por %p86, %p87
    %p89 = scmp.ne.s32.totalorder %s77, %s78
    %p90 = scmp.eq.s32.totalorder %s21, 1
    %p91 = por %p89, %p90
    %p93 = scmp.ne.s32.totalorder %s78, %s92
    %p94 = scmp.eq.s32.totalorder %s21, 0
    %p95 = por %p93, %p94
    %s97 = sadd.s32 %s96, 1
    %p100 = scmp.eq.s32.totalorder %s15, 1
    %p101 = scmp.ne.s32.totalorder %s96, %s98
    %p102 = scmp.eq.s32.totalorder %s15, 0
    %p103 = por %p101, %p102
    %p104 = scmp.ne.s32.totalorder %s96, %s98
    %p105 = scmp.eq.s32.totalorder %s20, 1
    %p106 = por %p104, %p105
    %p107 = scmp.ne.s32.totalorder %s98, %s99
    %p108 = scmp.eq.s32.totalorder %s20, 0
    %p109 = por %p107, %p108
    %p110 = scmp.ne.s32.totalorder %s98, %s99
    %p111 = scmp.eq.s32.totalorder %s21, 1
    %p112 = por %p110, %p111
    %p114 = scmp.ne.s32.totalorder %s99, %s113
    %p115 = scmp.eq.s32.totalorder %s21, 0
    %p116 = por %p114, %p115
    %s118 = sadd.s32 %s117, 1
    %p121 = scmp.eq.s32.totalorder %s15, 1
    %p122 = scmp.ne.s32.totalorder %s117, %s119
    %p123 = scmp.eq.s32.totalorder %s15, 0
    %p124 = por %p122, %p123
    %p125 = scmp.ne.s32.totalorder %s117, %s119
    %p126 = scmp.eq.s32.totalorder %s20, 1
    %p127 = por %p125, %p126
    %p128 = scmp.ne.s32.totalorder %s119, %s120
    %p129 = scmp.eq.s32.totalorder %s20, 0
    %p130 = por %p128, %p129
    %p131 = scmp.ne.s32.totalorder %s119, %s120
    %p132 = scmp.eq.s32.totalorder %s21, 1
    %p133 = por %p131, %p132
    %p135 = scmp.ne.s32.totalorder %s120, %s134
    %p136 = scmp.eq.s32.totalorder %s21, 0
    %p137 = por %p135, %p136
    %s139 = sadd.s32 %s138, 1
    %p142 = scmp.eq.s32.totalorder %s15, 1
    %p143 = scmp.ne.s32.totalorder %s138, %s140
    %p144 = scmp.eq.s32.totalorder %s15, 0
    %p145 = por %p143, %p144
    %p146 = scmp.ne.s32.totalorder %s138, %s140
    %p147 = scmp.eq.s32.totalorder %s20, 1
    %p148 = por %p146, %p147
    %p149 = scmp.ne.s32.totalorder %s140, %s141
    %p150 = scmp.eq.s32.totalorder %s20, 0
    %p151 = por %p149, %p150
    %p152 = scmp.ne.s32.totalorder %s140, %s141
    %p153 = scmp.eq.s32.totalorder %s21, 1
    %p154 = por %p152, %p153
    %p156 = scmp.ne.s32.totalorder %s141, %s155
    %p157 = scmp.eq.s32.totalorder %s21, 0
    %p158 = por %p156, %p157
    %s160 = sadd.s32 %s159, 1
    %p163 = scmp.eq.s32.totalorder %s15, 1
    %p164 = scmp.ne.s32.totalorder %s159, %s161
    %p165 = scmp.eq.s32.totalorder %s15, 0
    %p166 = por %p164, %p165
    %p167 = scmp.ne.s32.totalorder %s159, %s161
    %p168 = scmp.eq.s32.totalorder %s20, 1
    %p169 = por %p167, %p168
    %p170 = scmp.ne.s32.totalorder %s161, %s162
    %p171 = scmp.eq.s32.totalorder %s20, 0
    %p172 = por %p170, %p171
    %p173 = scmp.ne.s32.totalorder %s161, %s162
    %p174 = scmp.eq.s32.totalorder %s21, 1
    %p175 = por %p173, %p174
    %p177 = scmp.ne.s32.totalorder %s162, %s176
    %p178 = scmp.eq.s32.totalorder %s21, 0
    %p179 = por %p177, %p178
    %s181 = sadd.s32 %s180, 1
    %p184 = scmp.eq.s32.totalorder %s15, 1
    %p185 = scmp.ne.s32.totalorder %s180, %s182
    %p186 = scmp.eq.s32.totalorder %s15, 0
    %p187 = por %p185, %p186
    %p188 = scmp.ne.s32.totalorder %s180, %s182
    %p189 = scmp.eq.s32.totalorder %s20, 1
    %p190 = por %p188, %p189
    %p191 = scmp.ne.s32.totalorder %s182, %s183
    %p192 = scmp.eq.s32.totalorder %s20, 0
    %p193 = por %p191, %p192
    %p194 = scmp.ne.s32.totalorder %s182, %s183
    %p195 = scmp.eq.s32.totalorder %s21, 1
    %p196 = por %p194, %p195
    %p198 = scmp.ne.s32.totalorder %s183, %s197
    %p199 = scmp.eq.s32.totalorder %s21, 0
    %p200 = por %p198, %p199
    %s201 = ssub.s32 %s15, %s22
    %p202 = scmp.eq.s32.totalorder %s201, 0
    %s204 = sadd.s32 %s203, 1
    %s205 = scalar_select %p202, %s203, %s204
    %p208 = pneg %p202
    %p209 = scmp.eq.s32.totalorder %s15, 1
    %p210 = por %p208, %p209
    %p211 = scmp.ne.s32.totalorder %s203, %s206
    %p212 = scmp.eq.s32.totalorder %s15, 0
    %p213 = por %p211, %p212
    %p214 = scmp.ne.s32.totalorder %s203, %s206
    %p215 = scmp.eq.s32.totalorder %s20, 1
    %p216 = por %p214, %p215
    %p217 = scmp.ne.s32.totalorder %s206, %s207
    %p218 = scmp.eq.s32.totalorder %s20, 0
    %p219 = por %p217, %p218
    %p220 = scmp.ne.s32.totalorder %s206, %s207
    %p221 = scmp.eq.s32.totalorder %s21, 1
    %p222 = por %p220, %p221
    %p224 = scmp.ne.s32.totalorder %s207, %s223
    %p225 = scmp.eq.s32.totalorder %s21, 0
    %p226 = por %p224, %p225
    %s227 = ssub.s32 %s15, %s22
    %p228 = scmp.eq.s32.totalorder %s227, 0
    %s230 = sadd.s32 %s229, 1
    %s231 = scalar_select %p228, %s229, %s230
    %p234 = pneg %p228
    %p235 = scmp.eq.s32.totalorder %s15, 1
    %p236 = por %p234, %p235
    %p237 = scmp.ne.s32.totalorder %s229, %s232
    %p238 = scmp.eq.s32.totalorder %s15, 0
    %p239 = por %p237, %p238
    %p240 = scmp.ne.s32.totalorder %s229, %s232
    %p241 = scmp.eq.s32.totalorder %s20, 1
    %p242 = por %p240, %p241
    %p243 = scmp.ne.s32.totalorder %s232, %s233
    %p244 = scmp.eq.s32.totalorder %s20, 0
    %p245 = por %p243, %p244
    %p246 = scmp.ne.s32.totalorder %s232, %s233
    %p247 = scmp.eq.s32.totalorder %s21, 1
    %p248 = por %p246, %p247
    %p250 = scmp.ne.s32.totalorder %s233, %s249
    %p251 = scmp.eq.s32.totalorder %s21, 0
    %p252 = por %p250, %p251
    %p253 = scmp.le.s32.totalorder 1, %s15
    %p254 = scmp.lt.s32.totalorder %s15, 3
    %p255 = pnand %p253, %p254
    %p256 = pneg %p255
    // Predicated region
    $region9: #{efficientnet_b7_forward.8} parent=5 // pred_check
      _
    $region10: #{efficientnet_b7_forward.8} parent=5 // pred_check_branch
      %258 = sbr.rel (%p255) target = $region12
    $region11: #{efficientnet_b7_forward.8} parent=5 // pred_region
      %s259 = ssub.s32 %s15, 1
      // Predicated region
      $region13: #{efficientnet_b7_forward.8} parent=11 // pred_check
        %p260 = pneg %p88
      $region14: #{efficientnet_b7_forward.8} parent=11 // pred_check_branch
        %262 = sbr.rel (%p260) target = $region16
      $region15: #{efficientnet_b7_forward.8} parent=11 // pred_region
        _
      $region16: #{efficientnet_b7_forward.8} parent=11 // pred_fallthru
        _
      // Predicated region
      $region17: #{efficientnet_b7_forward.8} parent=11 // pred_check
        %p263 = pneg %p109
      $region18: #{efficientnet_b7_forward.8} parent=11 // pred_check_branch
        %265 = sbr.rel (%p263) target = $region20
      $region19: #{efficientnet_b7_forward.8} parent=11 // pred_region
        _
      $region20: #{efficientnet_b7_forward.8} parent=11 // pred_fallthru
        _
      // Predicated region
      $region21: #{efficientnet_b7_forward.8} parent=11 // pred_check
        %p266 = pneg %p130
      $region22: #{efficientnet_b7_forward.8} parent=11 // pred_check_branch
        %268 = sbr.rel (%p266) target = $region24
      $region23: #{efficientnet_b7_forward.8} parent=11 // pred_region
        _
      $region24: #{efficientnet_b7_forward.8} parent=11 // pred_fallthru
        _
      // Predicated region
      $region25: #{efficientnet_b7_forward.8} parent=11 // pred_check
        %p269 = pneg %p151
      $region26: #{efficientnet_b7_forward.8} parent=11 // pred_check_branch
        %271 = sbr.rel (%p269) target = $region28
      $region27: #{efficientnet_b7_forward.8} parent=11 // pred_region
        _
      $region28: #{efficientnet_b7_forward.8} parent=11 // pred_fallthru
        _
      // Predicated region
      $region29: #{efficientnet_b7_forward.8} parent=11 // pred_check
        %p272 = pneg %p172
      $region30: #{efficientnet_b7_forward.8} parent=11 // pred_check_branch
        %274 = sbr.rel (%p272) target = $region32
      $region31: #{efficientnet_b7_forward.8} parent=11 // pred_region
        _
      $region32: #{efficientnet_b7_forward.8} parent=11 // pred_fallthru
        _
      // Predicated region
      $region33: #{efficientnet_b7_forward.8} parent=11 // pred_check
        %p275 = pneg %p193
      $region34: #{efficientnet_b7_forward.8} parent=11 // pred_check_branch
        %277 = sbr.rel (%p275) target = $region36
      $region35: #{efficientnet_b7_forward.8} parent=11 // pred_region
        _
      $region36: #{efficientnet_b7_forward.8} parent=11 // pred_fallthru
        _
    $region12: #{efficientnet_b7_forward.8} parent=5 // pred_fallthru
      _
    %p278 = scmp.lt.s32.totalorder %s15, 2
    // Predicated region
    $region37: #{efficientnet_b7_forward.8} parent=5 // pred_check
      %p279 = pneg %p278
    $region38: #{efficientnet_b7_forward.8} parent=5 // pred_check_branch
      %281 = sbr.rel (%p279) target = $region40
    $region39: #{efficientnet_b7_forward.8} parent=5 // pred_region
      // Predicated region
      $region41: #{efficientnet_b7_forward.8} parent=39 // pred_check
        %p282 = pneg %p35
      $region42: #{efficientnet_b7_forward.8} parent=39 // pred_check_branch
        %284 = sbr.rel (%p282) target = $region44
      $region43: #{efficientnet_b7_forward.8} parent=39 // pred_region
        %p285 = scmp.lt.s32.totalorder %s15, 1
        %s286 = scalar_select %p285, %s15, 1
        %s287 = smul.addr %s286, 8
        %s288 = smul.addr %s287, 4
        %s289 = scalar_lea.vmem %s0, %s288
      $region44: #{efficientnet_b7_forward.8} parent=39 // pred_fallthru
        _
      // Predicated region
      $region45: #{efficientnet_b7_forward.8} parent=39 // pred_check
        %p290 = pneg %p61
      $region46: #{efficientnet_b7_forward.8} parent=39 // pred_check_branch
        %292 = sbr.rel (%p290) target = $region48
      $region47: #{efficientnet_b7_forward.8} parent=39 // pred_region
        %p293 = scmp.lt.s32.totalorder %s15, 1
        %s294 = scalar_select %p293, %s15, 1
        %s295 = scalar_lea.vmem %s1, %s294
      $region48: #{efficientnet_b7_forward.8} parent=39 // pred_fallthru
        _
      // Predicated region
      $region49: #{efficientnet_b7_forward.8} parent=39 // pred_check
        %p296 = pneg %p213
      $region50: #{efficientnet_b7_forward.8} parent=39 // pred_check_branch
        %298 = sbr.rel (%p296) target = $region52
      $region51: #{efficientnet_b7_forward.8} parent=39 // pred_region
        %p299 = scmp.lt.s32.totalorder %s15, 1
        %s300 = scalar_select %p299, %s15, 1
        %s301 = smul.addr %s300, 8
        %s302 = smul.addr %s301, 4
        %s303 = scalar_lea.vmem %s8, %s302
      $region52: #{efficientnet_b7_forward.8} parent=39 // pred_fallthru
        _
    $region40: #{efficientnet_b7_forward.8} parent=5 // pred_fallthru
      _
    %p304 = scmp.le.s32.totalorder 1, %s15
    %p305 = scmp.lt.s32.totalorder %s15, 3
    %p306 = pnand %p304, %p305
    %p307 = pneg %p306
    // Predicated region
    $region53: #{efficientnet_b7_forward.8} parent=5 // pred_check
      _
    $region54: #{efficientnet_b7_forward.8} parent=5 // pred_check_branch
      %309 = sbr.rel (%p306) target = $region56
    $region55: #{efficientnet_b7_forward.8} parent=5 // pred_region
      %s310 = ssub.s32 %s15, 1
      %p311 = scmp.lt.s32.totalorder %s20, 1
      %s312 = scalar_select %p311, %s20, 1
      %s313 = smul.addr %s312, 8
      %s314 = smul.addr %s313, 4
      %s315 = scalar_lea.vmem %s0, %s314
      %p316 = pneg %p41
      %p317 = pneg %p38
      %p318 = scmp.lt.s32.totalorder %s20, 1
      %s319 = scalar_select %p318, %s20, 1
      %s320 = scalar_lea.vmem %s1, %s319
      %p321 = pneg %p67
      %p322 = pneg %p64
      %p323 = pneg %p88
      %p324 = pneg %p85
      %p325 = pneg %p109
      %p326 = pneg %p106
      %p327 = pneg %p130
      %p328 = pneg %p127
      %p329 = pneg %p151
      %p330 = pneg %p148
      %p331 = pneg %p172
      %p332 = pneg %p169
      %p333 = pneg %p193
      %p334 = pneg %p190
      %p335 = scmp.lt.s32.totalorder %s20, 1
      %s336 = scalar_select %p335, %s20, 1
      %s337 = smul.addr %s336, 8
      %s338 = smul.addr %s337, 4
      %s339 = scalar_lea.vmem %s8, %s338
      %p340 = pneg %p219
      %p341 = pneg %p216
      %p342 = pneg %p245
      %p343 = pneg %p242
      %p344 = scmp.lt.s32.totalorder %s20, 1
      %s345 = scalar_select %p344, %s20, 1
      %s346 = smul.addr %s345, 8
      %s347 = smul.addr %s346, 4
      %s348 = scalar_lea.vmem %s9, %s347
      %p349 = scmp.lt.s32.totalorder %s20, 1
      %s350 = scalar_select %p349, %s20, 1
      %s351 = smul.addr %s350, 8
      %s352 = smul.addr %s351, 4
      %s353 = scalar_lea.vmem %s0, %s352
      %p354 = scmp.lt.s32.totalorder %s20, 1
      %s355 = scalar_select %p354, %s20, 1
      %s356 = scalar_lea.vmem %s1, %s355
      %p357 = scmp.lt.s32.totalorder %s20, 1
      %s358 = scalar_select %p357, %s20, 1
      %s359 = smul.addr %s358, 8
      %s360 = smul.addr %s359, 4
      %s361 = scalar_lea.vmem %s8, %s360
      %p362 = scmp.lt.s32.totalorder %s20, 1
      %s363 = scalar_select %p362, %s20, 1
      %s364 = smul.addr %s363, 8
      %s365 = smul.addr %s364, 4
      %s366 = scalar_lea.vmem %s9, %s365
      %v367 = vld [vmem:[%s353] sm:$0xf]
      %v368 = vld [vmem:[%s353 + $0x4] sm:$0xf]
      %v369 = vld [vmem:[%s353 + $0x8] sm:$0xf]
      %v370 = vld [vmem:[%s353 + $0xc] sm:$0xf]
      %v371 = vld [vmem:[%s353 + $0x10] sm:$0xf]
      %v372 = vld [vmem:[%s353 + $0x14] sm:$0xf]
      %v373 = vld [vmem:[%s353 + $0x18] sm:$0xf]
      %v374 = vld [vmem:[%s353 + $0x1c] sm:$0xf]
      %v375 = vunpack.c.l.bf16 %v367
      %v376 = vunpack.c.l.bf16 %v368
      %v377 = vunpack.c.l.bf16 %v369
      %v378 = vunpack.c.l.bf16 %v370
      %v379 = vunpack.c.l.bf16 %v371
      %v380 = vunpack.c.l.bf16 %v372
      %v381 = vunpack.c.l.bf16 %v373
      %v382 = vunpack.c.l.bf16 %v374
      %v383 = vld [vmem:[%s356] sm:$0x1]
      %v384 = vld [vmem:[%s2] sm:$0xff]
      %v385 = vld [vmem:[%s2 + $0x8] sm:$0xff]
      %v386 = vld [vmem:[%s2 + $0x10] sm:$0xff]
      %v387 = vld [vmem:[%s2 + $0x18] sm:$0xff]
      %v388 = vld [vmem:[%s2 + $0x20] sm:$0xff]
      %v389 = vld [vmem:[%s2 + $0x28] sm:$0xff]
      %v390 = vld [vmem:[%s2 + $0x30] sm:$0xff]
      %v391 = vld [vmem:[%s2 + $0x38] sm:$0xff]
      %v392 = vld [vmem:[%s2 + $0x40] sm:$0xff]
      %v393 = vld [vmem:[%s2 + $0x48] sm:$0xff]
      %v394 = vld [vmem:[%s2 + $0x50] sm:$0xff]
      %v395 = vld [vmem:[%s2 + $0x58] sm:$0xff]
      %v396 = vld [vmem:[%s2 + $0x60] sm:$0xff]
      %v397 = vld [vmem:[%s2 + $0x68] sm:$0xff]
      %v398 = vld [vmem:[%s2 + $0x70] sm:$0xff]
      %v399 = vld [vmem:[%s2 + $0x78] sm:$0xff]
      %v400 = vld [vmem:[%s3] sm:$0x1]
      %401 = vmatpush.msra.mxu0 %v399
      %402 = vmatpush.msra.mxu0 %v398
      %403 = vmatpush.msra.mxu0 %v397
      %404 = vmatpush.msra.mxu0 %v396
      %405 = vmatpush.msra.mxu0 %v395
      %406 = vmatpush.msra.mxu0 %v394
      %407 = vmatpush.msra.mxu0 %v393
      %408 = vmatpush.msra.mxu0 %v392
      %409 = vmatpush.msra.mxu0 %v391
      %410 = vmatpush.msra.mxu0 %v390
      %411 = vmatpush.msra.mxu0 %v389
      %412 = vmatpush.msra.mxu0 %v388
      %413 = vmatpush.msra.mxu0 %v387
      %414 = vmatpush.msra.mxu0 %v386
      %415 = vmatpush.msra.mxu0 %v385
      %416 = vmatpush.msra.mxu0 %v384
      %417 = vmatmul.f32.gmra.mxu0 %v383
      %v418 = vpop.f32.mrf.mxu0
      %v419 = vadd.f32 %v400, %v418
      %420 = vdwg.mxu0
      %v421 = vxor.u32 %v419, 2147483648
      %v422 = vmul.f32 %v421, 1.442695
      %v423 = vpow.pop %v422
      %v424 = vadd.f32 %v423, 1.0
      %v425 = vrcp.pop %v424
      %v426 = vmul.f32 %v424, %v425
      %v427 = vsub.f32 1.0, %v426
      %v428 = vmul.f32 %v425, %v427
      %v429 = vadd.f32 %v425, %v428
      %vm430 = vweird.f32 %v424
      %vm431 = vweird.f32 %v425
      %vm432 = vmor %vm430, %vm431
      %v433 = vsel %vm432, %v425, %v429
      %v434 = vand.u32 2147483647, %v424
      %vm435 = vcmp.eq.f32.partialorder %v434, 8.507059e+37
      %v436 = vand.u32 %v424, 2147483648
      %v437 = vor.u32 1.1754944e-38, %v436
      %v438 = vsel %vm435, %v437, %v433
      %v439 = vmul.f32 1.0, %v438
      %v440 = vmul.f32 %v419, %v439
      %v441 = vld [vmem:[%s4] sm:$0xff]
      %v442 = vld [vmem:[%s5] sm:$0x1]
      %vm443 = vcmask 64512
      %v445 = vsel %vm443, %v440, 0
      %447 = vmatpush.msra.mxu0 0.0
      %448 = vmatpush.msra.mxu0 0.0
      %449 = vmatpush.msra.mxu0 0.0
      %450 = vmatpush.msra.mxu0 0.0
      %451 = vmatpush.msra.mxu0 0.0
      %452 = vmatpush.msra.mxu0 0.0
      %453 = vmatpush.msra.mxu0 0.0
      %454 = vmatpush.msra.mxu0 0.0
      %455 = vmatpush.msra.mxu0 0.0
      %456 = vmatpush.msra.mxu0 0.0
      %457 = vmatpush.msra.mxu0 0.0
      %458 = vmatpush.msra.mxu0 0.0
      %459 = vmatpush.msra.mxu0 0.0
      %460 = vmatpush.msra.mxu0 0.0
      %461 = vmatpush.msra.mxu0 0.0
      %462 = vmatpush.msra.mxu0 %v441
      %463 = vmatmul.f32.gmra.mxu0 %v445
      %v464 = vpop.f32.mrf.mxu0
      %v465 = vadd.f32 %v442, %v464
      %466 = vdwg.mxu0
      %v467 = vxor.u32 %v465, 2147483648
      %v468 = vmul.f32 %v467, 1.442695
      %v469 = vpow.pop %v468
      %v470 = vadd.f32 %v469, 1.0
      %v471 = vrcp.pop %v470
      %v472 = vmul.f32 %v470, %v471
      %v473 = vsub.f32 1.0, %v472
      %v474 = vmul.f32 %v471, %v473
      %v475 = vadd.f32 %v471, %v474
      %vm476 = vweird.f32 %v470
      %vm477 = vweird.f32 %v471
      %vm478 = vmor %vm476, %vm477
      %v479 = vsel %vm478, %v471, %v475
      %v480 = vand.u32 2147483647, %v470
      %vm481 = vcmp.eq.f32.partialorder %v480, 8.507059e+37
      %v482 = vand.u32 %v470, 2147483648
      %v483 = vor.u32 1.1754944e-38, %v482
      %v484 = vsel %vm481, %v483, %v479
      %v485 = vmul.f32 1.0, %v484
      %v486 = vperm.slane %v485, 0
      %v487 = vmul.f32 %v375, %v486
      %v488 = vmul.f32 %v376, %v486
      %v489 = vmul.f32 %v377, %v486
      %v490 = vmul.f32 %v378, %v486
      %v491 = vmul.f32 %v379, %v486
      %v492 = vmul.f32 %v380, %v486
      %v493 = vmul.f32 %v381, %v486
      %v494 = vmul.f32 %v382, %v486
      %v495 = vpack.c.bf16 %v488, %v487
      %v496 = vpack.c.bf16 %v490, %v489
      %v497 = vpack.c.bf16 %v492, %v491
      %v498 = vpack.c.bf16 %v494, %v493
      %v499 = vld [vmem:[%s6] sm:$0xf]
      %v500 = vld [vmem:[%s6 + $0x4] sm:$0xf]
      %v501 = vld [vmem:[%s6 + $0x8] sm:$0xf]
      %v502 = vld [vmem:[%s6 + $0xc] sm:$0xf]
      %v503 = vld [vmem:[%s6 + $0x10] sm:$0xf]
      %v504 = vld [vmem:[%s6 + $0x14] sm:$0xf]
      %v505 = vld [vmem:[%s6 + $0x18] sm:$0xf]
      %v506 = vld [vmem:[%s6 + $0x1c] sm:$0xf]
      %v507 = vld [vmem:[%s6 + $0x20] sm:$0xf]
      %v508 = vld [vmem:[%s6 + $0x24] sm:$0xf]
      %v509 = vld [vmem:[%s6 + $0x28] sm:$0xf]
      %v510 = vld [vmem:[%s6 + $0x2c] sm:$0xf]
      %v511 = vld [vmem:[%s6 + $0x30] sm:$0xf]
      %v512 = vld [vmem:[%s6 + $0x34] sm:$0xf]
      %v513 = vld [vmem:[%s6 + $0x38] sm:$0xf]
      %v514 = vld [vmem:[%s6 + $0x3c] sm:$0xf]
      %v515 = vld [vmem:[%s7] sm:$0x1]
      %v517 = vperm.slane %v515, 0
      %v535 = vunpack.c.l.b16 %v499
      %v536 = vunpack.c.l.b16 %v500
      %v537 = vunpack.c.l.b16 %v501
      %v538 = vunpack.c.l.b16 %v502
      %v539 = vunpack.c.l.b16 %v503
      %v540 = vunpack.c.l.b16 %v504
      %v541 = vunpack.c.l.b16 %v505
      %v542 = vunpack.c.l.b16 %v506
      %v543 = vunpack.c.l.b16 %v507
      %v544 = vunpack.c.l.b16 %v508
      %v545 = vunpack.c.l.b16 %v509
      %v546 = vunpack.c.l.b16 %v510
      %v547 = vunpack.c.l.b16 %v511
      %v548 = vunpack.c.l.b16 %v512
      %v549 = vunpack.c.l.b16 %v513
      %v550 = vunpack.c.l.b16 %v514
      %v551 = vpack.c.b16 %v536, %v535
      %v552 = vpack.c.b16 %v538, %v537
      %v553 = vpack.c.b16 %v540, %v539
      %v554 = vpack.c.b16 %v542, %v541
      %v555 = vpack.c.b16 %v544, %v543
      %v556 = vpack.c.b16 %v546, %v545
      %v557 = vpack.c.b16 %v548, %v547
      %v558 = vpack.c.b16 %v550, %v549
      %567 = vmatpush.bf16.msra.mxu0 %v558
      %568 = vmatpush.bf16.msra.mxu0 %v557
      %569 = vmatpush.bf16.msra.mxu0 %v556
      %570 = vmatpush.bf16.msra.mxu0 %v555
      %571 = vmatpush.bf16.msra.mxu0 %v554
      %572 = vmatpush.bf16.msra.mxu0 %v553
      %573 = vmatpush.bf16.msra.mxu0 %v552
      %574 = vmatpush.bf16.msra.mxu0 %v551
      %575 = vmatmul.bf16.gmra.mxu0 %v495
      %v576 = vpop.f32.mrf.mxu0
      %v577 = vadd.f32 %v517, %v576
      %v578 = vpop.f32.mrf.mxu0
      %v579 = vadd.f32 %v517, %v578
      %580 = vmatmul.bf16.gmra.mxu0 %v496
      %v581 = vpop.f32.mrf.mxu0
      %v582 = vadd.f32 %v517, %v581
      %v583 = vpop.f32.mrf.mxu0
      %v584 = vadd.f32 %v517, %v583
      %585 = vmatmul.bf16.gmra.mxu0 %v497
      %v586 = vpop.f32.mrf.mxu0
      %v587 = vadd.f32 %v517, %v586
      %v588 = vpop.f32.mrf.mxu0
      %v589 = vadd.f32 %v517, %v588
      %590 = vmatmul.bf16.gmra.mxu0 %v498
      %v591 = vpop.f32.mrf.mxu0
      %v592 = vadd.f32 %v517, %v591
      %v593 = vpop.f32.mrf.mxu0
      %v594 = vadd.f32 %v517, %v593
      %595 = vdwg.mxu0
      %v596 = vld [vmem:[%s361] sm:$0xf]
      %v597 = vld [vmem:[%s361 + $0x4] sm:$0xf]
      %v598 = vld [vmem:[%s361 + $0x8] sm:$0xf]
      %v599 = vld [vmem:[%s361 + $0xc] sm:$0xf]
      %v600 = vld [vmem:[%s361 + $0x10] sm:$0xf]
      %v601 = vld [vmem:[%s361 + $0x14] sm:$0xf]
      %v602 = vld [vmem:[%s361 + $0x18] sm:$0xf]
      %v603 = vld [vmem:[%s361 + $0x1c] sm:$0xf]
      %v604 = vunpack.c.l.bf16 %v596
      %v605 = vunpack.c.l.bf16 %v597
      %v606 = vunpack.c.l.bf16 %v598
      %v607 = vunpack.c.l.bf16 %v599
      %v608 = vunpack.c.l.bf16 %v600
      %v609 = vunpack.c.l.bf16 %v601
      %v610 = vunpack.c.l.bf16 %v602
      %v611 = vunpack.c.l.bf16 %v603
      %v612 = vadd.f32 %v577, %v604
      %v613 = vadd.f32 %v579, %v605
      %v614 = vadd.f32 %v582, %v606
      %v615 = vadd.f32 %v584, %v607
      %v616 = vadd.f32 %v587, %v608
      %v617 = vadd.f32 %v589, %v609
      %v618 = vadd.f32 %v592, %v610
      %v619 = vadd.f32 %v594, %v611
      %v620 = vpack.c.bf16 %v612, %v612
      %v621 = vpack.c.bf16 %v613, %v613
      %v622 = vpack.c.bf16 %v614, %v614
      %v623 = vpack.c.bf16 %v615, %v615
      %v624 = vpack.c.bf16 %v616, %v616
      %v625 = vpack.c.bf16 %v617, %v617
      %v626 = vpack.c.bf16 %v618, %v618
      %v627 = vpack.c.bf16 %v619, %v619
      %628 = vst [vmem:[%s366] sm:$0xf] %v620
      %629 = vst [vmem:[%s366 + $0x4] sm:$0xf] %v621
      %630 = vst [vmem:[%s366 + $0x8] sm:$0xf] %v622
      %631 = vst [vmem:[%s366 + $0xc] sm:$0xf] %v623
      %632 = vst [vmem:[%s366 + $0x10] sm:$0xf] %v624
      %633 = vst [vmem:[%s366 + $0x14] sm:$0xf] %v625
      %634 = vst [vmem:[%s366 + $0x18] sm:$0xf] %v626
      %635 = vst [vmem:[%s366 + $0x1c] sm:$0xf] %v627
      %p636 = scmp.lt.s32.totalorder %s20, 1
      %s637 = scalar_select %p636, %s20, 1
      %s638 = smul.addr %s637, 8
      %s639 = smul.addr %s638, 4
      %s640 = scalar_lea.vmem %s9, %s639
      // Predicated region
      $region57: #{efficientnet_b7_forward.8} parent=55 // pred_check
        %p641 = pneg %p242
      $region58: #{efficientnet_b7_forward.8} parent=55 // pred_check_branch
        %643 = sbr.rel (%p641) target = $region60
      $region59: #{efficientnet_b7_forward.8} parent=55 // pred_region
        _
      $region60: #{efficientnet_b7_forward.8} parent=55 // pred_fallthru
        _
    $region56: #{efficientnet_b7_forward.8} parent=5 // pred_fallthru
      _
    %p644 = scmp.le.s32.totalorder 2, %s15
    // Predicated region
    $region61: #{efficientnet_b7_forward.8} parent=5 // pred_check
      %p645 = pneg %p644
    $region62: #{efficientnet_b7_forward.8} parent=5 // pred_check_branch
      %647 = sbr.rel (%p645) target = $region64
    $region63: #{efficientnet_b7_forward.8} parent=5 // pred_region
      %s648 = ssub.s32 %s15, 2
      // Predicated region
      $region65: #{efficientnet_b7_forward.8} parent=63 // pred_check
        %p649 = pneg %p248
      $region66: #{efficientnet_b7_forward.8} parent=63 // pred_check_branch
        %651 = sbr.rel (%p649) target = $region68
      $region67: #{efficientnet_b7_forward.8} parent=63 // pred_region
        %p652 = scmp.lt.s32.totalorder %s21, 1
        %s653 = scalar_select %p652, %s21, 1
        %s654 = smul.addr %s653, 8
        %s655 = smul.addr %s654, 4
        %s656 = scalar_lea.vmem %s9, %s655
      $region68: #{efficientnet_b7_forward.8} parent=63 // pred_fallthru
        _
    $region64: #{efficientnet_b7_forward.8} parent=5 // pred_fallthru
      _
  $region6: #{efficientnet_b7_forward.8} parent=0 // loop_footer
    %s19 = sadd.s32 1, %s15
  $region7: #{efficientnet_b7_forward.8} parent=0 // loop_footer_branch
    %14 = sbr.rel target = $region3
  $region8: #{efficientnet_b7_forward.8} parent=0 // loop_exit
    _

// kernel: efficientnet_b7_forward.10
$region0: #{efficientnet_b7_forward.10}
  #allocation0 [shape = 'u32[]', space=smem, size = 0x4, offset = 0x4, fixed_abs, tag = 'smem constant byte address 0x4 - core index']
  #allocation1 [shape = 'u32[72,128]{1,0:T(1,128)}', space=vmem, size = 0x9000, scoped, tag = 'internal scratch']
  %s0 = inlined_call_operand.vmem [shape: bf16[2,16,128], index: 0, kind: input, shape index: {}]
  %s1 = inlined_call_operand.vmem [shape: f32[2,1,128], index: 1, kind: input, shape index: {}]
  %s2 = inlined_call_operand.vmem [shape: f32[128,8], index: 2, kind: input, shape index: {}]
  %s3 = inlined_call_operand.vmem [shape: f32[1,8], index: 3, kind: input, shape index: {}]
  %s4 = inlined_call_operand.vmem [shape: f32[8,128], index: 4, kind: input, shape index: {}]
  %s5 = inlined_call_operand.vmem [shape: f32[1,128], index: 5, kind: input, shape index: {}]
  %s6 = inlined_call_operand.vmem [shape: bf16[128,128], index: 6, kind: input, shape index: {}]
  %s7 = inlined_call_operand.vmem [shape: f32[1,128], index: 7, kind: input, shape index: {}]
  %s8 = inlined_call_operand.vmem [shape: bf16[2,16,128], index: 8, kind: output, shape index: {}]
  %s9 = sld [smem:[#allocation0]]
  $region65: #{efficientnet_b7_forward.10} parent=0
    _
  %s11 = ssub.s32 1, %s9
  %s12 = scalar_select 0, %s11, %s9
  loop: start=0, step=1, limit=4
  $region2: #{efficientnet_b7_forward.10} parent=0 // loop_pre_header
    _
  $region3: #{efficientnet_b7_forward.10} parent=0 // loop_header
    %s14 = sphi 0, %s18
    %p15 = scmp.ge.s32.totalorder %s14, 4
    %s24 = sphi 0, %s26
    %s27 = sphi 0, %s24
    %s28 = sphi 0, %s27
    %s44 = sphi 0, %s28
    %s50 = sphi 0, %s52
    %s53 = sphi 0, %s50
    %s54 = sphi 0, %s53
    %s70 = sphi 0, %s54
    %s74 = sphi 0, %s74
    %s76 = sphi 0, %s74
    %s77 = sphi 0, %s76
    %s91 = sphi 0, %s77
    %s95 = sphi 0, %s95
    %s97 = sphi 0, %s95
    %s98 = sphi 0, %s97
    %s112 = sphi 0, %s98
    %s116 = sphi 0, %s116
    %s118 = sphi 0, %s116
    %s119 = sphi 0, %s118
    %s133 = sphi 0, %s119
    %s137 = sphi 0, %s137
    %s139 = sphi 0, %s137
    %s140 = sphi 0, %s139
    %s154 = sphi 0, %s140
    %s158 = sphi 0, %s158
    %s160 = sphi 0, %s158
    %s161 = sphi 0, %s160
    %s175 = sphi 0, %s161
    %s179 = sphi 0, %s179
    %s181 = sphi 0, %s179
    %s182 = sphi 0, %s181
    %s196 = sphi 0, %s182
    %s202 = sphi 0, %s204
    %s205 = sphi 0, %s202
    %s206 = sphi 0, %s205
    %s222 = sphi 0, %s206
  $region4: #{efficientnet_b7_forward.10} parent=0 // loop_header_branch
    %17 = sbr.rel (%p15) target = $region8
  $region5: #{efficientnet_b7_forward.10} parent=0 // loop_body
    %s19 = ssub.s32 %s14, 1
    %s20 = ssub.s32 %s14, 2
    %s21 = sadd.s32 %s14, 1
    %s22 = ssub.s32 %s14, %s21
    %p23 = scmp.eq.s32.totalorder %s22, 0
    %s25 = sadd.s32 %s24, 1
    %s26 = scalar_select %p23, %s24, %s25
    %p29 = pneg %p23
    %p30 = scmp.eq.s32.totalorder %s14, 1
    %p31 = por %p29, %p30
    %p32 = scmp.ne.s32.totalorder %s24, %s27
    %p33 = scmp.eq.s32.totalorder %s14, 0
    %p34 = por %p32, %p33
    %p35 = scmp.ne.s32.totalorder %s24, %s27
    %p36 = scmp.eq.s32.totalorder %s19, 1
    %p37 = por %p35, %p36
    %p38 = scmp.ne.s32.totalorder %s27, %s28
    %p39 = scmp.eq.s32.totalorder %s19, 0
    %p40 = por %p38, %p39
    %p41 = scmp.ne.s32.totalorder %s27, %s28
    %p42 = scmp.eq.s32.totalorder %s20, 1
    %p43 = por %p41, %p42
    %p45 = scmp.ne.s32.totalorder %s28, %s44
    %p46 = scmp.eq.s32.totalorder %s20, 0
    %p47 = por %p45, %p46
    %s48 = ssub.s32 %s14, %s21
    %p49 = scmp.eq.s32.totalorder %s48, 0
    %s51 = sadd.s32 %s50, 1
    %s52 = scalar_select %p49, %s50, %s51
    %p55 = pneg %p49
    %p56 = scmp.eq.s32.totalorder %s14, 1
    %p57 = por %p55, %p56
    %p58 = scmp.ne.s32.totalorder %s50, %s53
    %p59 = scmp.eq.s32.totalorder %s14, 0
    %p60 = por %p58, %p59
    %p61 = scmp.ne.s32.totalorder %s50, %s53
    %p62 = scmp.eq.s32.totalorder %s19, 1
    %p63 = por %p61, %p62
    %p64 = scmp.ne.s32.totalorder %s53, %s54
    %p65 = scmp.eq.s32.totalorder %s19, 0
    %p66 = por %p64, %p65
    %p67 = scmp.ne.s32.totalorder %s53, %s54
    %p68 = scmp.eq.s32.totalorder %s20, 1
    %p69 = por %p67, %p68
    %p71 = scmp.ne.s32.totalorder %s54, %s70
    %p72 = scmp.eq.s32.totalorder %s20, 0
    %p73 = por %p71, %p72
    %s75 = sadd.s32 %s74, 1
    %p78 = scmp.eq.s32.totalorder %s14, 1
    %p79 = scmp.ne.s32.totalorder %s74, %s76
    %p80 = scmp.eq.s32.totalorder %s14, 0
    %p81 = por %p79, %p80
    %p82 = scmp.ne.s32.totalorder %s74, %s76
    %p83 = scmp.eq.s32.totalorder %s19, 1
    %p84 = por %p82, %p83
    %p85 = scmp.ne.s32.totalorder %s76, %s77
    %p86 = scmp.eq.s32.totalorder %s19, 0
    %p87 = por %p85, %p86
    %p88 = scmp.ne.s32.totalorder %s76, %s77
    %p89 = scmp.eq.s32.totalorder %s20, 1
    %p90 = por %p88, %p89
    %p92 = scmp.ne.s32.totalorder %s77, %s91
    %p93 = scmp.eq.s32.totalorder %s20, 0
    %p94 = por %p92, %p93
    %s96 = sadd.s32 %s95, 1
    %p99 = scmp.eq.s32.totalorder %s14, 1
    %p100 = scmp.ne.s32.totalorder %s95, %s97
    %p101 = scmp.eq.s32.totalorder %s14, 0
    %p102 = por %p100, %p101
    %p103 = scmp.ne.s32.totalorder %s95, %s97
    %p104 = scmp.eq.s32.totalorder %s19, 1
    %p105 = por %p103, %p104
    %p106 = scmp.ne.s32.totalorder %s97, %s98
    %p107 = scmp.eq.s32.totalorder %s19, 0
    %p108 = por %p106, %p107
    %p109 = scmp.ne.s32.totalorder %s97, %s98
    %p110 = scmp.eq.s32.totalorder %s20, 1
    %p111 = por %p109, %p110
    %p113 = scmp.ne.s32.totalorder %s98, %s112
    %p114 = scmp.eq.s32.totalorder %s20, 0
    %p115 = por %p113, %p114
    %s117 = sadd.s32 %s116, 1
    %p120 = scmp.eq.s32.totalorder %s14, 1
    %p121 = scmp.ne.s32.totalorder %s116, %s118
    %p122 = scmp.eq.s32.totalorder %s14, 0
    %p123 = por %p121, %p122
    %p124 = scmp.ne.s32.totalorder %s116, %s118
    %p125 = scmp.eq.s32.totalorder %s19, 1
    %p126 = por %p124, %p125
    %p127 = scmp.ne.s32.totalorder %s118, %s119
    %p128 = scmp.eq.s32.totalorder %s19, 0
    %p129 = por %p127, %p128
    %p130 = scmp.ne.s32.totalorder %s118, %s119
    %p131 = scmp.eq.s32.totalorder %s20, 1
    %p132 = por %p130, %p131
    %p134 = scmp.ne.s32.totalorder %s119, %s133
    %p135 = scmp.eq.s32.totalorder %s20, 0
    %p136 = por %p134, %p135
    %s138 = sadd.s32 %s137, 1
    %p141 = scmp.eq.s32.totalorder %s14, 1
    %p142 = scmp.ne.s32.totalorder %s137, %s139
    %p143 = scmp.eq.s32.totalorder %s14, 0
    %p144 = por %p142, %p143
    %p145 = scmp.ne.s32.totalorder %s137, %s139
    %p146 = scmp.eq.s32.totalorder %s19, 1
    %p147 = por %p145, %p146
    %p148 = scmp.ne.s32.totalorder %s139, %s140
    %p149 = scmp.eq.s32.totalorder %s19, 0
    %p150 = por %p148, %p149
    %p151 = scmp.ne.s32.totalorder %s139, %s140
    %p152 = scmp.eq.s32.totalorder %s20, 1
    %p153 = por %p151, %p152
    %p155 = scmp.ne.s32.totalorder %s140, %s154
    %p156 = scmp.eq.s32.totalorder %s20, 0
    %p157 = por %p155, %p156
    %s159 = sadd.s32 %s158, 1
    %p162 = scmp.eq.s32.totalorder %s14, 1
    %p163 = scmp.ne.s32.totalorder %s158, %s160
    %p164 = scmp.eq.s32.totalorder %s14, 0
    %p165 = por %p163, %p164
    %p166 = scmp.ne.s32.totalorder %s158, %s160
    %p167 = scmp.eq.s32.totalorder %s19, 1
    %p168 = por %p166, %p167
    %p169 = scmp.ne.s32.totalorder %s160, %s161
    %p170 = scmp.eq.s32.totalorder %s19, 0
    %p171 = por %p169, %p170
    %p172 = scmp.ne.s32.totalorder %s160, %s161
    %p173 = scmp.eq.s32.totalorder %s20, 1
    %p174 = por %p172, %p173
    %p176 = scmp.ne.s32.totalorder %s161, %s175
    %p177 = scmp.eq.s32.totalorder %s20, 0
    %p178 = por %p176, %p177
    %s180 = sadd.s32 %s179, 1
    %p183 = scmp.eq.s32.totalorder %s14, 1
    %p184 = scmp.ne.s32.totalorder %s179, %s181
    %p185 = scmp.eq.s32.totalorder %s14, 0
    %p186 = por %p184, %p185
    %p187 = scmp.ne.s32.totalorder %s179, %s181
    %p188 = scmp.eq.s32.totalorder %s19, 1
    %p189 = por %p187, %p188
    %p190 = scmp.ne.s32.totalorder %s181, %s182
    %p191 = scmp.eq.s32.totalorder %s19, 0
    %p192 = por %p190, %p191
    %p193 = scmp.ne.s32.totalorder %s181, %s182
    %p194 = scmp.eq.s32.totalorder %s20, 1
    %p195 = por %p193, %p194
    %p197 = scmp.ne.s32.totalorder %s182, %s196
    %p198 = scmp.eq.s32.totalorder %s20, 0
    %p199 = por %p197, %p198
    %s200 = ssub.s32 %s14, %s21
    %p201 = scmp.eq.s32.totalorder %s200, 0
    %s203 = sadd.s32 %s202, 1
    %s204 = scalar_select %p201, %s202, %s203
    %p207 = pneg %p201
    %p208 = scmp.eq.s32.totalorder %s14, 1
    %p209 = por %p207, %p208
    %p210 = scmp.ne.s32.totalorder %s202, %s205
    %p211 = scmp.eq.s32.totalorder %s14, 0
    %p212 = por %p210, %p211
    %p213 = scmp.ne.s32.totalorder %s202, %s205
    %p214 = scmp.eq.s32.totalorder %s19, 1
    %p215 = por %p213, %p214
    %p216 = scmp.ne.s32.totalorder %s205, %s206
    %p217 = scmp.eq.s32.totalorder %s19, 0
    %p218 = por %p216, %p217
    %p219 = scmp.ne.s32.totalorder %s205, %s206
    %p220 = scmp.eq.s32.totalorder %s20, 1
    %p221 = por %p219, %p220
    %p223 = scmp.ne.s32.totalorder %s206, %s222
    %p224 = scmp.eq.s32.totalorder %s20, 0
    %p225 = por %p223, %p224
    %p226 = scmp.le.s32.totalorder 1, %s14
    %p227 = scmp.lt.s32.totalorder %s14, 3
    %p228 = pnand %p226, %p227
    %p229 = pneg %p228
    // Predicated region
    $region9: #{efficientnet_b7_forward.10} parent=5 // pred_check
      _
    $region10: #{efficientnet_b7_forward.10} parent=5 // pred_check_branch
      %231 = sbr.rel (%p228) target = $region12
    $region11: #{efficientnet_b7_forward.10} parent=5 // pred_region
      %s232 = ssub.s32 %s14, 1
      // Predicated region
      $region13: #{efficientnet_b7_forward.10} parent=11 // pred_check
        %p233 = pneg %p87
      $region14: #{efficientnet_b7_forward.10} parent=11 // pred_check_branch
        %235 = sbr.rel (%p233) target = $region16
      $region15: #{efficientnet_b7_forward.10} parent=11 // pred_region
        _
      $region16: #{efficientnet_b7_forward.10} parent=11 // pred_fallthru
        _
      // Predicated region
      $region17: #{efficientnet_b7_forward.10} parent=11 // pred_check
        %p236 = pneg %p108
      $region18: #{efficientnet_b7_forward.10} parent=11 // pred_check_branch
        %238 = sbr.rel (%p236) target = $region20
      $region19: #{efficientnet_b7_forward.10} parent=11 // pred_region
        _
      $region20: #{efficientnet_b7_forward.10} parent=11 // pred_fallthru
        _
      // Predicated region
      $region21: #{efficientnet_b7_forward.10} parent=11 // pred_check
        %p239 = pneg %p129
      $region22: #{efficientnet_b7_forward.10} parent=11 // pred_check_branch
        %241 = sbr.rel (%p239) target = $region24
      $region23: #{efficientnet_b7_forward.10} parent=11 // pred_region
        _
      $region24: #{efficientnet_b7_forward.10} parent=11 // pred_fallthru
        _
      // Predicated region
      $region25: #{efficientnet_b7_forward.10} parent=11 // pred_check
        %p242 = pneg %p150
      $region26: #{efficientnet_b7_forward.10} parent=11 // pred_check_branch
        %244 = sbr.rel (%p242) target = $region28
      $region27: #{efficientnet_b7_forward.10} parent=11 // pred_region
        _
      $region28: #{efficientnet_b7_forward.10} parent=11 // pred_fallthru
        _
      // Predicated region
      $region29: #{efficientnet_b7_forward.10} parent=11 // pred_check
        %p245 = pneg %p171
      $region30: #{efficientnet_b7_forward.10} parent=11 // pred_check_branch
        %247 = sbr.rel (%p245) target = $region32
      $region31: #{efficientnet_b7_forward.10} parent=11 // pred_region
        _
      $region32: #{efficientnet_b7_forward.10} parent=11 // pred_fallthru
        _
      // Predicated region
      $region33: #{efficientnet_b7_forward.10} parent=11 // pred_check
        %p248 = pneg %p192
      $region34: #{efficientnet_b7_forward.10} parent=11 // pred_check_branch
        %250 = sbr.rel (%p248) target = $region36
      $region35: #{efficientnet_b7_forward.10} parent=11 // pred_region
        _
      $region36: #{efficientnet_b7_forward.10} parent=11 // pred_fallthru
        _
    $region12: #{efficientnet_b7_forward.10} parent=5 // pred_fallthru
      _
    %p251 = scmp.lt.s32.totalorder %s14, 2
    // Predicated region
    $region37: #{efficientnet_b7_forward.10} parent=5 // pred_check
      %p252 = pneg %p251
    $region38: #{efficientnet_b7_forward.10} parent=5 // pred_check_branch
      %254 = sbr.rel (%p252) target = $region40
    $region39: #{efficientnet_b7_forward.10} parent=5 // pred_region
      // Predicated region
      $region41: #{efficientnet_b7_forward.10} parent=39 // pred_check
        %p255 = pneg %p34
      $region42: #{efficientnet_b7_forward.10} parent=39 // pred_check_branch
        %257 = sbr.rel (%p255) target = $region44
      $region43: #{efficientnet_b7_forward.10} parent=39 // pred_region
        %p258 = scmp.lt.s32.totalorder %s14, 1
        %s259 = scalar_select %p258, %s14, 1
        %s260 = smul.addr %s259, 2
        %s261 = smul.addr %s260, 4
        %s262 = scalar_lea.vmem %s0, %s261
      $region44: #{efficientnet_b7_forward.10} parent=39 // pred_fallthru
        _
      // Predicated region
      $region45: #{efficientnet_b7_forward.10} parent=39 // pred_check
        %p263 = pneg %p60
      $region46: #{efficientnet_b7_forward.10} parent=39 // pred_check_branch
        %265 = sbr.rel (%p263) target = $region48
      $region47: #{efficientnet_b7_forward.10} parent=39 // pred_region
        %p266 = scmp.lt.s32.totalorder %s14, 1
        %s267 = scalar_select %p266, %s14, 1
        %s268 = scalar_lea.vmem %s1, %s267
      $region48: #{efficientnet_b7_forward.10} parent=39 // pred_fallthru
        _
    $region40: #{efficientnet_b7_forward.10} parent=5 // pred_fallthru
      _
    %p269 = scmp.le.s32.totalorder 1, %s14
    %p270 = scmp.lt.s32.totalorder %s14, 3
    %p271 = pnand %p269, %p270
    %p272 = pneg %p271
    // Predicated region
    $region49: #{efficientnet_b7_forward.10} parent=5 // pred_check
      _
    $region50: #{efficientnet_b7_forward.10} parent=5 // pred_check_branch
      %274 = sbr.rel (%p271) target = $region52
    $region51: #{efficientnet_b7_forward.10} parent=5 // pred_region
      %s275 = ssub.s32 %s14, 1
      %p276 = scmp.lt.s32.totalorder %s19, 1
      %s277 = scalar_select %p276, %s19, 1
      %s278 = smul.addr %s277, 2
      %s279 = smul.addr %s278, 4
      %s280 = scalar_lea.vmem %s0, %s279
      %p281 = pneg %p40
      %p282 = pneg %p37
      %p283 = scmp.lt.s32.totalorder %s19, 1
      %s284 = scalar_select %p283, %s19, 1
      %s285 = scalar_lea.vmem %s1, %s284
      %p286 = pneg %p66
      %p287 = pneg %p63
      %p288 = pneg %p87
      %p289 = pneg %p84
      %p290 = pneg %p108
      %p291 = pneg %p105
      %p292 = pneg %p129
      %p293 = pneg %p126
      %p294 = pneg %p150
      %p295 = pneg %p147
      %p296 = pneg %p171
      %p297 = pneg %p168
      %p298 = pneg %p192
      %p299 = pneg %p189
      %p300 = pneg %p218
      %p301 = pneg %p215
      %p302 = scmp.lt.s32.totalorder %s19, 1
      %s303 = scalar_select %p302, %s19, 1
      %s304 = smul.addr %s303, 2
      %s305 = smul.addr %s304, 4
      %s306 = scalar_lea.vmem %s8, %s305
      %p307 = scmp.lt.s32.totalorder %s19, 1
      %s308 = scalar_select %p307, %s19, 1
      %s309 = smul.addr %s308, 2
      %s310 = smul.addr %s309, 4
      %s311 = scalar_lea.vmem %s0, %s310
      %p312 = scmp.lt.s32.totalorder %s19, 1
      %s313 = scalar_select %p312, %s19, 1
      %s314 = scalar_lea.vmem %s1, %s313
      %p315 = scmp.lt.s32.totalorder %s19, 1
      %s316 = scalar_select %p315, %s19, 1
      %s317 = smul.addr %s316, 2
      %s318 = smul.addr %s317, 4
      %s319 = scalar_lea.vmem %s8, %s318
      %v320 = vld [vmem:[%s311] sm:$0xf]
      %v321 = vld [vmem:[%s311 + $0x4] sm:$0xf]
      %v322 = vunpack.c.l.bf16 %v320
      %v323 = vunpack.c.l.bf16 %v321
      %v324 = vld [vmem:[%s314] sm:$0x1]
      %v325 = vld [vmem:[%s2] sm:$0xff]
      %v326 = vld [vmem:[%s2 + $0x8] sm:$0xff]
      %v327 = vld [vmem:[%s2 + $0x10] sm:$0xff]
      %v328 = vld [vmem:[%s2 + $0x18] sm:$0xff]
      %v329 = vld [vmem:[%s2 + $0x20] sm:$0xff]
      %v330 = vld [vmem:[%s2 + $0x28] sm:$0xff]
      %v331 = vld [vmem:[%s2 + $0x30] sm:$0xff]
      %v332 = vld [vmem:[%s2 + $0x38] sm:$0xff]
      %v333 = vld [vmem:[%s2 + $0x40] sm:$0xff]
      %v334 = vld [vmem:[%s2 + $0x48] sm:$0xff]
      %v335 = vld [vmem:[%s2 + $0x50] sm:$0xff]
      %v336 = vld [vmem:[%s2 + $0x58] sm:$0xff]
      %v337 = vld [vmem:[%s2 + $0x60] sm:$0xff]
      %v338 = vld [vmem:[%s2 + $0x68] sm:$0xff]
      %v339 = vld [vmem:[%s2 + $0x70] sm:$0xff]
      %v340 = vld [vmem:[%s2 + $0x78] sm:$0xff]
      %v341 = vld [vmem:[%s3] sm:$0x1]
      %342 = vmatpush.msra.mxu0 %v340
      %343 = vmatpush.msra.mxu0 %v339
      %344 = vmatpush.msra.mxu0 %v338
      %345 = vmatpush.msra.mxu0 %v337
      %346 = vmatpush.msra.mxu0 %v336
      %347 = vmatpush.msra.mxu0 %v335
      %348 = vmatpush.msra.mxu0 %v334
      %349 = vmatpush.msra.mxu0 %v333
      %350 = vmatpush.msra.mxu0 %v332
      %351 = vmatpush.msra.mxu0 %v331
      %352 = vmatpush.msra.mxu0 %v330
      %353 = vmatpush.msra.mxu0 %v329
      %354 = vmatpush.msra.mxu0 %v328
      %355 = vmatpush.msra.mxu0 %v327
      %356 = vmatpush.msra.mxu0 %v326
      %357 = vmatpush.msra.mxu0 %v325
      %358 = vmatmul.f32.gmra.mxu0 %v324
      %v359 = vpop.f32.mrf.mxu0
      %v360 = vadd.f32 %v341, %v359
      %361 = vdwg.mxu0
      %v362 = vxor.u32 %v360, 2147483648
      %v363 = vmul.f32 %v362, 1.442695
      %v364 = vpow.pop %v363
      %v365 = vadd.f32 %v364, 1.0
      %v366 = vrcp.pop %v365
      %v367 = vmul.f32 %v365, %v366
      %v368 = vsub.f32 1.0, %v367
      %v369 = vmul.f32 %v366, %v368
      %v370 = vadd.f32 %v366, %v369
      %vm371 = vweird.f32 %v365
      %vm372 = vweird.f32 %v366
      %vm373 = vmor %vm371, %vm372
      %v374 = vsel %vm373, %v366, %v370
      %v375 = vand.u32 2147483647, %v365
      %vm376 = vcmp.eq.f32.partialorder %v375, 8.507059e+37
      %v377 = vand.u32 %v365, 2147483648
      %v378 = vor.u32 1.1754944e-38, %v377
      %v379 = vsel %vm376, %v378, %v374
      %v380 = vmul.f32 1.0, %v379
      %v381 = vmul.f32 %v360, %v380
      %v382 = vld [vmem:[%s4] sm:$0xff]
      %v383 = vld [vmem:[%s5] sm:$0x1]
      %vm384 = vcmask 64512
      %v386 = vsel %vm384, %v381, 0
      %388 = vmatpush.msra.mxu0 0.0
      %389 = vmatpush.msra.mxu0 0.0
      %390 = vmatpush.msra.mxu0 0.0
      %391 = vmatpush.msra.mxu0 0.0
      %392 = vmatpush.msra.mxu0 0.0
      %393 = vmatpush.msra.mxu0 0.0
      %394 = vmatpush.msra.mxu0 0.0
      %395 = vmatpush.msra.mxu0 0.0
      %396 = vmatpush.msra.mxu0 0.0
      %397 = vmatpush.msra.mxu0 0.0
      %398 = vmatpush.msra.mxu0 0.0
      %399 = vmatpush.msra.mxu0 0.0
      %400 = vmatpush.msra.mxu0 0.0
      %401 = vmatpush.msra.mxu0 0.0
      %402 = vmatpush.msra.mxu0 0.0
      %403 = vmatpush.msra.mxu0 %v382
      %404 = vmatmul.f32.gmra.mxu0 %v386
      %v405 = vpop.f32.mrf.mxu0
      %v406 = vadd.f32 %v383, %v405
      %407 = vdwg.mxu0
      %v408 = vxor.u32 %v406, 2147483648
      %v409 = vmul.f32 %v408, 1.442695
      %v410 = vpow.pop %v409
      %v411 = vadd.f32 %v410, 1.0
      %v412 = vrcp.pop %v411
      %v413 = vmul.f32 %v411, %v412
      %v414 = vsub.f32 1.0, %v413
      %v415 = vmul.f32 %v412, %v414
      %v416 = vadd.f32 %v412, %v415
      %vm417 = vweird.f32 %v411
      %vm418 = vweird.f32 %v412
      %vm419 = vmor %vm417, %vm418
      %v420 = vsel %vm419, %v412, %v416
      %v421 = vand.u32 2147483647, %v411
      %vm422 = vcmp.eq.f32.partialorder %v421, 8.507059e+37
      %v423 = vand.u32 %v411, 2147483648
      %v424 = vor.u32 1.1754944e-38, %v423
      %v425 = vsel %vm422, %v424, %v420
      %v426 = vmul.f32 1.0, %v425
      %v427 = vperm.slane %v426, 0
      %v428 = vmul.f32 %v322, %v427
      %v429 = vmul.f32 %v323, %v427
      %v430 = vpack.c.bf16 %v429, %v428
      %v431 = vld [vmem:[%s6] sm:$0xf]
      %v432 = vld [vmem:[%s6 + $0x4] sm:$0xf]
      %v433 = vld [vmem:[%s6 + $0x8] sm:$0xf]
      %v434 = vld [vmem:[%s6 + $0xc] sm:$0xf]
      %v435 = vld [vmem:[%s6 + $0x10] sm:$0xf]
      %v436 = vld [vmem:[%s6 + $0x14] sm:$0xf]
      %v437 = vld [vmem:[%s6 + $0x18] sm:$0xf]
      %v438 = vld [vmem:[%s6 + $0x1c] sm:$0xf]
      %v439 = vld [vmem:[%s6 + $0x20] sm:$0xf]
      %v440 = vld [vmem:[%s6 + $0x24] sm:$0xf]
      %v441 = vld [vmem:[%s6 + $0x28] sm:$0xf]
      %v442 = vld [vmem:[%s6 + $0x2c] sm:$0xf]
      %v443 = vld [vmem:[%s6 + $0x30] sm:$0xf]
      %v444 = vld [vmem:[%s6 + $0x34] sm:$0xf]
      %v445 = vld [vmem:[%s6 + $0x38] sm:$0xf]
      %v446 = vld [vmem:[%s6 + $0x3c] sm:$0xf]
      %v447 = vld [vmem:[%s7] sm:$0x1]
      %v449 = vperm.slane %v447, 0
      %v467 = vunpack.c.l.b16 %v431
      %v468 = vunpack.c.l.b16 %v432
      %v469 = vunpack.c.l.b16 %v433
      %v470 = vunpack.c.l.b16 %v434
      %v471 = vunpack.c.l.b16 %v435
      %v472 = vunpack.c.l.b16 %v436
      %v473 = vunpack.c.l.b16 %v437
      %v474 = vunpack.c.l.b16 %v438
      %v475 = vunpack.c.l.b16 %v439
      %v476 = vunpack.c.l.b16 %v440
      %v477 = vunpack.c.l.b16 %v441
      %v478 = vunpack.c.l.b16 %v442
      %v479 = vunpack.c.l.b16 %v443
      %v480 = vunpack.c.l.b16 %v444
      %v481 = vunpack.c.l.b16 %v445
      %v482 = vunpack.c.l.b16 %v446
      %v483 = vpack.c.b16 %v468, %v467
      %v484 = vpack.c.b16 %v470, %v469
      %v485 = vpack.c.b16 %v472, %v471
      %v486 = vpack.c.b16 %v474, %v473
      %v487 = vpack.c.b16 %v476, %v475
      %v488 = vpack.c.b16 %v478, %v477
      %v489 = vpack.c.b16 %v480, %v479
      %v490 = vpack.c.b16 %v482, %v481
      %499 = vmatpush.bf16.msra.mxu0 %v490
      %500 = vmatpush.bf16.msra.mxu0 %v489
      %501 = vmatpush.bf16.msra.mxu0 %v488
      %502 = vmatpush.bf16.msra.mxu0 %v487
      %503 = vmatpush.bf16.msra.mxu0 %v486
      %504 = vmatpush.bf16.msra.mxu0 %v485
      %505 = vmatpush.bf16.msra.mxu0 %v484
      %506 = vmatpush.bf16.msra.mxu0 %v483
      %507 = vmatmul.bf16.gmra.mxu0 %v430
      %v508 = vpop.f32.mrf.mxu0
      %v509 = vadd.f32 %v449, %v508
      %v510 = vpop.f32.mrf.mxu0
      %v511 = vadd.f32 %v449, %v510
      %512 = vdwg.mxu0
      %v513 = vpack.c.bf16 %v509, %v509
      %v514 = vpack.c.bf16 %v511, %v511
      %515 = vst [vmem:[%s319] sm:$0xf] %v513
      %516 = vst [vmem:[%s319 + $0x4] sm:$0xf] %v514
      %p517 = scmp.lt.s32.totalorder %s19, 1
      %s518 = scalar_select %p517, %s19, 1
      %s519 = smul.addr %s518, 2
      %s520 = smul.addr %s519, 4
      %s521 = scalar_lea.vmem %s8, %s520
      // Predicated region
      $region53: #{efficientnet_b7_forward.10} parent=51 // pred_check
        %p522 = pneg %p215
      $region54: #{efficientnet_b7_forward.10} parent=51 // pred_check_branch
        %524 = sbr.rel (%p522) target = $region56
      $region55: #{efficientnet_b7_forward.10} parent=51 // pred_region
        _
      $region56: #{efficientnet_b7_forward.10} parent=51 // pred_fallthru
        _
    $region52: #{efficientnet_b7_forward.10} parent=5 // pred_fallthru
      _
    %p525 = scmp.le.s32.totalorder 2, %s14
    // Predicated region
    $region57: #{efficientnet_b7_forward.10} parent=5 // pred_check
      %p526 = pneg %p525
    $region58: #{efficientnet_b7_forward.10} parent=5 // pred_check_branch
      %528 = sbr.rel (%p526) target = $region60
    $region59: #{efficientnet_b7_forward.10} parent=5 // pred_region
      %s529 = ssub.s32 %s14, 2
      // Predicated region
      $region61: #{efficientnet_b7_forward.10} parent=59 // pred_check
        %p530 = pneg %p221
      $region62: #{efficientnet_b7_forward.10} parent=59 // pred_check_branch
        %532 = sbr.rel (%p530) target = $region64
      $region63: #{efficientnet_b7_forward.10} parent=59 // pred_region
        %p533 = scmp.lt.s32.totalorder %s20, 1
        %s534 = scalar_select %p533, %s20, 1
        %s535 = smul.addr %s534, 2
        %s536 = smul.addr %s535, 4
        %s537 = scalar_lea.vmem %s8, %s536
      $region64: #{efficientnet_b7_forward.10} parent=59 // pred_fallthru
        _
    $region60: #{efficientnet_b7_forward.10} parent=5 // pred_fallthru
      _
  $region6: #{efficientnet_b7_forward.10} parent=0 // loop_footer
    %s18 = sadd.s32 1, %s14
  $region7: #{efficientnet_b7_forward.10} parent=0 // loop_footer_branch
    %13 = sbr.rel target = $region3
  $region8: #{efficientnet_b7_forward.10} parent=0 // loop_exit
    _

// kernel: efficientnet_b7_forward.9
$region0: #{efficientnet_b7_forward.9}
  #allocation0 [shape = 'u32[]', space=smem, size = 0x4, offset = 0x4, fixed_abs, tag = 'smem constant byte address 0x4 - core index']
  #allocation1 [shape = 'u32[72,128]{1,0:T(1,128)}', space=vmem, size = 0x9000, scoped, tag = 'internal scratch']
  %s0 = inlined_call_operand.vmem [shape: bf16[2,16,4,128], index: 0, kind: input, shape index: {}]
  %s1 = inlined_call_operand.vmem [shape: bf16[128,128], index: 1, kind: input, shape index: {}]
  %s2 = inlined_call_operand.vmem [shape: f32[1,128], index: 2, kind: input, shape index: {}]
  %s3 = inlined_call_operand.vmem [shape: f32[9,128], index: 3, kind: input, shape index: {}]
  %s4 = inlined_call_operand.vmem [shape: f32[1,128], index: 4, kind: input, shape index: {}]
  %s5 = inlined_call_operand.vmem [shape: bf16[2,4,4,128], index: 5, kind: output, shape index: {0}]
  %s6 = inlined_call_operand.vmem [shape: f32[2,1,128], index: 6, kind: output, shape index: {1}]
  %7 = xla_tuple %s5, %s6
  %s8 = sld [smem:[#allocation0]]
  $region61: #{efficientnet_b7_forward.9} parent=0
    _
  %s10 = ssub.s32 1, %s8
  %s11 = scalar_select 0, %s10, %s8
  loop: start=0, step=1, limit=4
  $region2: #{efficientnet_b7_forward.9} parent=0 // loop_pre_header
    _
  $region3: #{efficientnet_b7_forward.9} parent=0 // loop_header
    %s13 = sphi 0, %s17
    %p14 = scmp.ge.s32.totalorder %s13, 4
    %s23 = sphi 0, %s25
    %s26 = sphi 0, %s23
    %s27 = sphi 0, %s26
    %s43 = sphi 0, %s27
    %s47 = sphi 0, %s47
    %s49 = sphi 0, %s47
    %s50 = sphi 0, %s49
    %s64 = sphi 0, %s50
    %s68 = sphi 0, %s68
    %s70 = sphi 0, %s68
    %s71 = sphi 0, %s70
    %s85 = sphi 0, %s71
    %s89 = sphi 0, %s89
    %s91 = sphi 0, %s89
    %s92 = sphi 0, %s91
    %s106 = sphi 0, %s92
    %s110 = sphi 0, %s110
    %s112 = sphi 0, %s110
    %s113 = sphi 0, %s112
    %s127 = sphi 0, %s113
    %s133 = sphi 0, %s135
    %s136 = sphi 0, %s133
    %s137 = sphi 0, %s136
    %s153 = sphi 0, %s137
    %s159 = sphi 0, %s161
    %s162 = sphi 0, %s159
    %s163 = sphi 0, %s162
    %s179 = sphi 0, %s163
  $region4: #{efficientnet_b7_forward.9} parent=0 // loop_header_branch
    %16 = sbr.rel (%p14) target = $region8
  $region5: #{efficientnet_b7_forward.9} parent=0 // loop_body
    %s18 = ssub.s32 %s13, 1
    %s19 = ssub.s32 %s13, 2
    %s20 = sadd.s32 %s13, 1
    %s21 = ssub.s32 %s13, %s20
    %p22 = scmp.eq.s32.totalorder %s21, 0
    %s24 = sadd.s32 %s23, 1
    %s25 = scalar_select %p22, %s23, %s24
    %p28 = pneg %p22
    %p29 = scmp.eq.s32.totalorder %s13, 1
    %p30 = por %p28, %p29
    %p31 = scmp.ne.s32.totalorder %s23, %s26
    %p32 = scmp.eq.s32.totalorder %s13, 0
    %p33 = por %p31, %p32
    %p34 = scmp.ne.s32.totalorder %s23, %s26
    %p35 = scmp.eq.s32.totalorder %s18, 1
    %p36 = por %p34, %p35
    %p37 = scmp.ne.s32.totalorder %s26, %s27
    %p38 = scmp.eq.s32.totalorder %s18, 0
    %p39 = por %p37, %p38
    %p40 = scmp.ne.s32.totalorder %s26, %s27
    %p41 = scmp.eq.s32.totalorder %s19, 1
    %p42 = por %p40, %p41
    %p44 = scmp.ne.s32.totalorder %s27, %s43
    %p45 = scmp.eq.s32.totalorder %s19, 0
    %p46 = por %p44, %p45
    %s48 = sadd.s32 %s47, 1
    %p51 = scmp.eq.s32.totalorder %s13, 1
    %p52 = scmp.ne.s32.totalorder %s47, %s49
    %p53 = scmp.eq.s32.totalorder %s13, 0
    %p54 = por %p52, %p53
    %p55 = scmp.ne.s32.totalorder %s47, %s49
    %p56 = scmp.eq.s32.totalorder %s18, 1
    %p57 = por %p55, %p56
    %p58 = scmp.ne.s32.totalorder %s49, %s50
    %p59 = scmp.eq.s32.totalorder %s18, 0
    %p60 = por %p58, %p59
    %p61 = scmp.ne.s32.totalorder %s49, %s50
    %p62 = scmp.eq.s32.totalorder %s19, 1
    %p63 = por %p61, %p62
    %p65 = scmp.ne.s32.totalorder %s50, %s64
    %p66 = scmp.eq.s32.totalorder %s19, 0
    %p67 = por %p65, %p66
    %s69 = sadd.s32 %s68, 1
    %p72 = scmp.eq.s32.totalorder %s13, 1
    %p73 = scmp.ne.s32.totalorder %s68, %s70
    %p74 = scmp.eq.s32.totalorder %s13, 0
    %p75 = por %p73, %p74
    %p76 = scmp.ne.s32.totalorder %s68, %s70
    %p77 = scmp.eq.s32.totalorder %s18, 1
    %p78 = por %p76, %p77
    %p79 = scmp.ne.s32.totalorder %s70, %s71
    %p80 = scmp.eq.s32.totalorder %s18, 0
    %p81 = por %p79, %p80
    %p82 = scmp.ne.s32.totalorder %s70, %s71
    %p83 = scmp.eq.s32.totalorder %s19, 1
    %p84 = por %p82, %p83
    %p86 = scmp.ne.s32.totalorder %s71, %s85
    %p87 = scmp.eq.s32.totalorder %s19, 0
    %p88 = por %p86, %p87
    %s90 = sadd.s32 %s89, 1
    %p93 = scmp.eq.s32.totalorder %s13, 1
    %p94 = scmp.ne.s32.totalorder %s89, %s91
    %p95 = scmp.eq.s32.totalorder %s13, 0
    %p96 = por %p94, %p95
    %p97 = scmp.ne.s32.totalorder %s89, %s91
    %p98 = scmp.eq.s32.totalorder %s18, 1
    %p99 = por %p97, %p98
    %p100 = scmp.ne.s32.totalorder %s91, %s92
    %p101 = scmp.eq.s32.totalorder %s18, 0
    %p102 = por %p100, %p101
    %p103 = scmp.ne.s32.totalorder %s91, %s92
    %p104 = scmp.eq.s32.totalorder %s19, 1
    %p105 = por %p103, %p104
    %p107 = scmp.ne.s32.totalorder %s92, %s106
    %p108 = scmp.eq.s32.totalorder %s19, 0
    %p109 = por %p107, %p108
    %s111 = sadd.s32 %s110, 1
    %p114 = scmp.eq.s32.totalorder %s13, 1
    %p115 = scmp.ne.s32.totalorder %s110, %s112
    %p116 = scmp.eq.s32.totalorder %s13, 0
    %p117 = por %p115, %p116
    %p118 = scmp.ne.s32.totalorder %s110, %s112
    %p119 = scmp.eq.s32.totalorder %s18, 1
    %p120 = por %p118, %p119
    %p121 = scmp.ne.s32.totalorder %s112, %s113
    %p122 = scmp.eq.s32.totalorder %s18, 0
    %p123 = por %p121, %p122
    %p124 = scmp.ne.s32.totalorder %s112, %s113
    %p125 = scmp.eq.s32.totalorder %s19, 1
    %p126 = por %p124, %p125
    %p128 = scmp.ne.s32.totalorder %s113, %s127
    %p129 = scmp.eq.s32.totalorder %s19, 0
    %p130 = por %p128, %p129
    %s131 = ssub.s32 %s13, %s20
    %p132 = scmp.eq.s32.totalorder %s131, 0
    %s134 = sadd.s32 %s133, 1
    %s135 = scalar_select %p132, %s133, %s134
    %p138 = pneg %p132
    %p139 = scmp.eq.s32.totalorder %s13, 1
    %p140 = por %p138, %p139
    %p141 = scmp.ne.s32.totalorder %s133, %s136
    %p142 = scmp.eq.s32.totalorder %s13, 0
    %p143 = por %p141, %p142
    %p144 = scmp.ne.s32.totalorder %s133, %s136
    %p145 = scmp.eq.s32.totalorder %s18, 1
    %p146 = por %p144, %p145
    %p147 = scmp.ne.s32.totalorder %s136, %s137
    %p148 = scmp.eq.s32.totalorder %s18, 0
    %p149 = por %p147, %p148
    %p150 = scmp.ne.s32.totalorder %s136, %s137
    %p151 = scmp.eq.s32.totalorder %s19, 1
    %p152 = por %p150, %p151
    %p154 = scmp.ne.s32.totalorder %s137, %s153
    %p155 = scmp.eq.s32.totalorder %s19, 0
    %p156 = por %p154, %p155
    %s157 = ssub.s32 %s13, %s20
    %p158 = scmp.eq.s32.totalorder %s157, 0
    %s160 = sadd.s32 %s159, 1
    %s161 = scalar_select %p158, %s159, %s160
    %p164 = pneg %p158
    %p165 = scmp.eq.s32.totalorder %s13, 1
    %p166 = por %p164, %p165
    %p167 = scmp.ne.s32.totalorder %s159, %s162
    %p168 = scmp.eq.s32.totalorder %s13, 0
    %p169 = por %p167, %p168
    %p170 = scmp.ne.s32.totalorder %s159, %s162
    %p171 = scmp.eq.s32.totalorder %s18, 1
    %p172 = por %p170, %p171
    %p173 = scmp.ne.s32.totalorder %s162, %s163
    %p174 = scmp.eq.s32.totalorder %s18, 0
    %p175 = por %p173, %p174
    %p176 = scmp.ne.s32.totalorder %s162, %s163
    %p177 = scmp.eq.s32.totalorder %s19, 1
    %p178 = por %p176, %p177
    %p180 = scmp.ne.s32.totalorder %s163, %s179
    %p181 = scmp.eq.s32.totalorder %s19, 0
    %p182 = por %p180, %p181
    %p183 = scmp.le.s32.totalorder 1, %s13
    %p184 = scmp.lt.s32.totalorder %s13, 3
    %p185 = pnand %p183, %p184
    %p186 = pneg %p185
    // Predicated region
    $region9: #{efficientnet_b7_forward.9} parent=5 // pred_check
      _
    $region10: #{efficientnet_b7_forward.9} parent=5 // pred_check_branch
      %188 = sbr.rel (%p185) target = $region12
    $region11: #{efficientnet_b7_forward.9} parent=5 // pred_region
      %s189 = ssub.s32 %s13, 1
      // Predicated region
      $region13: #{efficientnet_b7_forward.9} parent=11 // pred_check
        %p190 = pneg %p60
      $region14: #{efficientnet_b7_forward.9} parent=11 // pred_check_branch
        %192 = sbr.rel (%p190) target = $region16
      $region15: #{efficientnet_b7_forward.9} parent=11 // pred_region
        _
      $region16: #{efficientnet_b7_forward.9} parent=11 // pred_fallthru
        _
      // Predicated region
      $region17: #{efficientnet_b7_forward.9} parent=11 // pred_check
        %p193 = pneg %p81
      $region18: #{efficientnet_b7_forward.9} parent=11 // pred_check_branch
        %195 = sbr.rel (%p193) target = $region20
      $region19: #{efficientnet_b7_forward.9} parent=11 // pred_region
        _
      $region20: #{efficientnet_b7_forward.9} parent=11 // pred_fallthru
        _
      // Predicated region
      $region21: #{efficientnet_b7_forward.9} parent=11 // pred_check
        %p196 = pneg %p102
      $region22: #{efficientnet_b7_forward.9} parent=11 // pred_check_branch
        %198 = sbr.rel (%p196) target = $region24
      $region23: #{efficientnet_b7_forward.9} parent=11 // pred_region
        _
      $region24: #{efficientnet_b7_forward.9} parent=11 // pred_fallthru
        _
      // Predicated region
      $region25: #{efficientnet_b7_forward.9} parent=11 // pred_check
        %p199 = pneg %p123
      $region26: #{efficientnet_b7_forward.9} parent=11 // pred_check_branch
        %201 = sbr.rel (%p199) target = $region28
      $region27: #{efficientnet_b7_forward.9} parent=11 // pred_region
        _
      $region28: #{efficientnet_b7_forward.9} parent=11 // pred_fallthru
        _
    $region12: #{efficientnet_b7_forward.9} parent=5 // pred_fallthru
      _
    %p202 = scmp.lt.s32.totalorder %s13, 2
    // Predicated region
    $region29: #{efficientnet_b7_forward.9} parent=5 // pred_check
      %p203 = pneg %p202
    $region30: #{efficientnet_b7_forward.9} parent=5 // pred_check_branch
      %205 = sbr.rel (%p203) target = $region32
    $region31: #{efficientnet_b7_forward.9} parent=5 // pred_region
      // Predicated region
      $region33: #{efficientnet_b7_forward.9} parent=31 // pred_check
        %p206 = pneg %p33
      $region34: #{efficientnet_b7_forward.9} parent=31 // pred_check_branch
        %208 = sbr.rel (%p206) target = $region36
      $region35: #{efficientnet_b7_forward.9} parent=31 // pred_region
        %p209 = scmp.lt.s32.totalorder %s13, 1
        %s210 = scalar_select %p209, %s13, 1
        %s211 = smul.addr %s210, 16
        %s212 = smul.addr %s211, 2
        %s213 = scalar_lea.vmem %s0, %s212
      $region36: #{efficientnet_b7_forward.9} parent=31 // pred_fallthru
        _
    $region32: #{efficientnet_b7_forward.9} parent=5 // pred_fallthru
      _
    %p214 = scmp.le.s32.totalorder 1, %s13
    %p215 = scmp.lt.s32.totalorder %s13, 3
    %p216 = pnand %p214, %p215
    %p217 = pneg %p216
    // Predicated region
    $region37: #{efficientnet_b7_forward.9} parent=5 // pred_check
      _
    $region38: #{efficientnet_b7_forward.9} parent=5 // pred_check_branch
      %219 = sbr.rel (%p216) target = $region40
    $region39: #{efficientnet_b7_forward.9} parent=5 // pred_region
      %s220 = ssub.s32 %s13, 1
      %p221 = scmp.lt.s32.totalorder %s18, 1
      %s222 = scalar_select %p221, %s18, 1
      %s223 = smul.addr %s222, 16
      %s224 = smul.addr %s223, 2
      %s225 = scalar_lea.vmem %s0, %s224
      %p226 = pneg %p39
      %p227 = pneg %p36
      %p228 = pneg %p60
      %p229 = pneg %p57
      %p230 = pneg %p81
      %p231 = pneg %p78
      %p232 = pneg %p102
      %p233 = pneg %p99
      %p234 = pneg %p123
      %p235 = pneg %p120
      %p236 = pneg %p149
      %p237 = pneg %p146
      %p238 = scmp.lt.s32.totalorder %s18, 1
      %s239 = scalar_select %p238, %s18, 1
      %s240 = smul.addr %s239, 4
      %s241 = smul.addr %s240, 2
      %s242 = scalar_lea.vmem %s5, %s241
      %p243 = pneg %p175
      %p244 = pneg %p172
      %p245 = scmp.lt.s32.totalorder %s18, 1
      %s246 = scalar_select %p245, %s18, 1
      %s247 = scalar_lea.vmem %s6, %s246
      %p248 = scmp.lt.s32.totalorder %s18, 1
      %s249 = scalar_select %p248, %s18, 1
      %s250 = smul.addr %s249, 16
      %s251 = smul.addr %s250, 2
      %s252 = scalar_lea.vmem %s0, %s251
      %p253 = scmp.lt.s32.totalorder %s18, 1
      %s254 = scalar_select %p253, %s18, 1
      %s255 = smul.addr %s254, 4
      %s256 = smul.addr %s255, 2
      %s257 = scalar_lea.vmem %s5, %s256
      %p258 = scmp.lt.s32.totalorder %s18, 1
      %s259 = scalar_select %p258, %s18, 1
      %s260 = scalar_lea.vmem %s6, %s259
      %v261 = vld [vmem:[%s252] sm:$0x3]
      %v262 = vld [vmem:[%s252 + $0x2] sm:$0x3]
      %v263 = vld [vmem:[%s252 + $0x4] sm:$0x3]
      %v264 = vld [vmem:[%s252 + $0x6] sm:$0x3]
      %v265 = vld [vmem:[%s252 + $0x8] sm:$0x3]
      %v266 = vld [vmem:[%s252 + $0xa] sm:$0x3]
      %v267 = vld [vmem:[%s252 + $0xc] sm:$0x3]
      %v268 = vld [vmem:[%s252 + $0xe] sm:$0x3]
      %v269 = vld [vmem:[%s252 + $0x10] sm:$0x3]
      %v270 = vld [vmem:[%s252 + $0x12] sm:$0x3]
      %v271 = vld [vmem:[%s252 + $0x14] sm:$0x3]
      %v272 = vld [vmem:[%s252 + $0x16] sm:$0x3]
      %v273 = vld [vmem:[%s252 + $0x18] sm:$0x3]
      %v274 = vld [vmem:[%s252 + $0x1a] sm:$0x3]
      %v275 = vld [vmem:[%s252 + $0x1c] sm:$0x3]
      %v276 = vld [vmem:[%s252 + $0x1e] sm:$0x3]
      %v277 = vld [vmem:[%s1] sm:$0xf]
      %v278 = vld [vmem:[%s1 + $0x4] sm:$0xf]
      %v279 = vld [vmem:[%s1 + $0x8] sm:$0xf]
      %v280 = vld [vmem:[%s1 + $0xc] sm:$0xf]
      %v281 = vld [vmem:[%s1 + $0x10] sm:$0xf]
      %v282 = vld [vmem:[%s1 + $0x14] sm:$0xf]
      %v283 = vld [vmem:[%s1 + $0x18] sm:$0xf]
      %v284 = vld [vmem:[%s1 + $0x1c] sm:$0xf]
      %v285 = vld [vmem:[%s1 + $0x20] sm:$0xf]
      %v286 = vld [vmem:[%s1 + $0x24] sm:$0xf]
      %v287 = vld [vmem:[%s1 + $0x28] sm:$0xf]
      %v288 = vld [vmem:[%s1 + $0x2c] sm:$0xf]
      %v289 = vld [vmem:[%s1 + $0x30] sm:$0xf]
      %v290 = vld [vmem:[%s1 + $0x34] sm:$0xf]
      %v291 = vld [vmem:[%s1 + $0x38] sm:$0xf]
      %v292 = vld [vmem:[%s1 + $0x3c] sm:$0xf]
      %v293 = vld [vmem:[%s2] sm:$0x1]
      %v295 = vperm.slane %v293, 0
      %298 = vst [vmem:[#allocation1] ss:$4 sm:$0xff] %v261
      %s300 = scalar_lea.vmem [#allocation1], 1
      %301 = vst [vmem:[%s300] ss:$4 sm:$0xff] %v262
      %s303 = scalar_lea.vmem [#allocation1], 2
      %304 = vst [vmem:[%s303] ss:$4 sm:$0xff] %v263
      %s306 = scalar_lea.vmem [#allocation1], 3
      %307 = vst [vmem:[%s306] ss:$4 sm:$0xff] %v264
      %s309 = scalar_lea.vmem [#allocation1], 32
      %310 = vst [vmem:[%s309] ss:$4 sm:$0xff] %v265
      %s312 = scalar_lea.vmem [#allocation1], 33
      %313 = vst [vmem:[%s312] ss:$4 sm:$0xff] %v266
      %s315 = scalar_lea.vmem [#allocation1], 34
      %316 = vst [vmem:[%s315] ss:$4 sm:$0xff] %v267
      %s318 = scalar_lea.vmem [#allocation1], 35
      %319 = vst [vmem:[%s318] ss:$4 sm:$0xff] %v268
      %v320 = vld.sshfl [vmem:[#allocation1] sm:$0xff pattern:$0x73625140]
      %v321 = vld.sshfl [vmem:[#allocation1 + $0x20] sm:$0xff pattern:$0x73625140]
      %323 = vst [vmem:[#allocation1] ss:$4 sm:$0xff] %v269
      %325 = vst [vmem:[%s300] ss:$4 sm:$0xff] %v270
      %327 = vst [vmem:[%s303] ss:$4 sm:$0xff] %v271
      %329 = vst [vmem:[%s306] ss:$4 sm:$0xff] %v272
      %331 = vst [vmem:[%s309] ss:$4 sm:$0xff] %v273
      %333 = vst [vmem:[%s312] ss:$4 sm:$0xff] %v274
      %335 = vst [vmem:[%s315] ss:$4 sm:$0xff] %v275
      %337 = vst [vmem:[%s318] ss:$4 sm:$0xff] %v276
      %v338 = vld.sshfl [vmem:[#allocation1] sm:$0xff pattern:$0x73625140]
      %v339 = vld.sshfl [vmem:[#allocation1 + $0x20] sm:$0xff pattern:$0x73625140]
      %v360 = vunpack.c.l.b16 %v277
      %v361 = vunpack.c.l.b16 %v278
      %v362 = vunpack.c.l.b16 %v279
      %v363 = vunpack.c.l.b16 %v280
      %v364 = vunpack.c.l.b16 %v281
      %v365 = vunpack.c.l.b16 %v282
      %v366 = vunpack.c.l.b16 %v283
      %v367 = vunpack.c.l.b16 %v284
      %v368 = vunpack.c.l.b16 %v285
      %v369 = vunpack.c.l.b16 %v286
      %v370 = vunpack.c.l.b16 %v287
      %v371 = vunpack.c.l.b16 %v288
      %v372 = vunpack.c.l.b16 %v289
      %v373 = vunpack.c.l.b16 %v290
      %v374 = vunpack.c.l.b16 %v291
      %v375 = vunpack.c.l.b16 %v292
      %v376 = vpack.c.b16 %v361, %v360
      %v377 = vpack.c.b16 %v363, %v362
      %v378 = vpack.c.b16 %v365, %v364
      %v379 = vpack.c.b16 %v367, %v366
      %v380 = vpack.c.b16 %v369, %v368
      %v381 = vpack.c.b16 %v371, %v370
      %v382 = vpack.c.b16 %v373, %v372
      %v383 = vpack.c.b16 %v375, %v374
      %392 = vmatpush.bf16.msra.mxu0 %v383
      %393 = vmatpush.bf16.msra.mxu0 %v382
      %394 = vmatpush.bf16.msra.mxu0 %v381
      %395 = vmatpush.bf16.msra.mxu0 %v380
      %396 = vmatpush.bf16.msra.mxu0 %v379
      %397 = vmatpush.bf16.msra.mxu0 %v378
      %398 = vmatpush.bf16.msra.mxu0 %v377
      %399 = vmatpush.bf16.msra.mxu0 %v376
      %400 = vmatmul.bf16.gmra.mxu0 %v320
      %v401 = vpop.f32.mrf.mxu0
      %v402 = vadd.f32 %v295, %v401
      %v403 = vpop.f32.mrf.mxu0
      %v404 = vadd.f32 %v295, %v403
      %405 = vmatmul.bf16.gmra.mxu0 %v321
      %v406 = vpop.f32.mrf.mxu0
      %v407 = vadd.f32 %v295, %v406
      %v408 = vpop.f32.mrf.mxu0
      %v409 = vadd.f32 %v295, %v408
      %410 = vmatmul.bf16.gmra.mxu0 %v338
      %v411 = vpop.f32.mrf.mxu0
      %v412 = vadd.f32 %v295, %v411
      %v413 = vpop.f32.mrf.mxu0
      %v414 = vadd.f32 %v295, %v413
      %415 = vmatmul.bf16.gmra.mxu0 %v339
      %v416 = vpop.f32.mrf.mxu0
      %v417 = vadd.f32 %v295, %v416
      %v418 = vpop.f32.mrf.mxu0
      %v419 = vadd.f32 %v295, %v418
      %420 = vdwg.mxu0
      %v421 = vxor.u32 %v402, 2147483648
      %v422 = vxor.u32 %v404, 2147483648
      %v423 = vxor.u32 %v407, 2147483648
      %v424 = vxor.u32 %v409, 2147483648
      %v425 = vxor.u32 %v412, 2147483648
      %v426 = vxor.u32 %v414, 2147483648
      %v427 = vxor.u32 %v417, 2147483648
      %v428 = vxor.u32 %v419, 2147483648
      %v429 = vmul.f32 %v421, 1.442695
      %v430 = vpow.pop %v429
      %v431 = vmul.f32 %v422, 1.442695
      %v432 = vpow.pop %v431
      %v433 = vmul.f32 %v423, 1.442695
      %v434 = vpow.pop %v433
      %v435 = vmul.f32 %v424, 1.442695
      %v436 = vpow.pop %v435
      %v437 = vmul.f32 %v425, 1.442695
      %v438 = vpow.pop %v437
      %v439 = vmul.f32 %v426, 1.442695
      %v440 = vpow.pop %v439
      %v441 = vmul.f32 %v427, 1.442695
      %v442 = vpow.pop %v441
      %v443 = vmul.f32 %v428, 1.442695
      %v444 = vpow.pop %v443
      %v445 = vadd.f32 %v430, 1.0
      %v446 = vadd.f32 %v432, 1.0
      %v447 = vadd.f32 %v434, 1.0
      %v448 = vadd.f32 %v436, 1.0
      %v449 = vadd.f32 %v438, 1.0
      %v450 = vadd.f32 %v440, 1.0
      %v451 = vadd.f32 %v442, 1.0
      %v452 = vadd.f32 %v444, 1.0
      %v453 = vrcp.pop %v445
      %v454 = vmul.f32 %v445, %v453
      %v455 = vsub.f32 1.0, %v454
      %v456 = vmul.f32 %v453, %v455
      %v457 = vadd.f32 %v453, %v456
      %vm458 = vweird.f32 %v445
      %vm459 = vweird.f32 %v453
      %vm460 = vmor %vm458, %vm459
      %v461 = vsel %vm460, %v453, %v457
      %v462 = vand.u32 2147483647, %v445
      %vm463 = vcmp.eq.f32.partialorder %v462, 8.507059e+37
      %v464 = vand.u32 %v445, 2147483648
      %v465 = vor.u32 1.1754944e-38, %v464
      %v466 = vsel %vm463, %v465, %v461
      %v467 = vmul.f32 1.0, %v466
      %v468 = vrcp.pop %v446
      %v469 = vmul.f32 %v446, %v468
      %v470 = vsub.f32 1.0, %v469
      %v471 = vmul.f32 %v468, %v470
      %v472 = vadd.f32 %v468, %v471
      %vm473 = vweird.f32 %v446
      %vm474 = vweird.f32 %v468
      %vm475 = vmor %vm473, %vm474
      %v476 = vsel %vm475, %v468, %v472
      %v477 = vand.u32 2147483647, %v446
      %vm478 = vcmp.eq.f32.partialorder %v477, 8.507059e+37
      %v479 = vand.u32 %v446, 2147483648
      %v480 = vor.u32 1.1754944e-38, %v479
      %v481 = vsel %vm478, %v480, %v476
      %v482 = vmul.f32 1.0, %v481
      %v483 = vrcp.pop %v447
      %v484 = vmul.f32 %v447, %v483
      %v485 = vsub.f32 1.0, %v484
      %v486 = vmul.f32 %v483, %v485
      %v487 = vadd.f32 %v483, %v486
      %vm488 = vweird.f32 %v447
      %vm489 = vweird.f32 %v483
      %vm490 = vmor %vm488, %vm489
      %v491 = vsel %vm490, %v483, %v487
      %v492 = vand.u32 2147483647, %v447
      %vm493 = vcmp.eq.f32.partialorder %v492, 8.507059e+37
      %v494 = vand.u32 %v447, 2147483648
      %v495 = vor.u32 1.1754944e-38, %v494
      %v496 = vsel %vm493, %v495, %v491
      %v497 = vmul.f32 1.0, %v496
      %v498 = vrcp.pop %v448
      %v499 = vmul.f32 %v448, %v498
      %v500 = vsub.f32 1.0, %v499
      %v501 = vmul.f32 %v498, %v500
      %v502 = vadd.f32 %v498, %v501
      %vm503 = vweird.f32 %v448
      %vm504 = vweird.f32 %v498
      %vm505 = vmor %vm503, %vm504
      %v506 = vsel %vm505, %v498, %v502
      %v507 = vand.u32 2147483647, %v448
      %vm508 = vcmp.eq.f32.partialorder %v507, 8.507059e+37
      %v509 = vand.u32 %v448, 2147483648
      %v510 = vor.u32 1.1754944e-38, %v509
      %v511 = vsel %vm508, %v510, %v506
      %v512 = vmul.f32 1.0, %v511
      %v513 = vrcp.pop %v449
      %v514 = vmul.f32 %v449, %v513
      %v515 = vsub.f32 1.0, %v514
      %v516 = vmul.f32 %v513, %v515
      %v517 = vadd.f32 %v513, %v516
      %vm518 = vweird.f32 %v449
      %vm519 = vweird.f32 %v513
      %vm520 = vmor %vm518, %vm519
      %v521 = vsel %vm520, %v513, %v517
      %v522 = vand.u32 2147483647, %v449
      %vm523 = vcmp.eq.f32.partialorder %v522, 8.507059e+37
      %v524 = vand.u32 %v449, 2147483648
      %v525 = vor.u32 1.1754944e-38, %v524
      %v526 = vsel %vm523, %v525, %v521
      %v527 = vmul.f32 1.0, %v526
      %v528 = vrcp.pop %v450
      %v529 = vmul.f32 %v450, %v528
      %v530 = vsub.f32 1.0, %v529
      %v531 = vmul.f32 %v528, %v530
      %v532 = vadd.f32 %v528, %v531
      %vm533 = vweird.f32 %v450
      %vm534 = vweird.f32 %v528
      %vm535 = vmor %vm533, %vm534
      %v536 = vsel %vm535, %v528, %v532
      %v537 = vand.u32 2147483647, %v450
      %vm538 = vcmp.eq.f32.partialorder %v537, 8.507059e+37
      %v539 = vand.u32 %v450, 2147483648
      %v540 = vor.u32 1.1754944e-38, %v539
      %v541 = vsel %vm538, %v540, %v536
      %v542 = vmul.f32 1.0, %v541
      %v543 = vrcp.pop %v451
      %v544 = vmul.f32 %v451, %v543
      %v545 = vsub.f32 1.0, %v544
      %v546 = vmul.f32 %v543, %v545
      %v547 = vadd.f32 %v543, %v546
      %vm548 = vweird.f32 %v451
      %vm549 = vweird.f32 %v543
      %vm550 = vmor %vm548, %vm549
      %v551 = vsel %vm550, %v543, %v547
      %v552 = vand.u32 2147483647, %v451
      %vm553 = vcmp.eq.f32.partialorder %v552, 8.507059e+37
      %v554 = vand.u32 %v451, 2147483648
      %v555 = vor.u32 1.1754944e-38, %v554
      %v556 = vsel %vm553, %v555, %v551
      %v557 = vmul.f32 1.0, %v556
      %v558 = vrcp.pop %v452
      %v559 = vmul.f32 %v452, %v558
      %v560 = vsub.f32 1.0, %v559
      %v561 = vmul.f32 %v558, %v560
      %v562 = vadd.f32 %v558, %v561
      %vm563 = vweird.f32 %v452
      %vm564 = vweird.f32 %v558
      %vm565 = vmor %vm563, %vm564
      %v566 = vsel %vm565, %v558, %v562
      %v567 = vand.u32 2147483647, %v452
      %vm568 = vcmp.eq.f32.partialorder %v567, 8.507059e+37
      %v569 = vand.u32 %v452, 2147483648
      %v570 = vor.u32 1.1754944e-38, %v569
      %v571 = vsel %vm568, %v570, %v566
      %v572 = vmul.f32 1.0, %v571
      %v573 = vmul.f32 %v402, %v467
      %v574 = vmul.f32 %v404, %v482
      %v575 = vmul.f32 %v407, %v497
      %v576 = vmul.f32 %v409, %v512
      %v577 = vmul.f32 %v412, %v527
      %v578 = vmul.f32 %v414, %v542
      %v579 = vmul.f32 %v417, %v557
      %v580 = vmul.f32 %v419, %v572
      %v589 = vrot.slane %v573, 4
      %v590 = vrot.slane %v574, 4
      %v591 = vrot.slane %v575, 4
      %v592 = vrot.slane %v576, 4
      %v593 = vrot.slane %v577, 4
      %v594 = vrot.slane %v578, 4
      %v595 = vrot.slane %v579, 4
      %v596 = vrot.slane %v580, 4
      %v605 = vlaneseq
      %v606 = vshrl.u32 %v605, 7
      %vm607 = vcmp.ge.s32.totalorder %v606, 1
      %v608 = vsel %vm607, 1, 0
      %v609 = vcvt.s32.f32 %v608
      %v610 = vld [vmem:[%s3] sm:$0xff]
      %v611 = vld [vmem:[%s3 + $0x8] sm:$0x1]
      %vm612 = vcmask 1047556
      %v613 = vrot.slane %v575, 4
      %v614 = vsel %vm612, %v613, %v575
      %v615 = vrot.slane %v591, 4
      %v616 = vsel %vm612, %v615, %v591
      %v617 = vrot.slane %v576, 4
      %v618 = vsel %vm612, %v617, %v576
      %v619 = vrot.slane %v592, 4
      %v620 = vsel %vm612, %v619, %v592
      %v621 = vrot.slane %v614, 4
      %v622 = vrot.slane %v616, 4
      %v623 = vrot.slane %v618, 4
      %v624 = vrot.slane %v620, 4
      %v625 = vsel %vm612, %v621, %v575
      %v626 = vsel %vm612, %v622, %v591
      %v627 = vsel %vm612, %v623, %v576
      %v628 = vsel %vm612, %v624, %v592
      %v630 = vrot.slane %v609, 5
      %v632 = vmul.f32 %v625, %v630
      %v633 = vmul.f32 %v626, %v630
      %v634 = vmul.f32 %v627, %v630
      %v635 = vmul.f32 %v628, %v630
      %v636 = vrot.slane %v579, 4
      %v637 = vsel %vm612, %v636, %v579
      %v638 = vrot.slane %v595, 4
      %v639 = vsel %vm612, %v638, %v595
      %v640 = vrot.slane %v580, 4
      %v641 = vsel %vm612, %v640, %v580
      %v642 = vrot.slane %v596, 4
      %v643 = vsel %vm612, %v642, %v596
      %v644 = vrot.slane %v637, 4
      %v645 = vrot.slane %v639, 4
      %v646 = vrot.slane %v641, 4
      %v647 = vrot.slane %v643, 4
      %v648 = vsel %vm612, %v644, %v579
      %v649 = vsel %vm612, %v645, %v595
      %v650 = vsel %vm612, %v646, %v580
      %v651 = vsel %vm612, %v647, %v596
      %v652 = vmul.f32 %v648, %v630
      %v653 = vmul.f32 %v649, %v630
      %v654 = vmul.f32 %v650, %v630
      %v655 = vmul.f32 %v651, %v630
      %v656 = vperm.slane %v610, 4
      %v657 = vmul.f32 %v573, %v656
      %v658 = vmul.f32 %v589, %v656
      %v659 = vmul.f32 %v574, %v656
      %v660 = vmul.f32 %v590, %v656
      %v661 = vperm.slane %v610, 3
      %v662 = vmul.f32 %v632, %v661
      %v663 = vmul.f32 %v633, %v661
      %v664 = vmul.f32 %v634, %v661
      %v665 = vmul.f32 %v635, %v661
      %v670 = vrot.slane %v662, 4
      %v671 = vrot.slane %v663, 4
      %v672 = vrot.slane %v664, 4
      %v673 = vrot.slane %v665, 4
      %vm674 = vcmask 1040384
      %vm675 = vcmask 1044484
      %vm676 = vmor %vm674, %vm675
      %v677 = vrot.slane %v662, 7
      %v678 = vrot.slane %v677, 4
      %v679 = vrot.slane %v670, 7
      %v680 = vsel %vm676, %v678, %v679
      %v681 = vrot.slane %v663, 7
      %v682 = vrot.slane %v681, 4
      %v683 = vrot.slane %v671, 7
      %v684 = vsel %vm676, %v682, %v683
      %v685 = vrot.slane %v664, 7
      %v686 = vrot.slane %v685, 4
      %v687 = vrot.slane %v672, 7
      %v688 = vsel %vm676, %v686, %v687
      %v689 = vrot.slane %v665, 7
      %v690 = vrot.slane %v689, 4
      %v691 = vrot.slane %v673, 7
      %v692 = vsel %vm676, %v690, %v691
      %v697 = vadd.f32 %v657, %v680
      %v698 = vadd.f32 %v658, %v684
      %v699 = vadd.f32 %v659, %v688
      %v700 = vadd.f32 %v660, %v692
      %v701 = vperm.slane %v610, 5
      %v702 = vmul.f32 %v575, %v701
      %v703 = vmul.f32 %v591, %v701
      %v704 = vmul.f32 %v576, %v701
      %v705 = vmul.f32 %v592, %v701
      %v706 = vadd.f32 %v697, %v702
      %v707 = vadd.f32 %v698, %v703
      %v708 = vadd.f32 %v699, %v704
      %v709 = vadd.f32 %v700, %v705
      %v710 = vperm.slane %v610, 1
      %v711 = vmul.f32 %v710, 0.0
      %v712 = vmul.f32 %v577, %v710
      %v713 = vmul.f32 %v593, %v710
      %v714 = vmul.f32 %v578, %v710
      %v715 = vadd.f32 %v706, %v711
      %v716 = vadd.f32 %v707, %v712
      %v717 = vadd.f32 %v708, %v713
      %v718 = vadd.f32 %v709, %v714
      %v719 = vperm.slane %v610, 7
      %v720 = vmul.f32 %v577, %v719
      %v721 = vmul.f32 %v593, %v719
      %v722 = vmul.f32 %v578, %v719
      %v723 = vmul.f32 %v594, %v719
      %v724 = vadd.f32 %v715, %v720
      %v725 = vadd.f32 %v716, %v721
      %v726 = vadd.f32 %v717, %v722
      %v727 = vadd.f32 %v718, %v723
      %v731 = vrot.slane %v652, 3
      %v732 = vrot.slane %v653, 3
      %v733 = vrot.slane %v654, 3
      %v737 = vperm.slane %v610, 0
      %v738 = vmul.f32 %v737, 0.0
      %v739 = vmul.f32 %v731, %v737
      %v740 = vmul.f32 %v732, %v737
      %v741 = vmul.f32 %v733, %v737
      %v742 = vadd.f32 %v724, %v738
      %v743 = vadd.f32 %v725, %v739
      %v744 = vadd.f32 %v726, %v740
      %v745 = vadd.f32 %v727, %v741
      %v746 = vperm.slane %v610, 2
      %v747 = vmul.f32 %v746, 0.0
      %v748 = vmul.f32 %v579, %v746
      %v749 = vmul.f32 %v595, %v746
      %v750 = vmul.f32 %v580, %v746
      %v751 = vadd.f32 %v742, %v747
      %v752 = vadd.f32 %v743, %v748
      %v753 = vadd.f32 %v744, %v749
      %v754 = vadd.f32 %v745, %v750
      %v755 = vperm.slane %v610, 6
      %v756 = vmul.f32 %v652, %v755
      %v757 = vmul.f32 %v653, %v755
      %v758 = vmul.f32 %v654, %v755
      %v759 = vmul.f32 %v655, %v755
      %v764 = vrot.slane %v756, 4
      %v765 = vrot.slane %v757, 4
      %v766 = vrot.slane %v758, 4
      %v767 = vrot.slane %v759, 4
      %v768 = vrot.slane %v756, 7
      %v769 = vrot.slane %v768, 4
      %v770 = vrot.slane %v764, 7
      %v771 = vsel %vm676, %v769, %v770
      %v772 = vrot.slane %v757, 7
      %v773 = vrot.slane %v772, 4
      %v774 = vrot.slane %v765, 7
      %v775 = vsel %vm676, %v773, %v774
      %v776 = vrot.slane %v758, 7
      %v777 = vrot.slane %v776, 4
      %v778 = vrot.slane %v766, 7
      %v779 = vsel %vm676, %v777, %v778
      %v780 = vrot.slane %v759, 7
      %v781 = vrot.slane %v780, 4
      %v782 = vrot.slane %v767, 7
      %v783 = vsel %vm676, %v781, %v782
      %v788 = vadd.f32 %v751, %v771
      %v789 = vadd.f32 %v752, %v775
      %v790 = vadd.f32 %v753, %v779
      %v791 = vadd.f32 %v754, %v783
      %v792 = vperm.slane %v611, 0
      %v793 = vmul.f32 %v579, %v792
      %v794 = vmul.f32 %v595, %v792
      %v795 = vmul.f32 %v580, %v792
      %v796 = vmul.f32 %v596, %v792
      %v797 = vadd.f32 %v788, %v793
      %v798 = vadd.f32 %v789, %v794
      %v799 = vadd.f32 %v790, %v795
      %v800 = vadd.f32 %v791, %v796
      %v801 = vld [vmem:[%s4] sm:$0x1]
      %v803 = vperm.slane %v801, 0
      %v805 = vadd.f32 %v797, %v803
      %v806 = vadd.f32 %v798, %v803
      %v807 = vadd.f32 %v799, %v803
      %v808 = vadd.f32 %v800, %v803
      %v809 = vxor.u32 %v805, 2147483648
      %v810 = vxor.u32 %v806, 2147483648
      %v811 = vxor.u32 %v807, 2147483648
      %v812 = vxor.u32 %v808, 2147483648
      %v813 = vmul.f32 %v809, 1.442695
      %v814 = vpow.pop %v813
      %v815 = vmul.f32 %v810, 1.442695
      %v816 = vpow.pop %v815
      %v817 = vmul.f32 %v811, 1.442695
      %v818 = vpow.pop %v817
      %v819 = vmul.f32 %v812, 1.442695
      %v820 = vpow.pop %v819
      %v821 = vadd.f32 %v814, 1.0
      %v822 = vadd.f32 %v816, 1.0
      %v823 = vadd.f32 %v818, 1.0
      %v824 = vadd.f32 %v820, 1.0
      %v825 = vrcp.pop %v821
      %v826 = vmul.f32 %v821, %v825
      %v827 = vsub.f32 1.0, %v826
      %v828 = vmul.f32 %v825, %v827
      %v829 = vadd.f32 %v825, %v828
      %vm830 = vweird.f32 %v821
      %vm831 = vweird.f32 %v825
      %vm832 = vmor %vm830, %vm831
      %v833 = vsel %vm832, %v825, %v829
      %v834 = vand.u32 2147483647, %v821
      %vm835 = vcmp.eq.f32.partialorder %v834, 8.507059e+37
      %v836 = vand.u32 %v821, 2147483648
      %v837 = vor.u32 1.1754944e-38, %v836
      %v838 = vsel %vm835, %v837, %v833
      %v839 = vmul.f32 1.0, %v838
      %v840 = vrcp.pop %v822
      %v841 = vmul.f32 %v822, %v840
      %v842 = vsub.f32 1.0, %v841
      %v843 = vmul.f32 %v840, %v842
      %v844 = vadd.f32 %v840, %v843
      %vm845 = vweird.f32 %v822
      %vm846 = vweird.f32 %v840
      %vm847 = vmor %vm845, %vm846
      %v848 = vsel %vm847, %v840, %v844
      %v849 = vand.u32 2147483647, %v822
      %vm850 = vcmp.eq.f32.partialorder %v849, 8.507059e+37
      %v851 = vand.u32 %v822, 2147483648
      %v852 = vor.u32 1.1754944e-38, %v851
      %v853 = vsel %vm850, %v852, %v848
      %v854 = vmul.f32 1.0, %v853
      %v855 = vrcp.pop %v823
      %v856 = vmul.f32 %v823, %v855
      %v857 = vsub.f32 1.0, %v856
      %v858 = vmul.f32 %v855, %v857
      %v859 = vadd.f32 %v855, %v858
      %vm860 = vweird.f32 %v823
      %vm861 = vweird.f32 %v855
      %vm862 = vmor %vm860, %vm861
      %v863 = vsel %vm862, %v855, %v859
      %v864 = vand.u32 2147483647, %v823
      %vm865 = vcmp.eq.f32.partialorder %v864, 8.507059e+37
      %v866 = vand.u32 %v823, 2147483648
      %v867 = vor.u32 1.1754944e-38, %v866
      %v868 = vsel %vm865, %v867, %v863
      %v869 = vmul.f32 1.0, %v868
      %v870 = vrcp.pop %v824
      %v871 = vmul.f32 %v824, %v870
      %v872 = vsub.f32 1.0, %v871
      %v873 = vmul.f32 %v870, %v872
      %v874 = vadd.f32 %v870, %v873
      %vm875 = vweird.f32 %v824
      %vm876 = vweird.f32 %v870
      %vm877 = vmor %vm875, %vm876
      %v878 = vsel %vm877, %v870, %v874
      %v879 = vand.u32 2147483647, %v824
      %vm880 = vcmp.eq.f32.partialorder %v879, 8.507059e+37
      %v881 = vand.u32 %v824, 2147483648
      %v882 = vor.u32 1.1754944e-38, %v881
      %v883 = vsel %vm880, %v882, %v878
      %v884 = vmul.f32 1.0, %v883
      %v885 = vmul.f32 %v805, %v839
      %v886 = vmul.f32 %v806, %v854
      %v887 = vmul.f32 %v807, %v869
      %v888 = vmul.f32 %v808, %v884
      %v889 = vpack.c.bf16 %v885, %v885
      %v890 = vpack.c.bf16 %v886, %v886
      %v891 = vpack.c.bf16 %v887, %v887
      %v892 = vpack.c.bf16 %v888, %v888
      %893 = vst [vmem:[%s257] sm:$0x3] %v889
      %894 = vst [vmem:[%s257 + $0x2] sm:$0x3] %v890
      %895 = vst [vmem:[%s257 + $0x4] sm:$0x3] %v891
      %896 = vst [vmem:[%s257 + $0x6] sm:$0x3] %v892
      %901 = vst [vmem:[#allocation1] ss:$2 sm:$0xff] %v885
      %s902 = scalar_lea.vmem [#allocation1], 1
      %903 = vst [vmem:[%s902] ss:$2 sm:$0xff] %v886
      %s904 = scalar_lea.vmem [#allocation1], 16
      %905 = vst [vmem:[%s904] ss:$2 sm:$0xff] %v887
      %s906 = scalar_lea.vmem [#allocation1], 17
      %907 = vst [vmem:[%s906] ss:$2 sm:$0xff] %v888
      %v908 = vld.sshfl [vmem:[#allocation1] sm:$0xff pattern:$0x75316420]
      %v909 = vld.sshfl [vmem:[#allocation1 + $0x10] sm:$0xff pattern:$0x75316420]
      %v912 = vadd.f32 %v908, %v909
      %v913 = vrot.slane %v912, 4
      %v914 = vadd.f32 %v912, %v913
      %v915 = vrot.slane %v914, 2
      %v916 = vadd.f32 %v914, %v915
      %v917 = vrot.slane %v916, 1
      %v918 = vadd.f32 %v916, %v917
      %v919 = vmul.f32 %v918, 0.0625
      %920 = vst [vmem:[%s260] sm:$0x1] %v919
      %p921 = scmp.lt.s32.totalorder %s18, 1
      %s922 = scalar_select %p921, %s18, 1
      %s923 = smul.addr %s922, 4
      %s924 = smul.addr %s923, 2
      %s925 = scalar_lea.vmem %s5, %s924
      %p926 = scmp.lt.s32.totalorder %s18, 1
      %s927 = scalar_select %p926, %s18, 1
      %s928 = scalar_lea.vmem %s6, %s927
      // Predicated region
      $region41: #{efficientnet_b7_forward.9} parent=39 // pred_check
        %p929 = pneg %p146
      $region42: #{efficientnet_b7_forward.9} parent=39 // pred_check_branch
        %931 = sbr.rel (%p929) target = $region44
      $region43: #{efficientnet_b7_forward.9} parent=39 // pred_region
        _
      $region44: #{efficientnet_b7_forward.9} parent=39 // pred_fallthru
        _
      // Predicated region
      $region45: #{efficientnet_b7_forward.9} parent=39 // pred_check
        %p932 = pneg %p172
      $region46: #{efficientnet_b7_forward.9} parent=39 // pred_check_branch
        %934 = sbr.rel (%p932) target = $region48
      $region47: #{efficientnet_b7_forward.9} parent=39 // pred_region
        _
      $region48: #{efficientnet_b7_forward.9} parent=39 // pred_fallthru
        _
    $region40: #{efficientnet_b7_forward.9} parent=5 // pred_fallthru
      _
    %p935 = scmp.le.s32.totalorder 2, %s13
    // Predicated region
    $region49: #{efficientnet_b7_forward.9} parent=5 // pred_check
      %p936 = pneg %p935
    $region50: #{efficientnet_b7_forward.9} parent=5 // pred_check_branch
      %938 = sbr.rel (%p936) target = $region52
    $region51: #{efficientnet_b7_forward.9} parent=5 // pred_region
      %s939 = ssub.s32 %s13, 2
      // Predicated region
      $region53: #{efficientnet_b7_forward.9} parent=51 // pred_check
        %p940 = pneg %p152
      $region54: #{efficientnet_b7_forward.9} parent=51 // pred_check_branch
        %942 = sbr.rel (%p940) target = $region56
      $region55: #{efficientnet_b7_forward.9} parent=51 // pred_region
        %p943 = scmp.lt.s32.totalorder %s19, 1
        %s944 = scalar_select %p943, %s19, 1
        %s945 = smul.addr %s944, 4
        %s946 = smul.addr %s945, 2
        %s947 = scalar_lea.vmem %s5, %s946
      $region56: #{efficientnet_b7_forward.9} parent=51 // pred_fallthru
        _
      // Predicated region
      $region57: #{efficientnet_b7_forward.9} parent=51 // pred_check
        %p948 = pneg %p178
      $region58: #{efficientnet_b7_forward.9} parent=51 // pred_check_branch
        %950 = sbr.rel (%p948) target = $region60
      $region59: #{efficientnet_b7_forward.9} parent=51 // pred_region
        %p951 = scmp.lt.s32.totalorder %s19, 1
        %s952 = scalar_select %p951, %s19, 1
        %s953 = scalar_lea.vmem %s6, %s952
      $region60: #{efficientnet_b7_forward.9} parent=51 // pred_fallthru
        _
    $region52: #{efficientnet_b7_forward.9} parent=5 // pred_fallthru
      _
  $region6: #{efficientnet_b7_forward.9} parent=0 // loop_footer
    %s17 = sadd.s32 1, %s13
  $region7: #{efficientnet_b7_forward.9} parent=0 // loop_footer_branch
    %12 = sbr.rel target = $region3
  $region8: #{efficientnet_b7_forward.9} parent=0 // loop_exit
    _

// kernel: efficientnet_b7_forward.11
$region0: #{efficientnet_b7_forward.11}
  #allocation0 [shape = 'u32[]', space=smem, size = 0x4, offset = 0x4, fixed_abs, tag = 'smem constant byte address 0x4 - core index']
  #allocation1 [shape = 'u32[72,128]{1,0:T(1,128)}', space=vmem, size = 0x9000, scoped, tag = 'internal scratch']
  %s0 = inlined_call_operand.vmem [shape: bf16[2,16,128], index: 0, kind: input, shape index: {}]
  %s1 = inlined_call_operand.vmem [shape: bf16[128,256], index: 1, kind: input, shape index: {}]
  %s2 = inlined_call_operand.vmem [shape: f32[1,256], index: 2, kind: input, shape index: {}]
  %s3 = inlined_call_operand.vmem [shape: bf16[256,128], index: 3, kind: input, shape index: {}]
  %s4 = inlined_call_operand.vmem [shape: f32[1,128], index: 4, kind: input, shape index: {}]
  %s5 = inlined_call_operand.hbm [shape: f32[2,1,128], index: 5, kind: output, shape index: {}]
  %s6 = sld [smem:[#allocation0]]
  $region53: #{efficientnet_b7_forward.11} parent=0
    _
  %s8 = ssub.s32 1, %s6
  %s9 = scalar_select 0, %s8, %s6
  $region1: #{efficientnet_b7_forward.11} parent=0
    #allocation2 [shape = 'u8[1024]{0}', space=vmem, size = 0x400, scoped, tag = 'output window, operand 0']
    #allocation3 [shape = 's32[2]{0}', space=sflag, size = 0x8, scoped, tag = 'scoped memory for efficientnet_b7_forward.11']
    %10 = vsyncpa [#allocation3], 0
    %s11 = scalar_lea.sflag [#allocation3], 1
    %12 = vsyncpa %s11, 0
    loop: start=0, step=1, limit=4
    $region2: #{efficientnet_b7_forward.11} parent=1 // loop_pre_header
      _
    $region3: #{efficientnet_b7_forward.11} parent=1 // loop_header
      %s14 = sphi 0, %s18
      %p15 = scmp.ge.s32.totalorder %s14, 4
      %s24 = sphi 0, %s26
      %s27 = sphi 0, %s24
      %s28 = sphi 0, %s27
      %s44 = sphi 0, %s28
      %s48 = sphi 0, %s48
      %s50 = sphi 0, %s48
      %s51 = sphi 0, %s50
      %s65 = sphi 0, %s51
      %s69 = sphi 0, %s69
      %s71 = sphi 0, %s69
      %s72 = sphi 0, %s71
      %s86 = sphi 0, %s72
      %s90 = sphi 0, %s90
      %s92 = sphi 0, %s90
      %s93 = sphi 0, %s92
      %s107 = sphi 0, %s93
      %s111 = sphi 0, %s111
      %s113 = sphi 0, %s111
      %s114 = sphi 0, %s113
      %s128 = sphi 0, %s114
      %s134 = sphi 0, %s136
      %s137 = sphi 0, %s134
      %s138 = sphi 0, %s137
      %s154 = sphi 0, %s138
    $region4: #{efficientnet_b7_forward.11} parent=1 // loop_header_branch
      %17 = sbr.rel (%p15) target = $region8
    $region5: #{efficientnet_b7_forward.11} parent=1 // loop_body
      %s19 = ssub.s32 %s14, 1
      %s20 = ssub.s32 %s14, 2
      %s21 = sadd.s32 %s14, 1
      %s22 = ssub.s32 %s14, %s21
      %p23 = scmp.eq.s32.totalorder %s22, 0
      %s25 = sadd.s32 %s24, 1
      %s26 = scalar_select %p23, %s24, %s25
      %p29 = pneg %p23
      %p30 = scmp.eq.s32.totalorder %s14, 1
      %p31 = por %p29, %p30
      %p32 = scmp.ne.s32.totalorder %s24, %s27
      %p33 = scmp.eq.s32.totalorder %s14, 0
      %p34 = por %p32, %p33
      %p35 = scmp.ne.s32.totalorder %s24, %s27
      %p36 = scmp.eq.s32.totalorder %s19, 1
      %p37 = por %p35, %p36
      %p38 = scmp.ne.s32.totalorder %s27, %s28
      %p39 = scmp.eq.s32.totalorder %s19, 0
      %p40 = por %p38, %p39
      %p41 = scmp.ne.s32.totalorder %s27, %s28
      %p42 = scmp.eq.s32.totalorder %s20, 1
      %p43 = por %p41, %p42
      %p45 = scmp.ne.s32.totalorder %s28, %s44
      %p46 = scmp.eq.s32.totalorder %s20, 0
      %p47 = por %p45, %p46
      %s49 = sadd.s32 %s48, 1
      %p52 = scmp.eq.s32.totalorder %s14, 1
      %p53 = scmp.ne.s32.totalorder %s48, %s50
      %p54 = scmp.eq.s32.totalorder %s14, 0
      %p55 = por %p53, %p54
      %p56 = scmp.ne.s32.totalorder %s48, %s50
      %p57 = scmp.eq.s32.totalorder %s19, 1
      %p58 = por %p56, %p57
      %p59 = scmp.ne.s32.totalorder %s50, %s51
      %p60 = scmp.eq.s32.totalorder %s19, 0
      %p61 = por %p59, %p60
      %p62 = scmp.ne.s32.totalorder %s50, %s51
      %p63 = scmp.eq.s32.totalorder %s20, 1
      %p64 = por %p62, %p63
      %p66 = scmp.ne.s32.totalorder %s51, %s65
      %p67 = scmp.eq.s32.totalorder %s20, 0
      %p68 = por %p66, %p67
      %s70 = sadd.s32 %s69, 1
      %p73 = scmp.eq.s32.totalorder %s14, 1
      %p74 = scmp.ne.s32.totalorder %s69, %s71
      %p75 = scmp.eq.s32.totalorder %s14, 0
      %p76 = por %p74, %p75
      %p77 = scmp.ne.s32.totalorder %s69, %s71
      %p78 = scmp.eq.s32.totalorder %s19, 1
      %p79 = por %p77, %p78
      %p80 = scmp.ne.s32.totalorder %s71, %s72
      %p81 = scmp.eq.s32.totalorder %s19, 0
      %p82 = por %p80, %p81
      %p83 = scmp.ne.s32.totalorder %s71, %s72
      %p84 = scmp.eq.s32.totalorder %s20, 1
      %p85 = por %p83, %p84
      %p87 = scmp.ne.s32.totalorder %s72, %s86
      %p88 = scmp.eq.s32.totalorder %s20, 0
      %p89 = por %p87, %p88
      %s91 = sadd.s32 %s90, 1
      %p94 = scmp.eq.s32.totalorder %s14, 1
      %p95 = scmp.ne.s32.totalorder %s90, %s92
      %p96 = scmp.eq.s32.totalorder %s14, 0
      %p97 = por %p95, %p96
      %p98 = scmp.ne.s32.totalorder %s90, %s92
      %p99 = scmp.eq.s32.totalorder %s19, 1
      %p100 = por %p98, %p99
      %p101 = scmp.ne.s32.totalorder %s92, %s93
      %p102 = scmp.eq.s32.totalorder %s19, 0
      %p103 = por %p101, %p102
      %p104 = scmp.ne.s32.totalorder %s92, %s93
      %p105 = scmp.eq.s32.totalorder %s20, 1
      %p106 = por %p104, %p105
      %p108 = scmp.ne.s32.totalorder %s93, %s107
      %p109 = scmp.eq.s32.totalorder %s20, 0
      %p110 = por %p108, %p109
      %s112 = sadd.s32 %s111, 1
      %p115 = scmp.eq.s32.totalorder %s14, 1
      %p116 = scmp.ne.s32.totalorder %s111, %s113
      %p117 = scmp.eq.s32.totalorder %s14, 0
      %p118 = por %p116, %p117
      %p119 = scmp.ne.s32.totalorder %s111, %s113
      %p120 = scmp.eq.s32.totalorder %s19, 1
      %p121 = por %p119, %p120
      %p122 = scmp.ne.s32.totalorder %s113, %s114
      %p123 = scmp.eq.s32.totalorder %s19, 0
      %p124 = por %p122, %p123
      %p125 = scmp.ne.s32.totalorder %s113, %s114
      %p126 = scmp.eq.s32.totalorder %s20, 1
      %p127 = por %p125, %p126
      %p129 = scmp.ne.s32.totalorder %s114, %s128
      %p130 = scmp.eq.s32.totalorder %s20, 0
      %p131 = por %p129, %p130
      %s132 = ssub.s32 %s14, %s21
      %p133 = scmp.eq.s32.totalorder %s132, 0
      %s135 = sadd.s32 %s134, 1
      %s136 = scalar_select %p133, %s134, %s135
      %p139 = pneg %p133
      %p140 = scmp.eq.s32.totalorder %s14, 1
      %p141 = por %p139, %p140
      %p142 = scmp.ne.s32.totalorder %s134, %s137
      %p143 = scmp.eq.s32.totalorder %s14, 0
      %p144 = por %p142, %p143
      %p145 = scmp.ne.s32.totalorder %s134, %s137
      %p146 = scmp.eq.s32.totalorder %s19, 1
      %p147 = por %p145, %p146
      %p148 = scmp.ne.s32.totalorder %s137, %s138
      %p149 = scmp.eq.s32.totalorder %s19, 0
      %p150 = por %p148, %p149
      %p151 = scmp.ne.s32.totalorder %s137, %s138
      %p152 = scmp.eq.s32.totalorder %s20, 1
      %p153 = por %p151, %p152
      %p155 = scmp.ne.s32.totalorder %s138, %s154
      %p156 = scmp.eq.s32.totalorder %s20, 0
      %p157 = por %p155, %p156
      %p158 = scmp.le.s32.totalorder 1, %s14
      %p159 = scmp.lt.s32.totalorder %s14, 3
      %p160 = pnand %p158, %p159
      %p161 = pneg %p160
      // Predicated region
      $region9: #{efficientnet_b7_forward.11} parent=5 // pred_check
        _
      $region10: #{efficientnet_b7_forward.11} parent=5 // pred_check_branch
        %163 = sbr.rel (%p160) target = $region12
      $region11: #{efficientnet_b7_forward.11} parent=5 // pred_region
        %s164 = ssub.s32 %s14, 1
        // Predicated region
        $region13: #{efficientnet_b7_forward.11} parent=11 // pred_check
          %p165 = pneg %p61
        $region14: #{efficientnet_b7_forward.11} parent=11 // pred_check_branch
          %167 = sbr.rel (%p165) target = $region16
        $region15: #{efficientnet_b7_forward.11} parent=11 // pred_region
          _
        $region16: #{efficientnet_b7_forward.11} parent=11 // pred_fallthru
          _
        // Predicated region
        $region17: #{efficientnet_b7_forward.11} parent=11 // pred_check
          %p168 = pneg %p82
        $region18: #{efficientnet_b7_forward.11} parent=11 // pred_check_branch
          %170 = sbr.rel (%p168) target = $region20
        $region19: #{efficientnet_b7_forward.11} parent=11 // pred_region
          _
        $region20: #{efficientnet_b7_forward.11} parent=11 // pred_fallthru
          _
        // Predicated region
        $region21: #{efficientnet_b7_forward.11} parent=11 // pred_check
          %p171 = pneg %p103
        $region22: #{efficientnet_b7_forward.11} parent=11 // pred_check_branch
          %173 = sbr.rel (%p171) target = $region24
        $region23: #{efficientnet_b7_forward.11} parent=11 // pred_region
          _
        $region24: #{efficientnet_b7_forward.11} parent=11 // pred_fallthru
          _
        // Predicated region
        $region25: #{efficientnet_b7_forward.11} parent=11 // pred_check
          %p174 = pneg %p124
        $region26: #{efficientnet_b7_forward.11} parent=11 // pred_check_branch
          %176 = sbr.rel (%p174) target = $region28
        $region27: #{efficientnet_b7_forward.11} parent=11 // pred_region
          _
        $region28: #{efficientnet_b7_forward.11} parent=11 // pred_fallthru
          _
      $region12: #{efficientnet_b7_forward.11} parent=5 // pred_fallthru
        _
      %p177 = scmp.lt.s32.totalorder %s14, 2
      // Predicated region
      $region29: #{efficientnet_b7_forward.11} parent=5 // pred_check
        %p178 = pneg %p177
      $region30: #{efficientnet_b7_forward.11} parent=5 // pred_check_branch
        %180 = sbr.rel (%p178) target = $region32
      $region31: #{efficientnet_b7_forward.11} parent=5 // pred_region
        // Predicated region
        $region33: #{efficientnet_b7_forward.11} parent=31 // pred_check
          %p181 = pneg %p34
        $region34: #{efficientnet_b7_forward.11} parent=31 // pred_check_branch
          %183 = sbr.rel (%p181) target = $region36
        $region35: #{efficientnet_b7_forward.11} parent=31 // pred_region
          %p184 = scmp.lt.s32.totalorder %s14, 1
          %s185 = scalar_select %p184, %s14, 1
          %s186 = smul.addr %s185, 2
          %s187 = smul.addr %s186, 4
          %s188 = scalar_lea.vmem %s0, %s187
        $region36: #{efficientnet_b7_forward.11} parent=31 // pred_fallthru
          _
      $region32: #{efficientnet_b7_forward.11} parent=5 // pred_fallthru
        _
      %p189 = scmp.le.s32.totalorder 1, %s14
      %p190 = scmp.lt.s32.totalorder %s14, 3
      %p191 = pnand %p189, %p190
      %p192 = pneg %p191
      // Predicated region
      $region37: #{efficientnet_b7_forward.11} parent=5 // pred_check
        _
      $region38: #{efficientnet_b7_forward.11} parent=5 // pred_check_branch
        %194 = sbr.rel (%p191) target = $region40
      $region39: #{efficientnet_b7_forward.11} parent=5 // pred_region
        %s195 = ssub.s32 %s14, 1
        %p196 = scmp.lt.s32.totalorder %s19, 1
        %s197 = scalar_select %p196, %s19, 1
        %s198 = smul.addr %s197, 2
        %s199 = smul.addr %s198, 4
        %s200 = scalar_lea.vmem %s0, %s199
        %p201 = pneg %p40
        %p202 = pneg %p37
        %p203 = pneg %p61
        %p204 = pneg %p58
        %p205 = pneg %p82
        %p206 = pneg %p79
        %p207 = pneg %p103
        %p208 = pneg %p100
        %p209 = pneg %p124
        %p210 = pneg %p121
        %p211 = pneg %p150
        %p212 = pneg %p147
        %s213 = sand.u32 %s137, 1
        %s214 = scalar_lea.sflag [#allocation3], %s213
        %s215 = sand.u32 %s137, 1
        %s216 = scalar_lea.vmem [#allocation2], %s215
        %p217 = scmp.lt.s32.totalorder %s19, 1
        %s218 = scalar_select %p217, %s19, 1
        %s219 = smul.addr %s218, 2
        %s220 = smul.addr %s219, 4
        %s221 = scalar_lea.vmem %s0, %s220
        %v222 = vld [vmem:[%s221] sm:$0xf]
        %v223 = vld [vmem:[%s221 + $0x4] sm:$0xf]
        %v224 = vld [vmem:[%s1] sm:$0xff]
        %v225 = vld [vmem:[%s1 + $0x8] sm:$0xff]
        %v226 = vld [vmem:[%s1 + $0x10] sm:$0xff]
        %v227 = vld [vmem:[%s1 + $0x18] sm:$0xff]
        %v228 = vld [vmem:[%s1 + $0x20] sm:$0xff]
        %v229 = vld [vmem:[%s1 + $0x28] sm:$0xff]
        %v230 = vld [vmem:[%s1 + $0x30] sm:$0xff]
        %v231 = vld [vmem:[%s1 + $0x38] sm:$0xff]
        %v232 = vld [vmem:[%s1 + $0x40] sm:$0xff]
        %v233 = vld [vmem:[%s1 + $0x48] sm:$0xff]
        %v234 = vld [vmem:[%s1 + $0x50] sm:$0xff]
        %v235 = vld [vmem:[%s1 + $0x58] sm:$0xff]
        %v236 = vld [vmem:[%s1 + $0x60] sm:$0xff]
        %v237 = vld [vmem:[%s1 + $0x68] sm:$0xff]
        %v238 = vld [vmem:[%s1 + $0x70] sm:$0xff]
        %v239 = vld [vmem:[%s1 + $0x78] sm:$0xff]
        %v240 = vld [vmem:[%s2] sm:$0x3]
        %v242 = vperm.slane %v240, 0
        %v243 = vperm.slane %v240, 1
        %v248 = vunpack.c.l.b16 %v222
        %v249 = vunpack.c.l.b16 %v223
        %v250 = vpack.c.b16 %v249, %v248
        %v268 = vunpack.c.l.b16 %v224
        %v269 = vunpack.c.h.b16 %v224
        %v270 = vunpack.c.l.b16 %v225
        %v271 = vunpack.c.h.b16 %v225
        %v272 = vunpack.c.l.b16 %v226
        %v273 = vunpack.c.h.b16 %v226
        %v274 = vunpack.c.l.b16 %v227
        %v275 = vunpack.c.h.b16 %v227
        %v276 = vunpack.c.l.b16 %v228
        %v277 = vunpack.c.h.b16 %v228
        %v278 = vunpack.c.l.b16 %v229
        %v279 = vunpack.c.h.b16 %v229
        %v280 = vunpack.c.l.b16 %v230
        %v281 = vunpack.c.h.b16 %v230
        %v282 = vunpack.c.l.b16 %v231
        %v283 = vunpack.c.h.b16 %v231
        %v284 = vunpack.c.l.b16 %v232
        %v285 = vunpack.c.h.b16 %v232
        %v286 = vunpack.c.l.b16 %v233
        %v287 = vunpack.c.h.b16 %v233
        %v288 = vunpack.c.l.b16 %v234
        %v289 = vunpack.c.h.b16 %v234
        %v290 = vunpack.c.l.b16 %v235
        %v291 = vunpack.c.h.b16 %v235
        %v292 = vunpack.c.l.b16 %v236
        %v293 = vunpack.c.h.b16 %v236
        %v294 = vunpack.c.l.b16 %v237
        %v295 = vunpack.c.h.b16 %v237
        %v296 = vunpack.c.l.b16 %v238
        %v297 = vunpack.c.h.b16 %v238
        %v298 = vunpack.c.l.b16 %v239
        %v299 = vunpack.c.h.b16 %v239
        %v300 = vpack.c.b16 %v270, %v268
        %v301 = vpack.c.b16 %v271, %v269
        %v302 = vpack.c.b16 %v274, %v272
        %v303 = vpack.c.b16 %v275, %v273
        %v304 = vpack.c.b16 %v278, %v276
        %v305 = vpack.c.b16 %v279, %v277
        %v306 = vpack.c.b16 %v282, %v280
        %v307 = vpack.c.b16 %v283, %v281
        %v308 = vpack.c.b16 %v286, %v284
        %v309 = vpack.c.b16 %v287, %v285
        %v310 = vpack.c.b16 %v290, %v288
        %v311 = vpack.c.b16 %v291, %v289
        %v312 = vpack.c.b16 %v294, %v292
        %v313 = vpack.c.b16 %v295, %v293
        %v314 = vpack.c.b16 %v298, %v296
        %v315 = vpack.c.b16 %v299, %v297
        %332 = vmatpush.bf16.msra.mxu0 %v314
        %333 = vmatpush.bf16.msra.mxu0 %v312
        %334 = vmatpush.bf16.msra.mxu0 %v310
        %335 = vmatpush.bf16.msra.mxu0 %v308
        %336 = vmatpush.bf16.msra.mxu0 %v306
        %337 = vmatpush.bf16.msra.mxu0 %v304
        %338 = vmatpush.bf16.msra.mxu0 %v302
        %339 = vmatpush.bf16.msra.mxu0 %v300
        %340 = vmatmul.bf16.gmra.mxu0 %v250
        %v341 = vpop.f32.mrf.mxu0
        %v342 = vadd.f32 %v242, %v341
        %v343 = vpop.f32.mrf.mxu0
        %v344 = vadd.f32 %v242, %v343
        %345 = vdwg.mxu0
        %346 = vmatpush.bf16.msra.mxu0 %v315
        %347 = vmatpush.bf16.msra.mxu0 %v313
        %348 = vmatpush.bf16.msra.mxu0 %v311
        %349 = vmatpush.bf16.msra.mxu0 %v309
        %350 = vmatpush.bf16.msra.mxu0 %v307
        %351 = vmatpush.bf16.msra.mxu0 %v305
        %352 = vmatpush.bf16.msra.mxu0 %v303
        %353 = vmatpush.bf16.msra.mxu0 %v301
        %354 = vmatmul.bf16.gmra.mxu0 %v250
        %v355 = vpop.f32.mrf.mxu0
        %v356 = vadd.f32 %v243, %v355
        %v357 = vpop.f32.mrf.mxu0
        %v358 = vadd.f32 %v243, %v357
        %359 = vdwg.mxu0
        %v360 = vxor.u32 %v342, 2147483648
        %v361 = vxor.u32 %v356, 2147483648
        %v362 = vxor.u32 %v344, 2147483648
        %v363 = vxor.u32 %v358, 2147483648
        %v364 = vmul.f32 %v360, 1.442695
        %v365 = vpow.pop %v364
        %v366 = vmul.f32 %v361, 1.442695
        %v367 = vpow.pop %v366
        %v368 = vmul.f32 %v362, 1.442695
        %v369 = vpow.pop %v368
        %v370 = vmul.f32 %v363, 1.442695
        %v371 = vpow.pop %v370
        %v372 = vadd.f32 %v365, 1.0
        %v373 = vadd.f32 %v367, 1.0
        %v374 = vadd.f32 %v369, 1.0
        %v375 = vadd.f32 %v371, 1.0
        %v376 = vrcp.pop %v372
        %v377 = vmul.f32 %v372, %v376
        %v378 = vsub.f32 1.0, %v377
        %v379 = vmul.f32 %v376, %v378
        %v380 = vadd.f32 %v376, %v379
        %vm381 = vweird.f32 %v372
        %vm382 = vweird.f32 %v376
        %vm383 = vmor %vm381, %vm382
        %v384 = vsel %vm383, %v376, %v380
        %v385 = vand.u32 2147483647, %v372
        %vm386 = vcmp.eq.f32.partialorder %v385, 8.507059e+37
        %v387 = vand.u32 %v372, 2147483648
        %v388 = vor.u32 1.1754944e-38, %v387
        %v389 = vsel %vm386, %v388, %v384
        %v390 = vmul.f32 1.0, %v389
        %v391 = vrcp.pop %v373
        %v392 = vmul.f32 %v373, %v391
        %v393 = vsub.f32 1.0, %v392
        %v394 = vmul.f32 %v391, %v393
        %v395 = vadd.f32 %v391, %v394
        %vm396 = vweird.f32 %v373
        %vm397 = vweird.f32 %v391
        %vm398 = vmor %vm396, %vm397
        %v399 = vsel %vm398, %v391, %v395
        %v400 = vand.u32 2147483647, %v373
        %vm401 = vcmp.eq.f32.partialorder %v400, 8.507059e+37
        %v402 = vand.u32 %v373, 2147483648
        %v403 = vor.u32 1.1754944e-38, %v402
        %v404 = vsel %vm401, %v403, %v399
        %v405 = vmul.f32 1.0, %v404
        %v406 = vrcp.pop %v374
        %v407 = vmul.f32 %v374, %v406
        %v408 = vsub.f32 1.0, %v407
        %v409 = vmul.f32 %v406, %v408
        %v410 = vadd.f32 %v406, %v409
        %vm411 = vweird.f32 %v374
        %vm412 = vweird.f32 %v406
        %vm413 = vmor %vm411, %vm412
        %v414 = vsel %vm413, %v406, %v410
        %v415 = vand.u32 2147483647, %v374
        %vm416 = vcmp.eq.f32.partialorder %v415, 8.507059e+37
        %v417 = vand.u32 %v374, 2147483648
        %v418 = vor.u32 1.1754944e-38, %v417
        %v419 = vsel %vm416, %v418, %v414
        %v420 = vmul.f32 1.0, %v419
        %v421 = vrcp.pop %v375
        %v422 = vmul.f32 %v375, %v421
        %v423 = vsub.f32 1.0, %v422
        %v424 = vmul.f32 %v421, %v423
        %v425 = vadd.f32 %v421, %v424
        %vm426 = vweird.f32 %v375
        %vm427 = vweird.f32 %v421
        %vm428 = vmor %vm426, %vm427
        %v429 = vsel %vm428, %v421, %v425
        %v430 = vand.u32 2147483647, %v375
        %vm431 = vcmp.eq.f32.partialorder %v430, 8.507059e+37
        %v432 = vand.u32 %v375, 2147483648
        %v433 = vor.u32 1.1754944e-38, %v432
        %v434 = vsel %vm431, %v433, %v429
        %v435 = vmul.f32 1.0, %v434
        %v436 = vmul.f32 %v342, %v390
        %v437 = vmul.f32 %v356, %v405
        %v438 = vmul.f32 %v344, %v420
        %v439 = vmul.f32 %v358, %v435
        %v440 = vadd.f32 %v436, %v438
        %v441 = vrot.slane %v440, 4
        %v442 = vadd.f32 %v440, %v441
        %v443 = vrot.slane %v442, 2
        %v444 = vadd.f32 %v442, %v443
        %v445 = vrot.slane %v444, 1
        %v446 = vadd.f32 %v444, %v445
        %v447 = vadd.f32 %v437, %v439
        %v448 = vrot.slane %v447, 4
        %v449 = vadd.f32 %v447, %v448
        %v450 = vrot.slane %v449, 2
        %v451 = vadd.f32 %v449, %v450
        %v452 = vrot.slane %v451, 1
        %v453 = vadd.f32 %v451, %v452
        %v454 = vmul.f32 %v446, 0.0625
        %v455 = vmul.f32 %v453, 0.0625
        %v456 = vpack.c.bf16 %v454, %v454
        %v457 = vpack.c.bf16 %v455, %v455
        %v458 = vld [vmem:[%s3] sm:$0xf]
        %v459 = vld [vmem:[%s3 + $0x4] sm:$0xf]
        %v460 = vld [vmem:[%s3 + $0x8] sm:$0xf]
        %v461 = vld [vmem:[%s3 + $0xc] sm:$0xf]
        %v462 = vld [vmem:[%s3 + $0x10] sm:$0xf]
        %v463 = vld [vmem:[%s3 + $0x14] sm:$0xf]
        %v464 = vld [vmem:[%s3 + $0x18] sm:$0xf]
        %v465 = vld [vmem:[%s3 + $0x1c] sm:$0xf]
        %v466 = vld [vmem:[%s3 + $0x20] sm:$0xf]
        %v467 = vld [vmem:[%s3 + $0x24] sm:$0xf]
        %v468 = vld [vmem:[%s3 + $0x28] sm:$0xf]
        %v469 = vld [vmem:[%s3 + $0x2c] sm:$0xf]
        %v470 = vld [vmem:[%s3 + $0x30] sm:$0xf]
        %v471 = vld [vmem:[%s3 + $0x34] sm:$0xf]
        %v472 = vld [vmem:[%s3 + $0x38] sm:$0xf]
        %v473 = vld [vmem:[%s3 + $0x3c] sm:$0xf]
        %v474 = vld [vmem:[%s3 + $0x40] sm:$0xf]
        %v475 = vld [vmem:[%s3 + $0x44] sm:$0xf]
        %v476 = vld [vmem:[%s3 + $0x48] sm:$0xf]
        %v477 = vld [vmem:[%s3 + $0x4c] sm:$0xf]
        %v478 = vld [vmem:[%s3 + $0x50] sm:$0xf]
        %v479 = vld [vmem:[%s3 + $0x54] sm:$0xf]
        %v480 = vld [vmem:[%s3 + $0x58] sm:$0xf]
        %v481 = vld [vmem:[%s3 + $0x5c] sm:$0xf]
        %v482 = vld [vmem:[%s3 + $0x60] sm:$0xf]
        %v483 = vld [vmem:[%s3 + $0x64] sm:$0xf]
        %v484 = vld [vmem:[%s3 + $0x68] sm:$0xf]
        %v485 = vld [vmem:[%s3 + $0x6c] sm:$0xf]
        %v486 = vld [vmem:[%s3 + $0x70] sm:$0xf]
        %v487 = vld [vmem:[%s3 + $0x74] sm:$0xf]
        %v488 = vld [vmem:[%s3 + $0x78] sm:$0xf]
        %v489 = vld [vmem:[%s3 + $0x7c] sm:$0xf]
        %v490 = vld [vmem:[%s4] sm:$0x1]
        %v523 = vunpack.c.l.b16 %v458
        %v524 = vunpack.c.l.b16 %v459
        %v525 = vunpack.c.l.b16 %v460
        %v526 = vunpack.c.l.b16 %v461
        %v527 = vunpack.c.l.b16 %v462
        %v528 = vunpack.c.l.b16 %v463
        %v529 = vunpack.c.l.b16 %v464
        %v530 = vunpack.c.l.b16 %v465
        %v531 = vunpack.c.l.b16 %v466
        %v532 = vunpack.c.l.b16 %v467
        %v533 = vunpack.c.l.b16 %v468
        %v534 = vunpack.c.l.b16 %v469
        %v535 = vunpack.c.l.b16 %v470
        %v536 = vunpack.c.l.b16 %v471
        %v537 = vunpack.c.l.b16 %v472
        %v538 = vunpack.c.l.b16 %v473
        %v539 = vunpack.c.l.b16 %v474
        %v540 = vunpack.c.l.b16 %v475
        %v541 = vunpack.c.l.b16 %v476
        %v542 = vunpack.c.l.b16 %v477
        %v543 = vunpack.c.l.b16 %v478
        %v544 = vunpack.c.l.b16 %v479
        %v545 = vunpack.c.l.b16 %v480
        %v546 = vunpack.c.l.b16 %v481
        %v547 = vunpack.c.l.b16 %v482
        %v548 = vunpack.c.l.b16 %v483
        %v549 = vunpack.c.l.b16 %v484
        %v550 = vunpack.c.l.b16 %v485
        %v551 = vunpack.c.l.b16 %v486
        %v552 = vunpack.c.l.b16 %v487
        %v553 = vunpack.c.l.b16 %v488
        %v554 = vunpack.c.l.b16 %v489
        %v555 = vpack.c.b16 %v524, %v523
        %v556 = vpack.c.b16 %v526, %v525
        %v557 = vpack.c.b16 %v528, %v527
        %v558 = vpack.c.b16 %v530, %v529
        %v559 = vpack.c.b16 %v532, %v531
        %v560 = vpack.c.b16 %v534, %v533
        %v561 = vpack.c.b16 %v536, %v535
        %v562 = vpack.c.b16 %v538, %v537
        %v563 = vpack.c.b16 %v540, %v539
        %v564 = vpack.c.b16 %v542, %v541
        %v565 = vpack.c.b16 %v544, %v543
        %v566 = vpack.c.b16 %v546, %v545
        %v567 = vpack.c.b16 %v548, %v547
        %v568 = vpack.c.b16 %v550, %v549
        %v569 = vpack.c.b16 %v552, %v551
        %v570 = vpack.c.b16 %v554, %v553
        %587 = vmatpush.bf16.msra.mxu0 %v562
        %588 = vmatpush.bf16.msra.mxu0 %v561
        %589 = vmatpush.bf16.msra.mxu0 %v560
        %590 = vmatpush.bf16.msra.mxu0 %v559
        %591 = vmatpush.bf16.msra.mxu0 %v558
        %592 = vmatpush.bf16.msra.mxu0 %v557
        %593 = vmatpush.bf16.msra.mxu0 %v556
        %594 = vmatpush.bf16.msra.mxu0 %v555
        %595 = vmatmul.bf16.gmra.mxu0 %v456
        %v596 = vpop.f32.mrf.mxu0
        %v597 = vadd.f32 %v490, %v596
        %v598 = vpop.f32.mrf.mxu0
        %599 = vdwg.mxu0
        %600 = vmatpush.bf16.msra.mxu0 %v570
        %601 = vmatpush.bf16.msra.mxu0 %v569
        %602 = vmatpush.bf16.msra.mxu0 %v568
        %603 = vmatpush.bf16.msra.mxu0 %v567
        %604 = vmatpush.bf16.msra.mxu0 %v566
        %605 = vmatpush.bf16.msra.mxu0 %v565
        %606 = vmatpush.bf16.msra.mxu0 %v564
        %607 = vmatpush.bf16.msra.mxu0 %v563
        %608 = vmatmul.bf16.gmra.mxu0 %v457
        %v609 = vpop.f32.mrf.mxu0
        %v610 = vadd.f32 %v597, %v609
        %v611 = vpop.f32.mrf.mxu0
        %612 = vdwg.mxu0
        %613 = vst [vmem:[%s216] sm:$0x1] %v610
        %s614 = sand.u32 %s137, 1
        %s615 = scalar_lea.sflag [#allocation3], %s614
        %s616 = sand.u32 %s137, 1
        %s617 = scalar_lea.vmem [#allocation2], %s616
        // Predicated region
        $region41: #{efficientnet_b7_forward.11} parent=39 // pred_check
          %p618 = pneg %p147
        $region42: #{efficientnet_b7_forward.11} parent=39 // pred_check_branch
          %620 = sbr.rel (%p618) target = $region44
        $region43: #{efficientnet_b7_forward.11} parent=39 // pred_region
          %622 = vsyncadd %s615, 0
          %s623 = scalar_lea.hbm %s5, %s19
          %s625 = sshll.u32 %s617, 4
          %s626 = int_to_ptr.vmem [resolvable:$true] %s625
          %s627 = sshll.u32 %s623, 4
          %s628 = int_to_ptr.hbm [resolvable:$true] %s627
          %630 = dma.vmem_to_hbm [thread:$0]  %s626, 16, %s628, %s615
        $region44: #{efficientnet_b7_forward.11} parent=39 // pred_fallthru
          _
      $region40: #{efficientnet_b7_forward.11} parent=5 // pred_fallthru
        _
      %p631 = scmp.le.s32.totalorder 2, %s14
      // Predicated region
      $region45: #{efficientnet_b7_forward.11} parent=5 // pred_check
        %p632 = pneg %p631
      $region46: #{efficientnet_b7_forward.11} parent=5 // pred_check_branch
        %634 = sbr.rel (%p632) target = $region48
      $region47: #{efficientnet_b7_forward.11} parent=5 // pred_region
        %s635 = ssub.s32 %s14, 2
        // Predicated region
        $region49: #{efficientnet_b7_forward.11} parent=47 // pred_check
          %p636 = pneg %p153
        $region50: #{efficientnet_b7_forward.11} parent=47 // pred_check_branch
          %638 = sbr.rel (%p636) target = $region52
        $region51: #{efficientnet_b7_forward.11} parent=47 // pred_region
          %s639 = sand.u32 %s138, 1
          %s640 = scalar_lea.sflag [#allocation3], %s639
          %s641 = sand.u32 %s138, 1
          %s642 = scalar_lea.vmem [#allocation2], %s641
          %644 = dma.done %s640, 16
        $region52: #{efficientnet_b7_forward.11} parent=47 // pred_fallthru
          _
      $region48: #{efficientnet_b7_forward.11} parent=5 // pred_fallthru
        _
    $region6: #{efficientnet_b7_forward.11} parent=1 // loop_footer
      %s18 = sadd.s32 1, %s14
    $region7: #{efficientnet_b7_forward.11} parent=1 // loop_footer_branch
      %13 = sbr.rel target = $region3
    $region8: #{efficientnet_b7_forward.11} parent=1 // loop_exit
      _
    %645 = vsyncpa [#allocation3], 1
    %s646 = scalar_lea.sflag [#allocation3], 1
    %647 = vsyncpa %s646, 1

</llo_original>
